<compile_context>
chip_gen: v6e
topology: v6e:2x2x1
jax: 0.10.0
libtpu: 0.0.40
codegen_flags: <defaults>
</compile_context>

<pallas_src>
import functools

import jax
import jax.numpy as jnp
from jax.experimental import pallas as pl
from jax.experimental.pallas import tpu as pltpu


def _deepergcn_kernel(
    # scalar prefetch
    t_sm,                                      # SMEM [L]  GENConv temperatures
    # resident (constant-index) inputs
    x_ref, ea_ref,                             # [N,Fn] f32, [E,Fe] f32
    src_oh_ref, dst_oh_ref,                    # [E,N] bf16, [N,E] bf16 (0/1)
    w_ne_ref, b_ne_ref, w_ee_ref, b_ee_ref,    # encoders (weights bf16, biases f32)
    ln0_g_ref, ln0_b_ref,                      # [1,H]  final (layer-0) LayerNorm
    # per-layer streamed inputs (block = one layer, double-buffered by the pipeline)
    ln_g_ref, ln_b_ref,                        # [1,1,H]
    w1_ref, b1_ref,                            # [1,H,2H] bf16, [1,1,2H]
    mg_ref, mb_ref,                            # [1,1,2H]           GENConv MLP LN
    w2_ref, b2_ref,                            # [1,2H,H] bf16, [1,1,H]
    w_out_ref, b_out_ref,                      # [H,Cp] bf16, [1,Cp]  (lane-padded)
    # output / scratch
    out_ref,                                   # [N,Cp] f32
    x_sc, e_sc,                                # VMEM [N,H] f32, VMEM [E,H] f32
    *, hidden, eps, ln_eps):
  l = pl.program_id(0)
  num_layers = pl.num_programs(0)

  def layer_norm(v, g, b):
    # single reduction pass; gamma folded into the rsqrt scale
    mu = jnp.mean(v, axis=-1, keepdims=True)
    ms = jnp.mean(v * v, axis=-1, keepdims=True)
    scale = jax.lax.rsqrt(jnp.maximum(ms - mu * mu, 0.0) + ln_eps) * g
    return v * scale + (b - mu * scale)

  # ---- prologue (first grid step): encoders -> persistent VMEM scratch ----
  @pl.when(l == 0)
  def _():
    x_sc[...] = (jnp.dot(x_ref[...].astype(jnp.bfloat16), w_ne_ref[...],
                         preferred_element_type=jnp.float32) + b_ne_ref[...])
    e_sc[...] = (jnp.dot(ea_ref[...].astype(jnp.bfloat16), w_ee_ref[...],
                         preferred_element_type=jnp.float32) + b_ee_ref[...])

  x_cur = x_sc[...]                                               # [N,H] f32
  is_first = l == 0

  # "res+" pre-activation: h = ReLU(LN_l(x)) for l >= 1, h = x for the first conv.
  # TODO(synk): F.dropout(p=0.1) is identity in eval mode, omitted.
  h_ln = jnp.maximum(layer_norm(x_cur, ln_g_ref[0], ln_b_ref[0]), 0.0)
  h = jnp.where(is_first, x_cur, h_ln)

  # ---- GENConv (aggr='softmax', learnable t, 2-layer MLP with LayerNorm) ----
  t = t_sm[l]
  # gather source-node features per edge: 0/1 one-hot @ features on the MXU
  h_src = jnp.dot(src_oh_ref[...], h.astype(jnp.bfloat16),
                  preferred_element_type=jnp.float32)             # [E,H]
  m = jnp.maximum(h_src + e_sc[...], 0.0) + eps                   # messages, >= eps
  # softmax over edges sharing a destination is shift-invariant; m >= 0 and t ~ 1 so
  # no shift is needed for normal activations — just clamp the exponent for safety.
  # TODO(synk): PyG's per-destination-group max shift cannot be expressed as a matmul
  #             scatter; for t*m > 60 the clamp saturates (extreme activations only).
  z = jnp.exp(jnp.minimum(t * m, 60.0))                           # [E,H]
  # fused scatter: one lane-dense [E,2H] bf16 operand -> a single [N,2H] matmul
  zzm = jnp.concatenate([z, z * m], axis=-1).astype(jnp.bfloat16) # [E,2H]
  s = jnp.dot(dst_oh_ref[...], zzm, preferred_element_type=jnp.float32)  # [N,2H]
  denom = s[:, :hidden]
  numer = s[:, hidden:]
  # zero in-degree nodes: numer == 0 -> agg == 0 (matches PyG scatter semantics)
  agg = numer * pl.reciprocal(jnp.maximum(denom, 1e-12), approx=True)
  y = agg + h                                                     # root connection
  # GENConv MLP: Linear(H->2H) -> LayerNorm -> ReLU -> Linear(2H->H), bf16 weights
  y = (jnp.dot(y.astype(jnp.bfloat16), w1_ref[0],
               preferred_element_type=jnp.float32) + b1_ref[0])
  y = jnp.maximum(layer_norm(y, mg_ref[0], mb_ref[0]), 0.0)
  conv = (jnp.dot(y.astype(jnp.bfloat16), w2_ref[0],
                  preferred_element_type=jnp.float32) + b2_ref[0])

  x_new = jnp.where(is_first, conv, x_cur + conv)                 # layer 0: conv only
  x_sc[...] = x_new

  # ---- epilogue (last grid step): ReLU(LN_0(x)) -> lane-dense output linear ----
  @pl.when(l == num_layers - 1)
  def _():
    xf = jnp.maximum(layer_norm(x_new, ln0_g_ref[...], ln0_b_ref[...]), 0.0)
    out = (jnp.dot(xf.astype(jnp.bfloat16), w_out_ref[...],
                   preferred_element_type=jnp.float32) + b_out_ref[...])
    out_ref[...] = out.astype(out_ref.dtype)


def _const_spec(a):
  """Full-array block, same (0,..) index every layer step -> DMA'd once, resident."""
  nd = a.ndim
  return pl.BlockSpec(a.shape, lambda l, t_ref: (0,) * nd)


def _layer_spec(a):
  """Leading layer axis streamed: one layer's slice per grid step."""
  blk = (1,) + a.shape[1:]
  nd = a.ndim - 1
  return pl.BlockSpec(blk, lambda l, t_ref: (l,) + (0,) * nd)


def _linear_init(key, cin, cout, w_dtype=jnp.bfloat16):
  k1, k2 = jax.random.split(key)
  s = 1.0 / jnp.sqrt(jnp.float32(cin))
  w = jax.random.uniform(k1, (cin, cout), jnp.float32, -s, s).astype(w_dtype)
  b = jax.random.uniform(k2, (1, cout), jnp.float32, -s, s)
  return w, b


def init_deepergcn_params(key, node_dim, edge_dim, hidden, num_layers, num_tasks):
  ks = jax.random.split(key, 3 + 2 * num_layers)
  w_ne, b_ne = _linear_init(ks[0], node_dim, hidden)
  w_ee, b_ee = _linear_init(ks[1], edge_dim, hidden)
  w_out, b_out = _linear_init(ks[2], hidden, num_tasks)
  # lane-dense final store: pad the task dim to a multiple of 128 ONCE, at init
  c_pad = ((num_tasks + 127) // 128) * 128
  w_out_p = jnp.zeros((hidden, c_pad), jnp.bfloat16).at[:, :num_tasks].set(w_out)
  b_out_p = jnp.zeros((1, c_pad), jnp.float32).at[:, :num_tasks].set(b_out)
  w1s, b1s, w2s, b2s = [], [], [], []
  for l in range(num_layers):
    w1, b1 = _linear_init(ks[3 + 2 * l], hidden, 2 * hidden)
    w2, b2 = _linear_init(ks[4 + 2 * l], 2 * hidden, hidden)
    w1s.append(w1); b1s.append(b1); w2s.append(w2); b2s.append(b2)
  return dict(
      w_ne=w_ne, b_ne=b_ne, w_ee=w_ee, b_ee=b_ee,
      w_out=w_out_p, b_out=b_out_p, num_tasks=num_tasks,
      t=jnp.ones((num_layers,), jnp.float32),                      # learn_t, init 1.0
      ln_gamma=jnp.ones((num_layers, 1, hidden), jnp.float32),
      ln_beta=jnp.zeros((num_layers, 1, hidden), jnp.float32),
      w1=jnp.stack(w1s), b1=jnp.stack(b1s),
      mlp_ln_gamma=jnp.ones((num_layers, 1, 2 * hidden), jnp.float32),
      mlp_ln_beta=jnp.zeros((num_layers, 1, 2 * hidden), jnp.float32),
      w2=jnp.stack(w2s), b2=jnp.stack(b2s),
  )


def deepergcn_forward(params, x, edge_index, edge_attr, num_nodes):
  n = int(num_nodes)
  n_edges = int(edge_attr.shape[0])
  hidden = int(params["w1"].shape[1])
  num_layers = int(params["w1"].shape[0])
  num_tasks = int(params["num_tasks"])
  c_pad = int(params["w_out"].shape[1])

  # 0/1 gather (src) and scatter (dst) matrices; exact as bf16 -> native MXU rate.
  src_oh = jax.nn.one_hot(edge_index[0], n, dtype=jnp.bfloat16)        # [E,N]
  dst_oh = jax.nn.one_hot(edge_index[1], n, dtype=jnp.bfloat16).T      # [N,E]

  const_args = (
      x, edge_attr, src_oh, dst_oh,
      params["w_ne"], params["b_ne"], params["w_ee"], params["b_ee"],
      params["ln_gamma"][0], params["ln_beta"][0],
  )
  layer_args = (
      params["ln_gamma"], params["ln_beta"],
      params["w1"], params["b1"],
      params["mlp_ln_gamma"], params["mlp_ln_beta"],
      params["w2"], params["b2"],
  )
  tail_args = (params["w_out"], params["b_out"])

  in_specs = ([_const_spec(a) for a in const_args]
              + [_layer_spec(a) for a in layer_args]
              + [_const_spec(a) for a in tail_args])

  kernel = functools.partial(_deepergcn_kernel, hidden=hidden, eps=1e-7, ln_eps=1e-5)

  # VMEM budget derived from the actual operand footprint (resident one-hots +
  # double-buffered one-layer weight slice + scratch/output); capped at 48 MiB so the
  # kernel stays inside v7x's 64 MiB physical VMEM (raise toward ~100 MiB on v5e/v6e).
  resident = sum(a.size * a.dtype.itemsize for a in const_args + tail_args)
  per_layer = sum(a.size * a.dtype.itemsize for a in layer_args) // num_layers
  scratch = (n + n_edges) * hidden * 4 + n * c_pad * 4
  vmem_limit = int(min(max(4 * (resident + 2 * per_layer + scratch), 16 << 20), 48 << 20))

  out = pl.pallas_call(
      kernel,
      out_shape=jax.ShapeDtypeStruct((n, c_pad), jnp.float32),
      grid_spec=pltpu.PrefetchScalarGridSpec(
          num_scalar_prefetch=1,                    # GENConv temperatures -> SMEM
          grid=(num_layers,),                       # one grid step per GCN layer
          in_specs=in_specs,
          out_specs=pl.BlockSpec((n, c_pad), lambda l, t_ref: (0, 0)),
          scratch_shapes=[pltpu.VMEM((n, hidden), jnp.float32),       # node state x
                          pltpu.VMEM((n_edges, hidden), jnp.float32)]),  # encoded edges
      compiler_params=pltpu.CompilerParams(
          dimension_semantics=("arbitrary",),       # layers are sequential
          vmem_limit_bytes=vmem_limit),
  )(params["t"], *const_args, *layer_args, *tail_args)
  return out[:, :num_tasks]


def _reference_forward(params, x, edge_index, edge_attr, num_nodes):
  """Pure-JAX reference mirroring the kernel's bf16 matmul precision."""
  n = int(num_nodes)
  num_layers = int(params["w1"].shape[0])
  num_tasks = int(params["num_tasks"])
  src, dst = edge_index[0], edge_index[1]

  def ln(v, g, b, eps=1e-5):
    mu = jnp.mean(v, -1, keepdims=True)
    var = jnp.mean((v - mu) ** 2, -1, keepdims=True)
    return (v - mu) * jax.lax.rsqrt(var + eps) * g + b

  def dot(a, w):
    return jnp.dot(a.astype(jnp.bfloat16), w, preferred_element_type=jnp.float32)

  e_enc = dot(edge_attr, params["w_ee"]) + params["b_ee"]
  xx = dot(x, params["w_ne"]) + params["b_ne"]

  def gen_conv(h, l):
    h_src = h.astype(jnp.bfloat16).astype(jnp.float32)[src]
    m = jnp.maximum(h_src + e_enc, 0.0) + 1e-7
    zf = jnp.exp(params["t"][l] * m)
    z = zf.astype(jnp.bfloat16).astype(jnp.float32)
    zm = (zf * m).astype(jnp.bfloat16).astype(jnp.float32)
    denom = jax.ops.segment_sum(z, dst, num_segments=n)
    numer = jax.ops.segment_sum(zm, dst, num_segments=n)
    agg = numer / jnp.maximum(denom, 1e-12)
    y = agg + h
    y = dot(y, params["w1"][l]) + params["b1"][l]
    y = jnp.maximum(ln(y, params["mlp_ln_gamma"][l], params["mlp_ln_beta"][l]), 0.0)
    return dot(y, params["w2"][l]) + params["b2"][l]

  xx = gen_conv(xx, 0)
  for l in range(1, num_layers):
    h = jnp.maximum(ln(xx, params["ln_gamma"][l], params["ln_beta"][l]), 0.0)
    xx = xx + gen_conv(h, l)
  xx = jnp.maximum(ln(xx, params["ln_gamma"][0], params["ln_beta"][0]), 0.0)
  out = dot(xx, params["w_out"]) + params["b_out"]
  return out[:, :num_tasks]


if __name__ == "__main__":
  key = jax.random.PRNGKey(0)
  k_x, k_ea, k_src, k_dst, k_p = jax.random.split(key, 5)

  # Small synthetic ogbn-proteins-like graph
  N, E = 64, 256
  node_dim, edge_dim = 8, 8
  hidden, num_layers, num_tasks = 64, 3, 112

  x = jax.random.normal(k_x, (N, node_dim), jnp.float32)
  edge_attr = jax.random.normal(k_ea, (E, edge_dim), jnp.float32)
  src = jax.random.randint(k_src, (E,), 0, N)
  dst = jax.random.randint(k_dst, (E,), 0, N)
  edge_index = jnp.stack([src, dst])                                  # [2, E]

  params = init_deepergcn_params(k_p, node_dim, edge_dim, hidden, num_layers, num_tasks)

  out = deepergcn_forward(params, x, edge_index, edge_attr, N)
  out = jax.block_until_ready(out)
  assert out.shape == (N, num_tasks)
  assert bool(jnp.all(jnp.isfinite(out)))

  ref = _reference_forward(params, x, edge_index, edge_attr, N)
  assert bool(jnp.allclose(out, ref, rtol=2e-2, atol=2e-2)), \
      float(jnp.max(jnp.abs(out - ref)))
  print("KERNEL_OK")
</pallas_src>

<mosaic_0001>
module attributes {stable_mosaic.version = 11 : i64} {
  func.func @_deepergcn_kernel(%arg0: i32, %arg1: memref<3xf32, #tpu.memory_space<smem>>, %arg2: memref<64x8xf32, #tpu.memory_space<vmem>>, %arg3: memref<256x8xf32, #tpu.memory_space<vmem>>, %arg4: memref<256x64xbf16, #tpu.memory_space<vmem>>, %arg5: memref<64x256xbf16, #tpu.memory_space<vmem>>, %arg6: memref<8x64xbf16, #tpu.memory_space<vmem>>, %arg7: memref<1x64xf32, #tpu.memory_space<vmem>>, %arg8: memref<8x64xbf16, #tpu.memory_space<vmem>>, %arg9: memref<1x64xf32, #tpu.memory_space<vmem>>, %arg10: memref<1x64xf32, #tpu.memory_space<vmem>>, %arg11: memref<1x64xf32, #tpu.memory_space<vmem>>, %arg12: memref<1x1x64xf32, #tpu.memory_space<vmem>>, %arg13: memref<1x1x64xf32, #tpu.memory_space<vmem>>, %arg14: memref<1x64x128xbf16, #tpu.memory_space<vmem>>, %arg15: memref<1x1x128xf32, #tpu.memory_space<vmem>>, %arg16: memref<1x1x128xf32, #tpu.memory_space<vmem>>, %arg17: memref<1x1x128xf32, #tpu.memory_space<vmem>>, %arg18: memref<1x128x64xbf16, #tpu.memory_space<vmem>>, %arg19: memref<1x1x64xf32, #tpu.memory_space<vmem>>, %arg20: memref<64x128xbf16, #tpu.memory_space<vmem>>, %arg21: memref<1x128xf32, #tpu.memory_space<vmem>>, %arg22: memref<64x128xf32, #tpu.memory_space<vmem>>, %arg23: memref<64x64xf32, #tpu.memory_space<vmem>>, %arg24: memref<256x64xf32, #tpu.memory_space<vmem>>) attributes {dimension_semantics = [#tpu.dimension_semantics<arbitrary>], iteration_bounds = array<i64: 3>, scalar_prefetch = 1 : i64, scratch_operands = 2 : i64, tpu.core_type = #tpu.core_type<tc>, window_params = [{pipeline_mode = #tpu.pipeline_mode<synchronous>, transform_indices = @transform_0, window_bounds = array<i64: 64, 8>}, {pipeline_mode = #tpu.pipeline_mode<synchronous>, transform_indices = @transform_1, window_bounds = array<i64: 256, 8>}, {pipeline_mode = #tpu.pipeline_mode<synchronous>, transform_indices = @transform_2, window_bounds = array<i64: 256, 64>}, {pipeline_mode = #tpu.pipeline_mode<synchronous>, transform_indices = @transform_3, window_bounds = array<i64: 64, 256>}, {pipeline_mode = #tpu.pipeline_mode<synchronous>, transform_indices = @transform_4, window_bounds = array<i64: 8, 64>}, {pipeline_mode = #tpu.pipeline_mode<synchronous>, transform_indices = @transform_5, window_bounds = array<i64: 1, 64>}, {pipeline_mode = #tpu.pipeline_mode<synchronous>, transform_indices = @transform_6, window_bounds = array<i64: 8, 64>}, {pipeline_mode = #tpu.pipeline_mode<synchronous>, transform_indices = @transform_7, window_bounds = array<i64: 1, 64>}, {pipeline_mode = #tpu.pipeline_mode<synchronous>, transform_indices = @transform_8, window_bounds = array<i64: 1, 64>}, {pipeline_mode = #tpu.pipeline_mode<synchronous>, transform_indices = @transform_9, window_bounds = array<i64: 1, 64>}, {transform_indices = @transform_10, window_bounds = array<i64: 1, 1, 64>}, {transform_indices = @transform_11, window_bounds = array<i64: 1, 1, 64>}, {transform_indices = @transform_12, window_bounds = array<i64: 1, 64, 128>}, {transform_indices = @transform_13, window_bounds = array<i64: 1, 1, 128>}, {transform_indices = @transform_14, window_bounds = array<i64: 1, 1, 128>}, {transform_indices = @transform_15, window_bounds = array<i64: 1, 1, 128>}, {transform_indices = @transform_16, window_bounds = array<i64: 1, 128, 64>}, {transform_indices = @transform_17, window_bounds = array<i64: 1, 1, 64>}, {pipeline_mode = #tpu.pipeline_mode<synchronous>, transform_indices = @transform_18, window_bounds = array<i64: 64, 128>}, {pipeline_mode = #tpu.pipeline_mode<synchronous>, transform_indices = @transform_19, window_bounds = array<i64: 1, 128>}, {pipeline_mode = #tpu.pipeline_mode<synchronous>, transform_indices = @transform_20, window_bounds = array<i64: 64, 128>}]} {
    %c0_i32 = arith.constant 0 : i32
    %0 = arith.cmpi eq, %arg0, %c0_i32 : i32
    %1 = arith.extui %0 : i1 to i32
    %c0_i32_0 = arith.constant 0 : i32
    %2 = arith.cmpi ne, %1, %c0_i32_0 : i32
    scf.if %2 {
      %c0_57 = arith.constant 0 : index
      %c0_58 = arith.constant 0 : index
      %118 = vector.load %arg2[%c0_57, %c0_58] : memref<64x8xf32, #tpu.memory_space<vmem>>, vector<64x8xf32>
      %119 = arith.truncf %118 : vector<64x8xf32> to vector<64x8xbf16>
      %c0_59 = arith.constant 0 : index
      %c0_60 = arith.constant 0 : index
      %120 = vector.load %arg6[%c0_59, %c0_60] : memref<8x64xbf16, #tpu.memory_space<vmem>>, vector<8x64xbf16>
      %cst_61 = arith.constant dense<0.000000e+00> : vector<64x64xf32>
      %121 = tpu.matmul %119, %120, %cst_61 {dimension_numbers = #tpu.dot_dimension_numbers<[1], [0], [0], [1], [0, 0, 1, 1], [], []>} : vector<64x8xbf16>, vector<8x64xbf16>, vector<64x64xf32> -> vector<64x64xf32>
      %c0_62 = arith.constant 0 : index
      %c0_63 = arith.constant 0 : index
      %122 = vector.load %arg7[%c0_62, %c0_63] : memref<1x64xf32, #tpu.memory_space<vmem>>, vector<1x64xf32>
      %123 = vector.broadcast %122 : vector<1x64xf32> to vector<64x64xf32>
      %124 = arith.addf %121, %123 : vector<64x64xf32>
      %c0_64 = arith.constant 0 : index
      %c0_65 = arith.constant 0 : index
      %125 = vector.load %arg23[%c0_64, %c0_65] : memref<64x64xf32, #tpu.memory_space<vmem>>, vector<64x64xf32>
      tpu.vector_store %arg23[%c0_64, %c0_65], %124 {strides = array<i32>} : memref<64x64xf32, #tpu.memory_space<vmem>>, vector<64x64xf32>,
      %c0_66 = arith.constant 0 : index
      %c0_67 = arith.constant 0 : index
      %126 = vector.load %arg3[%c0_66, %c0_67] : memref<256x8xf32, #tpu.memory_space<vmem>>, vector<256x8xf32>
      %127 = arith.truncf %126 : vector<256x8xf32> to vector<256x8xbf16>
      %c0_68 = arith.constant 0 : index
      %c0_69 = arith.constant 0 : index
      %128 = vector.load %arg8[%c0_68, %c0_69] : memref<8x64xbf16, #tpu.memory_space<vmem>>, vector<8x64xbf16>
      %cst_70 = arith.constant dense<0.000000e+00> : vector<256x64xf32>
      %129 = tpu.matmul %127, %128, %cst_70 {dimension_numbers = #tpu.dot_dimension_numbers<[1], [0], [0], [1], [0, 0, 1, 1], [], []>} : vector<256x8xbf16>, vector<8x64xbf16>, vector<256x64xf32> -> vector<256x64xf32>
      %c0_71 = arith.constant 0 : index
      %c0_72 = arith.constant 0 : index
      %130 = vector.load %arg9[%c0_71, %c0_72] : memref<1x64xf32, #tpu.memory_space<vmem>>, vector<1x64xf32>
      %131 = vector.broadcast %130 : vector<1x64xf32> to vector<256x64xf32>
      %132 = arith.addf %129, %131 : vector<256x64xf32>
      %c0_73 = arith.constant 0 : index
      %c0_74 = arith.constant 0 : index
      %133 = vector.load %arg24[%c0_73, %c0_74] : memref<256x64xf32, #tpu.memory_space<vmem>>, vector<256x64xf32>
      tpu.vector_store %arg24[%c0_73, %c0_74], %132 {strides = array<i32>} : memref<256x64xf32, #tpu.memory_space<vmem>>, vector<256x64xf32>,
    } else {
    }
    %c0 = arith.constant 0 : index
    %c0_1 = arith.constant 0 : index
    %3 = vector.load %arg23[%c0, %c0_1] : memref<64x64xf32, #tpu.memory_space<vmem>>, vector<64x64xf32>
    %c0_i32_2 = arith.constant 0 : i32
    %4 = arith.cmpi eq, %arg0, %c0_i32_2 : i32
    %c0_3 = arith.constant 0 : index
    %c0_4 = arith.constant 0 : index
    %c0_5 = arith.constant 0 : index
    %5 = vector.load %arg12[%c0_3, %c0_4, %c0_5] : memref<1x1x64xf32, #tpu.memory_space<vmem>>, vector<1x1x64xf32>
    %6 = vector.shape_cast %5 : vector<1x1x64xf32> to vector<1x64xf32>
    %c0_6 = arith.constant 0 : index
    %c0_7 = arith.constant 0 : index
    %c0_8 = arith.constant 0 : index
    %7 = vector.load %arg13[%c0_6, %c0_7, %c0_8] : memref<1x1x64xf32, #tpu.memory_space<vmem>>, vector<1x1x64xf32>
    %8 = vector.shape_cast %7 : vector<1x1x64xf32> to vector<1x64xf32>
    %cst = arith.constant dense<0.000000e+00> : vector<64xf32>
    %9 = vector.multi_reduction <add>, %3, %cst [1] : vector<64x64xf32> to vector<64xf32>
    %10 = vector.shape_cast %9 : vector<64xf32> to vector<64x1xf32>
    %cst_9 = arith.constant 6.400000e+01 : f32
    %11 = vector.broadcast %cst_9 : f32 to vector<64x1xf32>
    %12 = arith.divf %10, %11 : vector<64x1xf32>
    %13 = arith.mulf %3, %3 : vector<64x64xf32>
    %cst_10 = arith.constant dense<0.000000e+00> : vector<64xf32>
    %14 = vector.multi_reduction <add>, %13, %cst_10 [1] : vector<64x64xf32> to vector<64xf32>
    %15 = vector.shape_cast %14 : vector<64xf32> to vector<64x1xf32>
    %cst_11 = arith.constant 6.400000e+01 : f32
    %16 = vector.broadcast %cst_11 : f32 to vector<64x1xf32>
    %17 = arith.divf %15, %16 : vector<64x1xf32>
    %18 = arith.mulf %12, %12 : vector<64x1xf32>
    %19 = arith.subf %17, %18 : vector<64x1xf32>
    %cst_12 = arith.constant 0.000000e+00 : f32
    %20 = vector.broadcast %cst_12 : f32 to vector<64x1xf32>
    %21 = arith.maximumf %19, %20 : vector<64x1xf32>
    %cst_13 = arith.constant 9.99999974E-6 : f32
    %22 = vector.broadcast %cst_13 : f32 to vector<64x1xf32>
    %23 = arith.addf %21, %22 : vector<64x1xf32>
    %24 = math.rsqrt %23 : vector<64x1xf32>
    %25 = vector.broadcast %24 : vector<64x1xf32> to vector<64x64xf32>
    %26 = vector.broadcast %6 : vector<1x64xf32> to vector<64x64xf32>
    %27 = arith.mulf %25, %26 : vector<64x64xf32>
    %28 = arith.mulf %3, %27 : vector<64x64xf32>
    %29 = vector.broadcast %12 : vector<64x1xf32> to vector<64x64xf32>
    %30 = arith.mulf %29, %27 : vector<64x64xf32>
    %31 = vector.broadcast %8 : vector<1x64xf32> to vector<64x64xf32>
    %32 = arith.subf %31, %30 : vector<64x64xf32>
    %33 = arith.addf %28, %32 : vector<64x64xf32>
    %cst_14 = arith.constant 0.000000e+00 : f32
    %34 = vector.broadcast %cst_14 : f32 to vector<64x64xf32>
    %35 = arith.maximumf %33, %34 : vector<64x64xf32>
    %36 = arith.select %4, %3, %35 : vector<64x64xf32>
    %37 = arith.index_cast %arg0 : i32 to index
    %38 = memref.load %arg1[%37] : memref<3xf32, #tpu.memory_space<smem>>
    %c0_15 = arith.constant 0 : index
    %c0_16 = arith.constant 0 : index
    %39 = vector.load %arg4[%c0_15, %c0_16] : memref<256x64xbf16, #tpu.memory_space<vmem>>, vector<256x64xbf16>
    %40 = arith.truncf %36 : vector<64x64xf32> to vector<64x64xbf16>
    %cst_17 = arith.constant dense<0.000000e+00> : vector<256x64xf32>
    %41 = tpu.matmul %39, %40, %cst_17 {dimension_numbers = #tpu.dot_dimension_numbers<[1], [0], [0], [1], [0, 0, 1, 1], [], []>} : vector<256x64xbf16>, vector<64x64xbf16>, vector<256x64xf32> -> vector<256x64xf32>
    %c0_18 = arith.constant 0 : index
    %c0_19 = arith.constant 0 : index
    %42 = vector.load %arg24[%c0_18, %c0_19] : memref<256x64xf32, #tpu.memory_space<vmem>>, vector<256x64xf32>
    %43 = arith.addf %41, %42 : vector<256x64xf32>
    %cst_20 = arith.constant 0.000000e+00 : f32
    %44 = vector.broadcast %cst_20 : f32 to vector<256x64xf32>
    %45 = arith.maximumf %43, %44 : vector<256x64xf32>
    %cst_21 = arith.constant 1.000000e-07 : f32
    %46 = vector.broadcast %cst_21 : f32 to vector<256x64xf32>
    %47 = arith.addf %45, %46 : vector<256x64xf32>
    %48 = vector.broadcast %38 : f32 to vector<256x64xf32>
    %49 = arith.mulf %48, %47 : vector<256x64xf32>
    %cst_22 = arith.constant 6.000000e+01 : f32
    %50 = vector.broadcast %cst_22 : f32 to vector<256x64xf32>
    %51 = arith.minimumf %49, %50 : vector<256x64xf32>
    %52 = math.exp %51 : vector<256x64xf32>
    %53 = arith.mulf %52, %47 : vector<256x64xf32>
    %54 = tpu.concatenate %52, %53 in 1 : vector<256x64xf32>, vector<256x64xf32> -> vector<256x128xf32>
    %55 = arith.truncf %54 : vector<256x128xf32> to vector<256x128xbf16>
    %c0_23 = arith.constant 0 : index
    %c0_24 = arith.constant 0 : index
    %56 = vector.load %arg5[%c0_23, %c0_24] : memref<64x256xbf16, #tpu.memory_space<vmem>>, vector<64x256xbf16>
    %cst_25 = arith.constant dense<0.000000e+00> : vector<64x128xf32>
    %57 = tpu.matmul %56, %55, %cst_25 {dimension_numbers = #tpu.dot_dimension_numbers<[1], [0], [0], [1], [0, 0, 1, 1], [], []>} : vector<64x256xbf16>, vector<256x128xbf16>, vector<64x128xf32> -> vector<64x128xf32>
    %58 = vector.extract_strided_slice %57 {offsets = [0, 0], sizes = [64, 64], strides = [1, 1]} : vector<64x128xf32> to vector<64x64xf32>
    %59 = vector.extract_strided_slice %57 {offsets = [0, 64], sizes = [64, 64], strides = [1, 1]} : vector<64x128xf32> to vector<64x64xf32>
    %cst_26 = arith.constant 9.99999996E-13 : f32
    %60 = vector.broadcast %cst_26 : f32 to vector<64x64xf32>
    %61 = arith.maximumf %58, %60 : vector<64x64xf32>
    %62 = tpu.reciprocal %61 {approx = true} : vector<64x64xf32> -> vector<64x64xf32>
    %63 = arith.mulf %59, %62 : vector<64x64xf32>
    %64 = arith.addf %63, %36 : vector<64x64xf32>
    %65 = arith.truncf %64 : vector<64x64xf32> to vector<64x64xbf16>
    %c0_27 = arith.constant 0 : index
    %c0_28 = arith.constant 0 : index
    %c0_29 = arith.constant 0 : index
    %66 = vector.load %arg14[%c0_27, %c0_28, %c0_29] : memref<1x64x128xbf16, #tpu.memory_space<vmem>>, vector<1x64x128xbf16>
    %67 = vector.shape_cast %66 : vector<1x64x128xbf16> to vector<64x128xbf16>
    %cst_30 = arith.constant dense<0.000000e+00> : vector<64x128xf32>
    %68 = tpu.matmul %65, %67, %cst_30 {dimension_numbers = #tpu.dot_dimension_numbers<[1], [0], [0], [1], [0, 0, 1, 1], [], []>} : vector<64x64xbf16>, vector<64x128xbf16>, vector<64x128xf32> -> vector<64x128xf32>
    %c0_31 = arith.constant 0 : index
    %c0_32 = arith.constant 0 : index
    %c0_33 = arith.constant 0 : index
    %69 = vector.load %arg15[%c0_31, %c0_32, %c0_33] : memref<1x1x128xf32, #tpu.memory_space<vmem>>, vector<1x1x128xf32>
    %70 = vector.shape_cast %69 : vector<1x1x128xf32> to vector<1x128xf32>
    %71 = vector.broadcast %70 : vector<1x128xf32> to vector<64x128xf32>
    %72 = arith.addf %68, %71 : vector<64x128xf32>
    %c0_34 = arith.constant 0 : index
    %c0_35 = arith.constant 0 : index
    %c0_36 = arith.constant 0 : index
    %73 = vector.load %arg16[%c0_34, %c0_35, %c0_36] : memref<1x1x128xf32, #tpu.memory_space<vmem>>, vector<1x1x128xf32>
    %74 = vector.shape_cast %73 : vector<1x1x128xf32> to vector<1x128xf32>
    %c0_37 = arith.constant 0 : index
    %c0_38 = arith.constant 0 : index
    %c0_39 = arith.constant 0 : index
    %75 = vector.load %arg17[%c0_37, %c0_38, %c0_39] : memref<1x1x128xf32, #tpu.memory_space<vmem>>, vector<1x1x128xf32>
    %76 = vector.shape_cast %75 : vector<1x1x128xf32> to vector<1x128xf32>
    %cst_40 = arith.constant dense<0.000000e+00> : vector<64xf32>
    %77 = vector.multi_reduction <add>, %72, %cst_40 [1] : vector<64x128xf32> to vector<64xf32>
    %78 = vector.shape_cast %77 : vector<64xf32> to vector<64x1xf32>
    %cst_41 = arith.constant 1.280000e+02 : f32
    %79 = vector.broadcast %cst_41 : f32 to vector<64x1xf32>
    %80 = arith.divf %78, %79 : vector<64x1xf32>
    %81 = arith.mulf %72, %72 : vector<64x128xf32>
    %cst_42 = arith.constant dense<0.000000e+00> : vector<64xf32>
    %82 = vector.multi_reduction <add>, %81, %cst_42 [1] : vector<64x128xf32> to vector<64xf32>
    %83 = vector.shape_cast %82 : vector<64xf32> to vector<64x1xf32>
    %cst_43 = arith.constant 1.280000e+02 : f32
    %84 = vector.broadcast %cst_43 : f32 to vector<64x1xf32>
    %85 = arith.divf %83, %84 : vector<64x1xf32>
    %86 = arith.mulf %80, %80 : vector<64x1xf32>
    %87 = arith.subf %85, %86 : vector<64x1xf32>
    %cst_44 = arith.constant 0.000000e+00 : f32
    %88 = vector.broadcast %cst_44 : f32 to vector<64x1xf32>
    %89 = arith.maximumf %87, %88 : vector<64x1xf32>
    %cst_45 = arith.constant 9.99999974E-6 : f32
    %90 = vector.broadcast %cst_45 : f32 to vector<64x1xf32>
    %91 = arith.addf %89, %90 : vector<64x1xf32>
    %92 = math.rsqrt %91 : vector<64x1xf32>
    %93 = vector.broadcast %92 : vector<64x1xf32> to vector<64x128xf32>
    %94 = vector.broadcast %74 : vector<1x128xf32> to vector<64x128xf32>
    %95 = arith.mulf %93, %94 : vector<64x128xf32>
    %96 = arith.mulf %72, %95 : vector<64x128xf32>
    %97 = vector.broadcast %80 : vector<64x1xf32> to vector<64x128xf32>
    %98 = arith.mulf %97, %95 : vector<64x128xf32>
    %99 = vector.broadcast %76 : vector<1x128xf32> to vector<64x128xf32>
    %100 = arith.subf %99, %98 : vector<64x128xf32>
    %101 = arith.addf %96, %100 : vector<64x128xf32>
    %cst_46 = arith.constant 0.000000e+00 : f32
    %102 = vector.broadcast %cst_46 : f32 to vector<64x128xf32>
    %103 = arith.maximumf %101, %102 : vector<64x128xf32>
    %104 = arith.truncf %103 : vector<64x128xf32> to vector<64x128xbf16>
    %c0_47 = arith.constant 0 : index
    %c0_48 = arith.constant 0 : index
    %c0_49 = arith.constant 0 : index
    %105 = vector.load %arg18[%c0_47, %c0_48, %c0_49] : memref<1x128x64xbf16, #tpu.memory_space<vmem>>, vector<1x128x64xbf16>
    %106 = vector.shape_cast %105 : vector<1x128x64xbf16> to vector<128x64xbf16>
    %cst_50 = arith.constant dense<0.000000e+00> : vector<64x64xf32>
    %107 = tpu.matmul %104, %106, %cst_50 {dimension_numbers = #tpu.dot_dimension_numbers<[1], [0], [0], [1], [0, 0, 1, 1], [], []>} : vector<64x128xbf16>, vector<128x64xbf16>, vector<64x64xf32> -> vector<64x64xf32>
    %c0_51 = arith.constant 0 : index
    %c0_52 = arith.constant 0 : index
    %c0_53 = arith.constant 0 : index
    %108 = vector.load %arg19[%c0_51, %c0_52, %c0_53] : memref<1x1x64xf32, #tpu.memory_space<vmem>>, vector<1x1x64xf32>
    %109 = vector.shape_cast %108 : vector<1x1x64xf32> to vector<1x64xf32>
    %110 = vector.broadcast %109 : vector<1x64xf32> to vector<64x64xf32>
    %111 = arith.addf %107, %110 : vector<64x64xf32>
    %112 = arith.addf %3, %111 : vector<64x64xf32>
    %113 = arith.select %4, %111, %112 : vector<64x64xf32>
    %c0_54 = arith.constant 0 : index
    %c0_55 = arith.constant 0 : index
    %114 = vector.load %arg23[%c0_54, %c0_55] : memref<64x64xf32, #tpu.memory_space<vmem>>, vector<64x64xf32>
    tpu.vector_store %arg23[%c0_54, %c0_55], %113 {strides = array<i32>} : memref<64x64xf32, #tpu.memory_space<vmem>>, vector<64x64xf32>,
    %c2_i32 = arith.constant 2 : i32
    %115 = arith.cmpi eq, %arg0, %c2_i32 : i32
    %116 = arith.extui %115 : i1 to i32
    %c0_i32_56 = arith.constant 0 : i32
    %117 = arith.cmpi ne, %116, %c0_i32_56 : i32
    scf.if %117 {
      %c0_57 = arith.constant 0 : index
      %c0_58 = arith.constant 0 : index
      %118 = vector.load %arg10[%c0_57, %c0_58] : memref<1x64xf32, #tpu.memory_space<vmem>>, vector<1x64xf32>
      %c0_59 = arith.constant 0 : index
      %c0_60 = arith.constant 0 : index
      %119 = vector.load %arg11[%c0_59, %c0_60] : memref<1x64xf32, #tpu.memory_space<vmem>>, vector<1x64xf32>
      %cst_61 = arith.constant dense<0.000000e+00> : vector<64xf32>
      %120 = vector.multi_reduction <add>, %113, %cst_61 [1] : vector<64x64xf32> to vector<64xf32>
      %121 = vector.shape_cast %120 : vector<64xf32> to vector<64x1xf32>
      %cst_62 = arith.constant 6.400000e+01 : f32
      %122 = vector.broadcast %cst_62 : f32 to vector<64x1xf32>
      %123 = arith.divf %121, %122 : vector<64x1xf32>
      %124 = arith.mulf %113, %113 : vector<64x64xf32>
      %cst_63 = arith.constant dense<0.000000e+00> : vector<64xf32>
      %125 = vector.multi_reduction <add>, %124, %cst_63 [1] : vector<64x64xf32> to vector<64xf32>
      %126 = vector.shape_cast %125 : vector<64xf32> to vector<64x1xf32>
      %cst_64 = arith.constant 6.400000e+01 : f32
      %127 = vector.broadcast %cst_64 : f32 to vector<64x1xf32>
      %128 = arith.divf %126, %127 : vector<64x1xf32>
      %129 = arith.mulf %123, %123 : vector<64x1xf32>
      %130 = arith.subf %128, %129 : vector<64x1xf32>
      %cst_65 = arith.constant 0.000000e+00 : f32
      %131 = vector.broadcast %cst_65 : f32 to vector<64x1xf32>
      %132 = arith.maximumf %130, %131 : vector<64x1xf32>
      %cst_66 = arith.constant 9.99999974E-6 : f32
      %133 = vector.broadcast %cst_66 : f32 to vector<64x1xf32>
      %134 = arith.addf %132, %133 : vector<64x1xf32>
      %135 = math.rsqrt %134 : vector<64x1xf32>
      %136 = vector.broadcast %135 : vector<64x1xf32> to vector<64x64xf32>
      %137 = vector.broadcast %118 : vector<1x64xf32> to vector<64x64xf32>
      %138 = arith.mulf %136, %137 : vector<64x64xf32>
      %139 = arith.mulf %113, %138 : vector<64x64xf32>
      %140 = vector.broadcast %123 : vector<64x1xf32> to vector<64x64xf32>
      %141 = arith.mulf %140, %138 : vector<64x64xf32>
      %142 = vector.broadcast %119 : vector<1x64xf32> to vector<64x64xf32>
      %143 = arith.subf %142, %141 : vector<64x64xf32>
      %144 = arith.addf %139, %143 : vector<64x64xf32>
      %cst_67 = arith.constant 0.000000e+00 : f32
      %145 = vector.broadcast %cst_67 : f32 to vector<64x64xf32>
      %146 = arith.maximumf %144, %145 : vector<64x64xf32>
      %147 = arith.truncf %146 : vector<64x64xf32> to vector<64x64xbf16>
      %c0_68 = arith.constant 0 : index
      %c0_69 = arith.constant 0 : index
      %148 = vector.load %arg20[%c0_68, %c0_69] : memref<64x128xbf16, #tpu.memory_space<vmem>>, vector<64x128xbf16>
      %cst_70 = arith.constant dense<0.000000e+00> : vector<64x128xf32>
      %149 = tpu.matmul %147, %148, %cst_70 {dimension_numbers = #tpu.dot_dimension_numbers<[1], [0], [0], [1], [0, 0, 1, 1], [], []>} : vector<64x64xbf16>, vector<64x128xbf16>, vector<64x128xf32> -> vector<64x128xf32>
      %c0_71 = arith.constant 0 : index
      %c0_72 = arith.constant 0 : index
      %150 = vector.load %arg21[%c0_71, %c0_72] : memref<1x128xf32, #tpu.memory_space<vmem>>, vector<1x128xf32>
      %151 = vector.broadcast %150 : vector<1x128xf32> to vector<64x128xf32>
      %152 = arith.addf %149, %151 : vector<64x128xf32>
      %c0_73 = arith.constant 0 : index
      %c0_74 = arith.constant 0 : index
      %153 = vector.load %arg22[%c0_73, %c0_74] : memref<64x128xf32, #tpu.memory_space<vmem>>, vector<64x128xf32>
      tpu.vector_store %arg22[%c0_73, %c0_74], %152 {strides = array<i32>} : memref<64x128xf32, #tpu.memory_space<vmem>>, vector<64x128xf32>,
    } else {
    }
    return
  }
  func.func @transform_0(%arg0: i32, %arg1: memref<3xf32, #tpu.memory_space<smem>>) -> (i32, i32) {
    %c0_i32 = arith.constant 0 : i32
    %c0_i32_0 = arith.constant 0 : i32
    %c0_i32_1 = arith.constant 0 : i32
    return %c0_i32, %c0_i32_0 : i32, i32
  }
  func.func @transform_1(%arg0: i32, %arg1: memref<3xf32, #tpu.memory_space<smem>>) -> (i32, i32) {
    %c0_i32 = arith.constant 0 : i32
    %c0_i32_0 = arith.constant 0 : i32
    %c0_i32_1 = arith.constant 0 : i32
    return %c0_i32, %c0_i32_0 : i32, i32
  }
  func.func @transform_2(%arg0: i32, %arg1: memref<3xf32, #tpu.memory_space<smem>>) -> (i32, i32) {
    %c0_i32 = arith.constant 0 : i32
    %c0_i32_0 = arith.constant 0 : i32
    %c0_i32_1 = arith.constant 0 : i32
    return %c0_i32, %c0_i32_0 : i32, i32
  }
  func.func @transform_3(%arg0: i32, %arg1: memref<3xf32, #tpu.memory_space<smem>>) -> (i32, i32) {
    %c0_i32 = arith.constant 0 : i32
    %c0_i32_0 = arith.constant 0 : i32
    %c0_i32_1 = arith.constant 0 : i32
    return %c0_i32, %c0_i32_0 : i32, i32
  }
  func.func @transform_4(%arg0: i32, %arg1: memref<3xf32, #tpu.memory_space<smem>>) -> (i32, i32) {
    %c0_i32 = arith.constant 0 : i32
    %c0_i32_0 = arith.constant 0 : i32
    %c0_i32_1 = arith.constant 0 : i32
    return %c0_i32, %c0_i32_0 : i32, i32
  }
  func.func @transform_5(%arg0: i32, %arg1: memref<3xf32, #tpu.memory_space<smem>>) -> (i32, i32) {
    %c0_i32 = arith.constant 0 : i32
    %c0_i32_0 = arith.constant 0 : i32
    %c0_i32_1 = arith.constant 0 : i32
    return %c0_i32, %c0_i32_0 : i32, i32
  }
  func.func @transform_6(%arg0: i32, %arg1: memref<3xf32, #tpu.memory_space<smem>>) -> (i32, i32) {
    %c0_i32 = arith.constant 0 : i32
    %c0_i32_0 = arith.constant 0 : i32
    %c0_i32_1 = arith.constant 0 : i32
    return %c0_i32, %c0_i32_0 : i32, i32
  }
  func.func @transform_7(%arg0: i32, %arg1: memref<3xf32, #tpu.memory_space<smem>>) -> (i32, i32) {
    %c0_i32 = arith.constant 0 : i32
    %c0_i32_0 = arith.constant 0 : i32
    %c0_i32_1 = arith.constant 0 : i32
    return %c0_i32, %c0_i32_0 : i32, i32
  }
  func.func @transform_8(%arg0: i32, %arg1: memref<3xf32, #tpu.memory_space<smem>>) -> (i32, i32) {
    %c0_i32 = arith.constant 0 : i32
    %c0_i32_0 = arith.constant 0 : i32
    %c0_i32_1 = arith.constant 0 : i32
    return %c0_i32, %c0_i32_0 : i32, i32
  }
  func.func @transform_9(%arg0: i32, %arg1: memref<3xf32, #tpu.memory_space<smem>>) -> (i32, i32) {
    %c0_i32 = arith.constant 0 : i32
    %c0_i32_0 = arith.constant 0 : i32
    %c0_i32_1 = arith.constant 0 : i32
    return %c0_i32, %c0_i32_0 : i32, i32
  }
  func.func @transform_10(%arg0: i32, %arg1: memref<3xf32, #tpu.memory_space<smem>>) -> (i32, i32, i32) {
    %c0_i32 = arith.constant 0 : i32
    %c0_i32_0 = arith.constant 0 : i32
    %c0_i32_1 = arith.constant 0 : i32
    return %arg0, %c0_i32, %c0_i32_0 : i32, i32, i32
  }
  func.func @transform_11(%arg0: i32, %arg1: memref<3xf32, #tpu.memory_space<smem>>) -> (i32, i32, i32) {
    %c0_i32 = arith.constant 0 : i32
    %c0_i32_0 = arith.constant 0 : i32
    %c0_i32_1 = arith.constant 0 : i32
    return %arg0, %c0_i32, %c0_i32_0 : i32, i32, i32
  }
  func.func @transform_12(%arg0: i32, %arg1: memref<3xf32, #tpu.memory_space<smem>>) -> (i32, i32, i32) {
    %c0_i32 = arith.constant 0 : i32
    %c0_i32_0 = arith.constant 0 : i32
    %c0_i32_1 = arith.constant 0 : i32
    return %arg0, %c0_i32, %c0_i32_0 : i32, i32, i32
  }
  func.func @transform_13(%arg0: i32, %arg1: memref<3xf32, #tpu.memory_space<smem>>) -> (i32, i32, i32) {
    %c0_i32 = arith.constant 0 : i32
    %c0_i32_0 = arith.constant 0 : i32
    %c0_i32_1 = arith.constant 0 : i32
    return %arg0, %c0_i32, %c0_i32_0 : i32, i32, i32
  }
  func.func @transform_14(%arg0: i32, %arg1: memref<3xf32, #tpu.memory_space<smem>>) -> (i32, i32, i32) {
    %c0_i32 = arith.constant 0 : i32
    %c0_i32_0 = arith.constant 0 : i32
    %c0_i32_1 = arith.constant 0 : i32
    return %arg0, %c0_i32, %c0_i32_0 : i32, i32, i32
  }
  func.func @transform_15(%arg0: i32, %arg1: memref<3xf32, #tpu.memory_space<smem>>) -> (i32, i32, i32) {
    %c0_i32 = arith.constant 0 : i32
    %c0_i32_0 = arith.constant 0 : i32
    %c0_i32_1 = arith.constant 0 : i32
    return %arg0, %c0_i32, %c0_i32_0 : i32, i32, i32
  }
  func.func @transform_16(%arg0: i32, %arg1: memref<3xf32, #tpu.memory_space<smem>>) -> (i32, i32, i32) {
    %c0_i32 = arith.constant 0 : i32
    %c0_i32_0 = arith.constant 0 : i32
    %c0_i32_1 = arith.constant 0 : i32
    return %arg0, %c0_i32, %c0_i32_0 : i32, i32, i32
  }
  func.func @transform_17(%arg0: i32, %arg1: memref<3xf32, #tpu.memory_space<smem>>) -> (i32, i32, i32) {
    %c0_i32 = arith.constant 0 : i32
    %c0_i32_0 = arith.constant 0 : i32
    %c0_i32_1 = arith.constant 0 : i32
    return %arg0, %c0_i32, %c0_i32_0 : i32, i32, i32
  }
  func.func @transform_18(%arg0: i32, %arg1: memref<3xf32, #tpu.memory_space<smem>>) -> (i32, i32) {
    %c0_i32 = arith.constant 0 : i32
    %c0_i32_0 = arith.constant 0 : i32
    %c0_i32_1 = arith.constant 0 : i32
    return %c0_i32, %c0_i32_0 : i32, i32
  }
  func.func @transform_19(%arg0: i32, %arg1: memref<3xf32, #tpu.memory_space<smem>>) -> (i32, i32) {
    %c0_i32 = arith.constant 0 : i32
    %c0_i32_0 = arith.constant 0 : i32
    %c0_i32_1 = arith.constant 0 : i32
    return %c0_i32, %c0_i32_0 : i32, i32
  }
  func.func @transform_20(%arg0: i32, %arg1: memref<3xf32, #tpu.memory_space<smem>>) -> (i32, i32) {
    %c0_i32 = arith.constant 0 : i32
    %c0_i32_0 = arith.constant 0 : i32
    %c0_i32_1 = arith.constant 0 : i32
    return %c0_i32, %c0_i32_0 : i32, i32
  }
}

</mosaic_0001>

<llo_original>
// kernel: tpu_custom_call.1
$region0: #{tpu_custom_call.1}
  #allocation0 [shape = 'u32[]', space=smem, size = 0x4, offset = 0x4, fixed_abs, tag = 'smem constant byte address 0x4 - core index']
  #allocation1 [shape = 'u32[144,128]{1,0:T(1,128)}', space=vmem, size = 0x12000, scoped, tag = 'internal scratch']
  #allocation2 [shape = 'f32[64,64]{1,0:T(8,128)}', space=vmem, size = 0x8000, scoped, tag = 'scratch operand']
  #allocation3 [shape = 'f32[256,64]{1,0:T(8,128)}', space=vmem, size = 0x20000, scoped, tag = 'scratch operand']
  #allocation4 [shape = 's32[1]{0}', space=sflag, size = 0x4, scoped, tag = 'scoped memory for tpu_custom_call.1']
  #allocation5 [shape = 'u8[512]{0}', space=smem, size = 0x200, scoped, tag = 'prefetched SMEM operand 0']
  %s0 = inlined_call_operand.vmem [shape: f32[3], index: 0, kind: input, shape index: {}]
  %s1 = inlined_call_operand.vmem [shape: f32[64,8], index: 1, kind: input, shape index: {}]
  %s2 = inlined_call_operand.vmem [shape: f32[256,8], index: 2, kind: input, shape index: {}]
  %s3 = inlined_call_operand.vmem [shape: bf16[256,64], index: 3, kind: input, shape index: {}]
  %s4 = inlined_call_operand.vmem [shape: bf16[64,256], index: 4, kind: input, shape index: {}]
  %s5 = inlined_call_operand.vmem [shape: bf16[8,64], index: 5, kind: input, shape index: {}]
  %s6 = inlined_call_operand.vmem [shape: f32[1,64], index: 6, kind: input, shape index: {}]
  %s7 = inlined_call_operand.vmem [shape: bf16[8,64], index: 7, kind: input, shape index: {}]
  %s8 = inlined_call_operand.vmem [shape: f32[1,64], index: 8, kind: input, shape index: {}]
  %s9 = inlined_call_operand.vmem [shape: f32[1,64], index: 9, kind: input, shape index: {}]
  %s10 = inlined_call_operand.vmem [shape: f32[1,64], index: 10, kind: input, shape index: {}]
  %s11 = inlined_call_operand.vmem [shape: f32[3,1,64], index: 11, kind: input, shape index: {}]
  %s12 = inlined_call_operand.vmem [shape: f32[3,1,64], index: 12, kind: input, shape index: {}]
  %s13 = inlined_call_operand.vmem [shape: bf16[3,64,128], index: 13, kind: input, shape index: {}]
  %s14 = inlined_call_operand.vmem [shape: f32[3,1,128], index: 14, kind: input, shape index: {}]
  %s15 = inlined_call_operand.vmem [shape: f32[3,1,128], index: 15, kind: input, shape index: {}]
  %s16 = inlined_call_operand.vmem [shape: f32[3,1,128], index: 16, kind: input, shape index: {}]
  %s17 = inlined_call_operand.vmem [shape: bf16[3,128,64], index: 17, kind: input, shape index: {}]
  %s18 = inlined_call_operand.vmem [shape: f32[3,1,64], index: 18, kind: input, shape index: {}]
  %s19 = inlined_call_operand.vmem [shape: bf16[64,128], index: 19, kind: input, shape index: {}]
  %s20 = inlined_call_operand.vmem [shape: f32[1,128], index: 20, kind: input, shape index: {}]
  %s21 = inlined_call_operand.hbm [shape: f32[64,128], index: 21, kind: output, shape index: {}]
  %s22 = sld [smem:[#allocation0]]
  $region121: #{tpu_custom_call.1} parent=0
    _
  %s24 = ssub.s32 1, %s22
  %s25 = scalar_select 0, %s24, %s22
  %s26 = sshll.u32 %s0, 4
  %s27 = int_to_ptr.vmem [resolvable:$true] %s26
  %29 = dma.vmem_to_smem %s27, 16, [#allocation5], [#allocation4]
  %30 = dma.done [#allocation4], 16
  %31 = sfence
  $region1: #{tpu_custom_call.1} parent=0
    #allocation6 [shape = 'u8[32768]{0}', space=vmem, size = 0x8000, scoped, tag = 'output window, operand 0, single buffered']
    #allocation7 [shape = 's32[2]{0}', space=sflag, size = 0x8, scoped, tag = 'scoped memory for tpu_custom_call.1']
    %32 = vsyncpa [#allocation7], 0
    loop: start=0, step=1, limit=5
    $region2: #{tpu_custom_call.1} parent=1 // loop_pre_header
      _
    $region3: #{tpu_custom_call.1} parent=1 // loop_header
      %s34 = sphi 0, %s38
      %p35 = scmp.ge.s32.totalorder %s34, 5
      %s42 = sphi 0, %s42
      %s44 = sphi 0, %s42
      %s45 = sphi 0, %s44
      %s59 = sphi 0, %s45
      %s63 = sphi 0, %s63
      %s65 = sphi 0, %s63
      %s66 = sphi 0, %s65
      %s80 = sphi 0, %s66
      %s84 = sphi 0, %s84
      %s86 = sphi 0, %s84
      %s87 = sphi 0, %s86
      %s101 = sphi 0, %s87
      %s105 = sphi 0, %s105
      %s107 = sphi 0, %s105
      %s108 = sphi 0, %s107
      %s122 = sphi 0, %s108
      %s126 = sphi 0, %s126
      %s128 = sphi 0, %s126
      %s129 = sphi 0, %s128
      %s143 = sphi 0, %s129
      %s147 = sphi 0, %s147
      %s149 = sphi 0, %s147
      %s150 = sphi 0, %s149
      %s164 = sphi 0, %s150
      %s168 = sphi 0, %s168
      %s170 = sphi 0, %s168
      %s171 = sphi 0, %s170
      %s185 = sphi 0, %s171
      %s189 = sphi 0, %s189
      %s191 = sphi 0, %s189
      %s192 = sphi 0, %s191
      %s206 = sphi 0, %s192
      %s210 = sphi 0, %s210
      %s212 = sphi 0, %s210
      %s213 = sphi 0, %s212
      %s227 = sphi 0, %s213
      %s231 = sphi 0, %s231
      %s233 = sphi 0, %s231
      %s234 = sphi 0, %s233
      %s248 = sphi 0, %s234
      %s254 = sphi 0, %s256
      %s257 = sphi 0, %s254
      %s258 = sphi 0, %s257
      %s274 = sphi 0, %s258
      %s280 = sphi 0, %s282
      %s283 = sphi 0, %s280
      %s284 = sphi 0, %s283
      %s300 = sphi 0, %s284
      %s306 = sphi 0, %s308
      %s309 = sphi 0, %s306
      %s310 = sphi 0, %s309
      %s326 = sphi 0, %s310
      %s332 = sphi 0, %s334
      %s335 = sphi 0, %s332
      %s336 = sphi 0, %s335
      %s352 = sphi 0, %s336
      %s358 = sphi 0, %s360
      %s361 = sphi 0, %s358
      %s362 = sphi 0, %s361
      %s378 = sphi 0, %s362
      %s384 = sphi 0, %s386
      %s387 = sphi 0, %s384
      %s388 = sphi 0, %s387
      %s404 = sphi 0, %s388
      %s410 = sphi 0, %s412
      %s413 = sphi 0, %s410
      %s414 = sphi 0, %s413
      %s430 = sphi 0, %s414
      %s436 = sphi 0, %s438
      %s439 = sphi 0, %s436
      %s440 = sphi 0, %s439
      %s456 = sphi 0, %s440
      %s460 = sphi 0, %s460
      %s462 = sphi 0, %s460
      %s463 = sphi 0, %s462
      %s477 = sphi 0, %s463
      %s481 = sphi 0, %s481
      %s483 = sphi 0, %s481
      %s484 = sphi 0, %s483
      %s498 = sphi 0, %s484
      %s502 = sphi 0, %s502
      %s504 = sphi 0, %s502
      %s505 = sphi 0, %s504
      %s519 = sphi 0, %s505
    $region4: #{tpu_custom_call.1} parent=1 // loop_header_branch
      %37 = sbr.rel (%p35) target = $region8
    $region5: #{tpu_custom_call.1} parent=1 // loop_body
      %s39 = ssub.s32 %s34, 1
      %s40 = ssub.s32 %s34, 2
      %s41 = sadd.s32 %s34, 1
      %s43 = sadd.s32 %s42, 1
      %p46 = scmp.eq.s32.totalorder %s34, 2
      %p47 = scmp.ne.s32.totalorder %s42, %s44
      %p48 = scmp.eq.s32.totalorder %s34, 0
      %p49 = por %p47, %p48
      %p50 = scmp.ne.s32.totalorder %s42, %s44
      %p51 = scmp.eq.s32.totalorder %s39, 2
      %p52 = por %p50, %p51
      %p53 = scmp.ne.s32.totalorder %s44, %s45
      %p54 = scmp.eq.s32.totalorder %s39, 0
      %p55 = por %p53, %p54
      %p56 = scmp.ne.s32.totalorder %s44, %s45
      %p57 = scmp.eq.s32.totalorder %s40, 2
      %p58 = por %p56, %p57
      %p60 = scmp.ne.s32.totalorder %s45, %s59
      %p61 = scmp.eq.s32.totalorder %s40, 0
      %p62 = por %p60, %p61
      %s64 = sadd.s32 %s63, 1
      %p67 = scmp.eq.s32.totalorder %s34, 2
      %p68 = scmp.ne.s32.totalorder %s63, %s65
      %p69 = scmp.eq.s32.totalorder %s34, 0
      %p70 = por %p68, %p69
      %p71 = scmp.ne.s32.totalorder %s63, %s65
      %p72 = scmp.eq.s32.totalorder %s39, 2
      %p73 = por %p71, %p72
      %p74 = scmp.ne.s32.totalorder %s65, %s66
      %p75 = scmp.eq.s32.totalorder %s39, 0
      %p76 = por %p74, %p75
      %p77 = scmp.ne.s32.totalorder %s65, %s66
      %p78 = scmp.eq.s32.totalorder %s40, 2
      %p79 = por %p77, %p78
      %p81 = scmp.ne.s32.totalorder %s66, %s80
      %p82 = scmp.eq.s32.totalorder %s40, 0
      %p83 = por %p81, %p82
      %s85 = sadd.s32 %s84, 1
      %p88 = scmp.eq.s32.totalorder %s34, 2
      %p89 = scmp.ne.s32.totalorder %s84, %s86
      %p90 = scmp.eq.s32.totalorder %s34, 0
      %p91 = por %p89, %p90
      %p92 = scmp.ne.s32.totalorder %s84, %s86
      %p93 = scmp.eq.s32.totalorder %s39, 2
      %p94 = por %p92, %p93
      %p95 = scmp.ne.s32.totalorder %s86, %s87
      %p96 = scmp.eq.s32.totalorder %s39, 0
      %p97 = por %p95, %p96
      %p98 = scmp.ne.s32.totalorder %s86, %s87
      %p99 = scmp.eq.s32.totalorder %s40, 2
      %p100 = por %p98, %p99
      %p102 = scmp.ne.s32.totalorder %s87, %s101
      %p103 = scmp.eq.s32.totalorder %s40, 0
      %p104 = por %p102, %p103
      %s106 = sadd.s32 %s105, 1
      %p109 = scmp.eq.s32.totalorder %s34, 2
      %p110 = scmp.ne.s32.totalorder %s105, %s107
      %p111 = scmp.eq.s32.totalorder %s34, 0
      %p112 = por %p110, %p111
      %p113 = scmp.ne.s32.totalorder %s105, %s107
      %p114 = scmp.eq.s32.totalorder %s39, 2
      %p115 = por %p113, %p114
      %p116 = scmp.ne.s32.totalorder %s107, %s108
      %p117 = scmp.eq.s32.totalorder %s39, 0
      %p118 = por %p116, %p117
      %p119 = scmp.ne.s32.totalorder %s107, %s108
      %p120 = scmp.eq.s32.totalorder %s40, 2
      %p121 = por %p119, %p120
      %p123 = scmp.ne.s32.totalorder %s108, %s122
      %p124 = scmp.eq.s32.totalorder %s40, 0
      %p125 = por %p123, %p124
      %s127 = sadd.s32 %s126, 1
      %p130 = scmp.eq.s32.totalorder %s34, 2
      %p131 = scmp.ne.s32.totalorder %s126, %s128
      %p132 = scmp.eq.s32.totalorder %s34, 0
      %p133 = por %p131, %p132
      %p134 = scmp.ne.s32.totalorder %s126, %s128
      %p135 = scmp.eq.s32.totalorder %s39, 2
      %p136 = por %p134, %p135
      %p137 = scmp.ne.s32.totalorder %s128, %s129
      %p138 = scmp.eq.s32.totalorder %s39, 0
      %p139 = por %p137, %p138
      %p140 = scmp.ne.s32.totalorder %s128, %s129
      %p141 = scmp.eq.s32.totalorder %s40, 2
      %p142 = por %p140, %p141
      %p144 = scmp.ne.s32.totalorder %s129, %s143
      %p145 = scmp.eq.s32.totalorder %s40, 0
      %p146 = por %p144, %p145
      %s148 = sadd.s32 %s147, 1
      %p151 = scmp.eq.s32.totalorder %s34, 2
      %p152 = scmp.ne.s32.totalorder %s147, %s149
      %p153 = scmp.eq.s32.totalorder %s34, 0
      %p154 = por %p152, %p153
      %p155 = scmp.ne.s32.totalorder %s147, %s149
      %p156 = scmp.eq.s32.totalorder %s39, 2
      %p157 = por %p155, %p156
      %p158 = scmp.ne.s32.totalorder %s149, %s150
      %p159 = scmp.eq.s32.totalorder %s39, 0
      %p160 = por %p158, %p159
      %p161 = scmp.ne.s32.totalorder %s149, %s150
      %p162 = scmp.eq.s32.totalorder %s40, 2
      %p163 = por %p161, %p162
      %p165 = scmp.ne.s32.totalorder %s150, %s164
      %p166 = scmp.eq.s32.totalorder %s40, 0
      %p167 = por %p165, %p166
      %s169 = sadd.s32 %s168, 1
      %p172 = scmp.eq.s32.totalorder %s34, 2
      %p173 = scmp.ne.s32.totalorder %s168, %s170
      %p174 = scmp.eq.s32.totalorder %s34, 0
      %p175 = por %p173, %p174
      %p176 = scmp.ne.s32.totalorder %s168, %s170
      %p177 = scmp.eq.s32.totalorder %s39, 2
      %p178 = por %p176, %p177
      %p179 = scmp.ne.s32.totalorder %s170, %s171
      %p180 = scmp.eq.s32.totalorder %s39, 0
      %p181 = por %p179, %p180
      %p182 = scmp.ne.s32.totalorder %s170, %s171
      %p183 = scmp.eq.s32.totalorder %s40, 2
      %p184 = por %p182, %p183
      %p186 = scmp.ne.s32.totalorder %s171, %s185
      %p187 = scmp.eq.s32.totalorder %s40, 0
      %p188 = por %p186, %p187
      %s190 = sadd.s32 %s189, 1
      %p193 = scmp.eq.s32.totalorder %s34, 2
      %p194 = scmp.ne.s32.totalorder %s189, %s191
      %p195 = scmp.eq.s32.totalorder %s34, 0
      %p196 = por %p194, %p195
      %p197 = scmp.ne.s32.totalorder %s189, %s191
      %p198 = scmp.eq.s32.totalorder %s39, 2
      %p199 = por %p197, %p198
      %p200 = scmp.ne.s32.totalorder %s191, %s192
      %p201 = scmp.eq.s32.totalorder %s39, 0
      %p202 = por %p200, %p201
      %p203 = scmp.ne.s32.totalorder %s191, %s192
      %p204 = scmp.eq.s32.totalorder %s40, 2
      %p205 = por %p203, %p204
      %p207 = scmp.ne.s32.totalorder %s192, %s206
      %p208 = scmp.eq.s32.totalorder %s40, 0
      %p209 = por %p207, %p208
      %s211 = sadd.s32 %s210, 1
      %p214 = scmp.eq.s32.totalorder %s34, 2
      %p215 = scmp.ne.s32.totalorder %s210, %s212
      %p216 = scmp.eq.s32.totalorder %s34, 0
      %p217 = por %p215, %p216
      %p218 = scmp.ne.s32.totalorder %s210, %s212
      %p219 = scmp.eq.s32.totalorder %s39, 2
      %p220 = por %p218, %p219
      %p221 = scmp.ne.s32.totalorder %s212, %s213
      %p222 = scmp.eq.s32.totalorder %s39, 0
      %p223 = por %p221, %p222
      %p224 = scmp.ne.s32.totalorder %s212, %s213
      %p225 = scmp.eq.s32.totalorder %s40, 2
      %p226 = por %p224, %p225
      %p228 = scmp.ne.s32.totalorder %s213, %s227
      %p229 = scmp.eq.s32.totalorder %s40, 0
      %p230 = por %p228, %p229
      %s232 = sadd.s32 %s231, 1
      %p235 = scmp.eq.s32.totalorder %s34, 2
      %p236 = scmp.ne.s32.totalorder %s231, %s233
      %p237 = scmp.eq.s32.totalorder %s34, 0
      %p238 = por %p236, %p237
      %p239 = scmp.ne.s32.totalorder %s231, %s233
      %p240 = scmp.eq.s32.totalorder %s39, 2
      %p241 = por %p239, %p240
      %p242 = scmp.ne.s32.totalorder %s233, %s234
      %p243 = scmp.eq.s32.totalorder %s39, 0
      %p244 = por %p242, %p243
      %p245 = scmp.ne.s32.totalorder %s233, %s234
      %p246 = scmp.eq.s32.totalorder %s40, 2
      %p247 = por %p245, %p246
      %p249 = scmp.ne.s32.totalorder %s234, %s248
      %p250 = scmp.eq.s32.totalorder %s40, 0
      %p251 = por %p249, %p250
      %s252 = ssub.s32 %s34, %s41
      %p253 = scmp.eq.s32.totalorder %s252, 0
      %s255 = sadd.s32 %s254, 1
      %s256 = scalar_select %p253, %s254, %s255
      %p259 = pneg %p253
      %p260 = scmp.eq.s32.totalorder %s34, 2
      %p261 = por %p259, %p260
      %p262 = scmp.ne.s32.totalorder %s254, %s257
      %p263 = scmp.eq.s32.totalorder %s34, 0
      %p264 = por %p262, %p263
      %p265 = scmp.ne.s32.totalorder %s254, %s257
      %p266 = scmp.eq.s32.totalorder %s39, 2
      %p267 = por %p265, %p266
      %p268 = scmp.ne.s32.totalorder %s257, %s258
      %p269 = scmp.eq.s32.totalorder %s39, 0
      %p270 = por %p268, %p269
      %p271 = scmp.ne.s32.totalorder %s257, %s258
      %p272 = scmp.eq.s32.totalorder %s40, 2
      %p273 = por %p271, %p272
      %p275 = scmp.ne.s32.totalorder %s258, %s274
      %p276 = scmp.eq.s32.totalorder %s40, 0
      %p277 = por %p275, %p276
      %s278 = ssub.s32 %s34, %s41
      %p279 = scmp.eq.s32.totalorder %s278, 0
      %s281 = sadd.s32 %s280, 1
      %s282 = scalar_select %p279, %s280, %s281
      %p285 = pneg %p279
      %p286 = scmp.eq.s32.totalorder %s34, 2
      %p287 = por %p285, %p286
      %p288 = scmp.ne.s32.totalorder %s280, %s283
      %p289 = scmp.eq.s32.totalorder %s34, 0
      %p290 = por %p288, %p289
      %p291 = scmp.ne.s32.totalorder %s280, %s283
      %p292 = scmp.eq.s32.totalorder %s39, 2
      %p293 = por %p291, %p292
      %p294 = scmp.ne.s32.totalorder %s283, %s284
      %p295 = scmp.eq.s32.totalorder %s39, 0
      %p296 = por %p294, %p295
      %p297 = scmp.ne.s32.totalorder %s283, %s284
      %p298 = scmp.eq.s32.totalorder %s40, 2
      %p299 = por %p297, %p298
      %p301 = scmp.ne.s32.totalorder %s284, %s300
      %p302 = scmp.eq.s32.totalorder %s40, 0
      %p303 = por %p301, %p302
      %s304 = ssub.s32 %s34, %s41
      %p305 = scmp.eq.s32.totalorder %s304, 0
      %s307 = sadd.s32 %s306, 1
      %s308 = scalar_select %p305, %s306, %s307
      %p311 = pneg %p305
      %p312 = scmp.eq.s32.totalorder %s34, 2
      %p313 = por %p311, %p312
      %p314 = scmp.ne.s32.totalorder %s306, %s309
      %p315 = scmp.eq.s32.totalorder %s34, 0
      %p316 = por %p314, %p315
      %p317 = scmp.ne.s32.totalorder %s306, %s309
      %p318 = scmp.eq.s32.totalorder %s39, 2
      %p319 = por %p317, %p318
      %p320 = scmp.ne.s32.totalorder %s309, %s310
      %p321 = scmp.eq.s32.totalorder %s39, 0
      %p322 = por %p320, %p321
      %p323 = scmp.ne.s32.totalorder %s309, %s310
      %p324 = scmp.eq.s32.totalorder %s40, 2
      %p325 = por %p323, %p324
      %p327 = scmp.ne.s32.totalorder %s310, %s326
      %p328 = scmp.eq.s32.totalorder %s40, 0
      %p329 = por %p327, %p328
      %s330 = ssub.s32 %s34, %s41
      %p331 = scmp.eq.s32.totalorder %s330, 0
      %s333 = sadd.s32 %s332, 1
      %s334 = scalar_select %p331, %s332, %s333
      %p337 = pneg %p331
      %p338 = scmp.eq.s32.totalorder %s34, 2
      %p339 = por %p337, %p338
      %p340 = scmp.ne.s32.totalorder %s332, %s335
      %p341 = scmp.eq.s32.totalorder %s34, 0
      %p342 = por %p340, %p341
      %p343 = scmp.ne.s32.totalorder %s332, %s335
      %p344 = scmp.eq.s32.totalorder %s39, 2
      %p345 = por %p343, %p344
      %p346 = scmp.ne.s32.totalorder %s335, %s336
      %p347 = scmp.eq.s32.totalorder %s39, 0
      %p348 = por %p346, %p347
      %p349 = scmp.ne.s32.totalorder %s335, %s336
      %p350 = scmp.eq.s32.totalorder %s40, 2
      %p351 = por %p349, %p350
      %p353 = scmp.ne.s32.totalorder %s336, %s352
      %p354 = scmp.eq.s32.totalorder %s40, 0
      %p355 = por %p353, %p354
      %s356 = ssub.s32 %s34, %s41
      %p357 = scmp.eq.s32.totalorder %s356, 0
      %s359 = sadd.s32 %s358, 1
      %s360 = scalar_select %p357, %s358, %s359
      %p363 = pneg %p357
      %p364 = scmp.eq.s32.totalorder %s34, 2
      %p365 = por %p363, %p364
      %p366 = scmp.ne.s32.totalorder %s358, %s361
      %p367 = scmp.eq.s32.totalorder %s34, 0
      %p368 = por %p366, %p367
      %p369 = scmp.ne.s32.totalorder %s358, %s361
      %p370 = scmp.eq.s32.totalorder %s39, 2
      %p371 = por %p369, %p370
      %p372 = scmp.ne.s32.totalorder %s361, %s362
      %p373 = scmp.eq.s32.totalorder %s39, 0
      %p374 = por %p372, %p373
      %p375 = scmp.ne.s32.totalorder %s361, %s362
      %p376 = scmp.eq.s32.totalorder %s40, 2
      %p377 = por %p375, %p376
      %p379 = scmp.ne.s32.totalorder %s362, %s378
      %p380 = scmp.eq.s32.totalorder %s40, 0
      %p381 = por %p379, %p380
      %s382 = ssub.s32 %s34, %s41
      %p383 = scmp.eq.s32.totalorder %s382, 0
      %s385 = sadd.s32 %s384, 1
      %s386 = scalar_select %p383, %s384, %s385
      %p389 = pneg %p383
      %p390 = scmp.eq.s32.totalorder %s34, 2
      %p391 = por %p389, %p390
      %p392 = scmp.ne.s32.totalorder %s384, %s387
      %p393 = scmp.eq.s32.totalorder %s34, 0
      %p394 = por %p392, %p393
      %p395 = scmp.ne.s32.totalorder %s384, %s387
      %p396 = scmp.eq.s32.totalorder %s39, 2
      %p397 = por %p395, %p396
      %p398 = scmp.ne.s32.totalorder %s387, %s388
      %p399 = scmp.eq.s32.totalorder %s39, 0
      %p400 = por %p398, %p399
      %p401 = scmp.ne.s32.totalorder %s387, %s388
      %p402 = scmp.eq.s32.totalorder %s40, 2
      %p403 = por %p401, %p402
      %p405 = scmp.ne.s32.totalorder %s388, %s404
      %p406 = scmp.eq.s32.totalorder %s40, 0
      %p407 = por %p405, %p406
      %s408 = ssub.s32 %s34, %s41
      %p409 = scmp.eq.s32.totalorder %s408, 0
      %s411 = sadd.s32 %s410, 1
      %s412 = scalar_select %p409, %s410, %s411
      %p415 = pneg %p409
      %p416 = scmp.eq.s32.totalorder %s34, 2
      %p417 = por %p415, %p416
      %p418 = scmp.ne.s32.totalorder %s410, %s413
      %p419 = scmp.eq.s32.totalorder %s34, 0
      %p420 = por %p418, %p419
      %p421 = scmp.ne.s32.totalorder %s410, %s413
      %p422 = scmp.eq.s32.totalorder %s39, 2
      %p423 = por %p421, %p422
      %p424 = scmp.ne.s32.totalorder %s413, %s414
      %p425 = scmp.eq.s32.totalorder %s39, 0
      %p426 = por %p424, %p425
      %p427 = scmp.ne.s32.totalorder %s413, %s414
      %p428 = scmp.eq.s32.totalorder %s40, 2
      %p429 = por %p427, %p428
      %p431 = scmp.ne.s32.totalorder %s414, %s430
      %p432 = scmp.eq.s32.totalorder %s40, 0
      %p433 = por %p431, %p432
      %s434 = ssub.s32 %s34, %s41
      %p435 = scmp.eq.s32.totalorder %s434, 0
      %s437 = sadd.s32 %s436, 1
      %s438 = scalar_select %p435, %s436, %s437
      %p441 = pneg %p435
      %p442 = scmp.eq.s32.totalorder %s34, 2
      %p443 = por %p441, %p442
      %p444 = scmp.ne.s32.totalorder %s436, %s439
      %p445 = scmp.eq.s32.totalorder %s34, 0
      %p446 = por %p444, %p445
      %p447 = scmp.ne.s32.totalorder %s436, %s439
      %p448 = scmp.eq.s32.totalorder %s39, 2
      %p449 = por %p447, %p448
      %p450 = scmp.ne.s32.totalorder %s439, %s440
      %p451 = scmp.eq.s32.totalorder %s39, 0
      %p452 = por %p450, %p451
      %p453 = scmp.ne.s32.totalorder %s439, %s440
      %p454 = scmp.eq.s32.totalorder %s40, 2
      %p455 = por %p453, %p454
      %p457 = scmp.ne.s32.totalorder %s440, %s456
      %p458 = scmp.eq.s32.totalorder %s40, 0
      %p459 = por %p457, %p458
      %s461 = sadd.s32 %s460, 1
      %p464 = scmp.eq.s32.totalorder %s34, 2
      %p465 = scmp.ne.s32.totalorder %s460, %s462
      %p466 = scmp.eq.s32.totalorder %s34, 0
      %p467 = por %p465, %p466
      %p468 = scmp.ne.s32.totalorder %s460, %s462
      %p469 = scmp.eq.s32.totalorder %s39, 2
      %p470 = por %p468, %p469
      %p471 = scmp.ne.s32.totalorder %s462, %s463
      %p472 = scmp.eq.s32.totalorder %s39, 0
      %p473 = por %p471, %p472
      %p474 = scmp.ne.s32.totalorder %s462, %s463
      %p475 = scmp.eq.s32.totalorder %s40, 2
      %p476 = por %p474, %p475
      %p478 = scmp.ne.s32.totalorder %s463, %s477
      %p479 = scmp.eq.s32.totalorder %s40, 0
      %p480 = por %p478, %p479
      %s482 = sadd.s32 %s481, 1
      %p485 = scmp.eq.s32.totalorder %s34, 2
      %p486 = scmp.ne.s32.totalorder %s481, %s483
      %p487 = scmp.eq.s32.totalorder %s34, 0
      %p488 = por %p486, %p487
      %p489 = scmp.ne.s32.totalorder %s481, %s483
      %p490 = scmp.eq.s32.totalorder %s39, 2
      %p491 = por %p489, %p490
      %p492 = scmp.ne.s32.totalorder %s483, %s484
      %p493 = scmp.eq.s32.totalorder %s39, 0
      %p494 = por %p492, %p493
      %p495 = scmp.ne.s32.totalorder %s483, %s484
      %p496 = scmp.eq.s32.totalorder %s40, 2
      %p497 = por %p495, %p496
      %p499 = scmp.ne.s32.totalorder %s484, %s498
      %p500 = scmp.eq.s32.totalorder %s40, 0
      %p501 = por %p499, %p500
      %s503 = sadd.s32 %s502, 1
      %p506 = scmp.eq.s32.totalorder %s34, 2
      %p507 = scmp.ne.s32.totalorder %s502, %s504
      %p508 = scmp.eq.s32.totalorder %s34, 0
      %p509 = por %p507, %p508
      %p510 = scmp.ne.s32.totalorder %s502, %s504
      %p511 = scmp.eq.s32.totalorder %s39, 2
      %p512 = por %p510, %p511
      %p513 = scmp.ne.s32.totalorder %s504, %s505
      %p514 = scmp.eq.s32.totalorder %s39, 0
      %p515 = por %p513, %p514
      %p516 = scmp.ne.s32.totalorder %s504, %s505
      %p517 = scmp.eq.s32.totalorder %s40, 2
      %p518 = por %p516, %p517
      %p520 = scmp.ne.s32.totalorder %s505, %s519
      %p521 = scmp.eq.s32.totalorder %s40, 0
      %p522 = por %p520, %p521
      %p523 = scmp.le.s32.totalorder 1, %s34
      %p524 = scmp.lt.s32.totalorder %s34, 4
      %p525 = pnand %p523, %p524
      %p526 = pneg %p525
      // Predicated region
      $region9: #{tpu_custom_call.1} parent=5 // pred_check
        _
      $region10: #{tpu_custom_call.1} parent=5 // pred_check_branch
        %528 = sbr.rel (%p525) target = $region12
      $region11: #{tpu_custom_call.1} parent=5 // pred_region
        %s529 = ssub.s32 %s34, 1
        // Predicated region
        $region13: #{tpu_custom_call.1} parent=11 // pred_check
          %p530 = pneg %p55
        $region14: #{tpu_custom_call.1} parent=11 // pred_check_branch
          %532 = sbr.rel (%p530) target = $region16
        $region15: #{tpu_custom_call.1} parent=11 // pred_region
          _
        $region16: #{tpu_custom_call.1} parent=11 // pred_fallthru
          _
        // Predicated region
        $region17: #{tpu_custom_call.1} parent=11 // pred_check
          %p533 = pneg %p76
        $region18: #{tpu_custom_call.1} parent=11 // pred_check_branch
          %535 = sbr.rel (%p533) target = $region20
        $region19: #{tpu_custom_call.1} parent=11 // pred_region
          _
        $region20: #{tpu_custom_call.1} parent=11 // pred_fallthru
          _
        // Predicated region
        $region21: #{tpu_custom_call.1} parent=11 // pred_check
          %p536 = pneg %p97
        $region22: #{tpu_custom_call.1} parent=11 // pred_check_branch
          %538 = sbr.rel (%p536) target = $region24
        $region23: #{tpu_custom_call.1} parent=11 // pred_region
          _
        $region24: #{tpu_custom_call.1} parent=11 // pred_fallthru
          _
        // Predicated region
        $region25: #{tpu_custom_call.1} parent=11 // pred_check
          %p539 = pneg %p118
        $region26: #{tpu_custom_call.1} parent=11 // pred_check_branch
          %541 = sbr.rel (%p539) target = $region28
        $region27: #{tpu_custom_call.1} parent=11 // pred_region
          _
        $region28: #{tpu_custom_call.1} parent=11 // pred_fallthru
          _
        // Predicated region
        $region29: #{tpu_custom_call.1} parent=11 // pred_check
          %p542 = pneg %p139
        $region30: #{tpu_custom_call.1} parent=11 // pred_check_branch
          %544 = sbr.rel (%p542) target = $region32
        $region31: #{tpu_custom_call.1} parent=11 // pred_region
          _
        $region32: #{tpu_custom_call.1} parent=11 // pred_fallthru
          _
        // Predicated region
        $region33: #{tpu_custom_call.1} parent=11 // pred_check
          %p545 = pneg %p160
        $region34: #{tpu_custom_call.1} parent=11 // pred_check_branch
          %547 = sbr.rel (%p545) target = $region36
        $region35: #{tpu_custom_call.1} parent=11 // pred_region
          _
        $region36: #{tpu_custom_call.1} parent=11 // pred_fallthru
          _
        // Predicated region
        $region37: #{tpu_custom_call.1} parent=11 // pred_check
          %p548 = pneg %p181
        $region38: #{tpu_custom_call.1} parent=11 // pred_check_branch
          %550 = sbr.rel (%p548) target = $region40
        $region39: #{tpu_custom_call.1} parent=11 // pred_region
          _
        $region40: #{tpu_custom_call.1} parent=11 // pred_fallthru
          _
        // Predicated region
        $region41: #{tpu_custom_call.1} parent=11 // pred_check
          %p551 = pneg %p202
        $region42: #{tpu_custom_call.1} parent=11 // pred_check_branch
          %553 = sbr.rel (%p551) target = $region44
        $region43: #{tpu_custom_call.1} parent=11 // pred_region
          _
        $region44: #{tpu_custom_call.1} parent=11 // pred_fallthru
          _
        // Predicated region
        $region45: #{tpu_custom_call.1} parent=11 // pred_check
          %p554 = pneg %p223
        $region46: #{tpu_custom_call.1} parent=11 // pred_check_branch
          %556 = sbr.rel (%p554) target = $region48
        $region47: #{tpu_custom_call.1} parent=11 // pred_region
          _
        $region48: #{tpu_custom_call.1} parent=11 // pred_fallthru
          _
        // Predicated region
        $region49: #{tpu_custom_call.1} parent=11 // pred_check
          %p557 = pneg %p244
        $region50: #{tpu_custom_call.1} parent=11 // pred_check_branch
          %559 = sbr.rel (%p557) target = $region52
        $region51: #{tpu_custom_call.1} parent=11 // pred_region
          _
        $region52: #{tpu_custom_call.1} parent=11 // pred_fallthru
          _
        // Predicated region
        $region53: #{tpu_custom_call.1} parent=11 // pred_check
          %p560 = pneg %p473
        $region54: #{tpu_custom_call.1} parent=11 // pred_check_branch
          %562 = sbr.rel (%p560) target = $region56
        $region55: #{tpu_custom_call.1} parent=11 // pred_region
          _
        $region56: #{tpu_custom_call.1} parent=11 // pred_fallthru
          _
        // Predicated region
        $region57: #{tpu_custom_call.1} parent=11 // pred_check
          %p563 = pneg %p494
        $region58: #{tpu_custom_call.1} parent=11 // pred_check_branch
          %565 = sbr.rel (%p563) target = $region60
        $region59: #{tpu_custom_call.1} parent=11 // pred_region
          _
        $region60: #{tpu_custom_call.1} parent=11 // pred_fallthru
          _
      $region12: #{tpu_custom_call.1} parent=5 // pred_fallthru
        _
      %p566 = scmp.lt.s32.totalorder %s34, 3
      // Predicated region
      $region61: #{tpu_custom_call.1} parent=5 // pred_check
        %p567 = pneg %p566
      $region62: #{tpu_custom_call.1} parent=5 // pred_check_branch
        %569 = sbr.rel (%p567) target = $region64
      $region63: #{tpu_custom_call.1} parent=5 // pred_region
        // Predicated region
        $region65: #{tpu_custom_call.1} parent=63 // pred_check
          %p570 = pneg %p264
        $region66: #{tpu_custom_call.1} parent=63 // pred_check_branch
          %572 = sbr.rel (%p570) target = $region68
        $region67: #{tpu_custom_call.1} parent=63 // pred_region
          %p573 = scmp.lt.s32.totalorder %s34, 2
          %s574 = scalar_select %p573, %s34, 2
          %s575 = scalar_lea.vmem %s11, %s574
        $region68: #{tpu_custom_call.1} parent=63 // pred_fallthru
          _
        // Predicated region
        $region69: #{tpu_custom_call.1} parent=63 // pred_check
          %p576 = pneg %p290
        $region70: #{tpu_custom_call.1} parent=63 // pred_check_branch
          %578 = sbr.rel (%p576) target = $region72
        $region71: #{tpu_custom_call.1} parent=63 // pred_region
          %p579 = scmp.lt.s32.totalorder %s34, 2
          %s580 = scalar_select %p579, %s34, 2
          %s581 = scalar_lea.vmem %s12, %s580
        $region72: #{tpu_custom_call.1} parent=63 // pred_fallthru
          _
        // Predicated region
        $region73: #{tpu_custom_call.1} parent=63 // pred_check
          %p582 = pneg %p316
        $region74: #{tpu_custom_call.1} parent=63 // pred_check_branch
          %584 = sbr.rel (%p582) target = $region76
        $region75: #{tpu_custom_call.1} parent=63 // pred_region
          %p585 = scmp.lt.s32.totalorder %s34, 2
          %s586 = scalar_select %p585, %s34, 2
          %s587 = smul.addr %s586, 8
          %s588 = smul.addr %s587, 4
          %s589 = scalar_lea.vmem %s13, %s588
        $region76: #{tpu_custom_call.1} parent=63 // pred_fallthru
          _
        // Predicated region
        $region77: #{tpu_custom_call.1} parent=63 // pred_check
          %p590 = pneg %p342
        $region78: #{tpu_custom_call.1} parent=63 // pred_check_branch
          %592 = sbr.rel (%p590) target = $region80
        $region79: #{tpu_custom_call.1} parent=63 // pred_region
          %p593 = scmp.lt.s32.totalorder %s34, 2
          %s594 = scalar_select %p593, %s34, 2
          %s595 = scalar_lea.vmem %s14, %s594
        $region80: #{tpu_custom_call.1} parent=63 // pred_fallthru
          _
        // Predicated region
        $region81: #{tpu_custom_call.1} parent=63 // pred_check
          %p596 = pneg %p368
        $region82: #{tpu_custom_call.1} parent=63 // pred_check_branch
          %598 = sbr.rel (%p596) target = $region84
        $region83: #{tpu_custom_call.1} parent=63 // pred_region
          %p599 = scmp.lt.s32.totalorder %s34, 2
          %s600 = scalar_select %p599, %s34, 2
          %s601 = scalar_lea.vmem %s15, %s600
        $region84: #{tpu_custom_call.1} parent=63 // pred_fallthru
          _
        // Predicated region
        $region85: #{tpu_custom_call.1} parent=63 // pred_check
          %p602 = pneg %p394
        $region86: #{tpu_custom_call.1} parent=63 // pred_check_branch
          %604 = sbr.rel (%p602) target = $region88
        $region87: #{tpu_custom_call.1} parent=63 // pred_region
          %p605 = scmp.lt.s32.totalorder %s34, 2
          %s606 = scalar_select %p605, %s34, 2
          %s607 = scalar_lea.vmem %s16, %s606
        $region88: #{tpu_custom_call.1} parent=63 // pred_fallthru
          _
        // Predicated region
        $region89: #{tpu_custom_call.1} parent=63 // pred_check
          %p608 = pneg %p420
        $region90: #{tpu_custom_call.1} parent=63 // pred_check_branch
          %610 = sbr.rel (%p608) target = $region92
        $region91: #{tpu_custom_call.1} parent=63 // pred_region
          %p611 = scmp.lt.s32.totalorder %s34, 2
          %s612 = scalar_select %p611, %s34, 2
          %s613 = smul.addr %s612, 16
          %s614 = smul.addr %s613, 4
          %s615 = scalar_lea.vmem %s17, %s614
        $region92: #{tpu_custom_call.1} parent=63 // pred_fallthru
          _
        // Predicated region
        $region93: #{tpu_custom_call.1} parent=63 // pred_check
          %p616 = pneg %p446
        $region94: #{tpu_custom_call.1} parent=63 // pred_check_branch
          %618 = sbr.rel (%p616) target = $region96
        $region95: #{tpu_custom_call.1} parent=63 // pred_region
          %p619 = scmp.lt.s32.totalorder %s34, 2
          %s620 = scalar_select %p619, %s34, 2
          %s621 = scalar_lea.vmem %s18, %s620
        $region96: #{tpu_custom_call.1} parent=63 // pred_fallthru
          _
      $region64: #{tpu_custom_call.1} parent=5 // pred_fallthru
        _
      %p622 = scmp.le.s32.totalorder 1, %s34
      %p623 = scmp.lt.s32.totalorder %s34, 4
      %p624 = pnand %p622, %p623
      %p625 = pneg %p624
      // Predicated region
      $region97: #{tpu_custom_call.1} parent=5 // pred_check
        _
      $region98: #{tpu_custom_call.1} parent=5 // pred_check_branch
        %627 = sbr.rel (%p624) target = $region100
      $region99: #{tpu_custom_call.1} parent=5 // pred_region
        %s628 = ssub.s32 %s34, 1
        %p629 = pneg %p55
        %p630 = pneg %p52
        %p631 = pneg %p76
        %p632 = pneg %p73
        %p633 = pneg %p97
        %p634 = pneg %p94
        %p635 = pneg %p118
        %p636 = pneg %p115
        %p637 = pneg %p139
        %p638 = pneg %p136
        %p639 = pneg %p160
        %p640 = pneg %p157
        %p641 = pneg %p181
        %p642 = pneg %p178
        %p643 = pneg %p202
        %p644 = pneg %p199
        %p645 = pneg %p223
        %p646 = pneg %p220
        %p647 = pneg %p244
        %p648 = pneg %p241
        %p649 = scmp.lt.s32.totalorder %s39, 2
        %s650 = scalar_select %p649, %s39, 2
        %s651 = scalar_lea.vmem %s11, %s650
        %p652 = pneg %p270
        %p653 = pneg %p267
        %p654 = scmp.lt.s32.totalorder %s39, 2
        %s655 = scalar_select %p654, %s39, 2
        %s656 = scalar_lea.vmem %s12, %s655
        %p657 = pneg %p296
        %p658 = pneg %p293
        %p659 = scmp.lt.s32.totalorder %s39, 2
        %s660 = scalar_select %p659, %s39, 2
        %s661 = smul.addr %s660, 8
        %s662 = smul.addr %s661, 4
        %s663 = scalar_lea.vmem %s13, %s662
        %p664 = pneg %p322
        %p665 = pneg %p319
        %p666 = scmp.lt.s32.totalorder %s39, 2
        %s667 = scalar_select %p666, %s39, 2
        %s668 = scalar_lea.vmem %s14, %s667
        %p669 = pneg %p348
        %p670 = pneg %p345
        %p671 = scmp.lt.s32.totalorder %s39, 2
        %s672 = scalar_select %p671, %s39, 2
        %s673 = scalar_lea.vmem %s15, %s672
        %p674 = pneg %p374
        %p675 = pneg %p371
        %p676 = scmp.lt.s32.totalorder %s39, 2
        %s677 = scalar_select %p676, %s39, 2
        %s678 = scalar_lea.vmem %s16, %s677
        %p679 = pneg %p400
        %p680 = pneg %p397
        %p681 = scmp.lt.s32.totalorder %s39, 2
        %s682 = scalar_select %p681, %s39, 2
        %s683 = smul.addr %s682, 16
        %s684 = smul.addr %s683, 4
        %s685 = scalar_lea.vmem %s17, %s684
        %p686 = pneg %p426
        %p687 = pneg %p423
        %p688 = scmp.lt.s32.totalorder %s39, 2
        %s689 = scalar_select %p688, %s39, 2
        %s690 = scalar_lea.vmem %s18, %s689
        %p691 = pneg %p452
        %p692 = pneg %p449
        %p693 = pneg %p473
        %p694 = pneg %p470
        %p695 = pneg %p494
        %p696 = pneg %p491
        %p697 = pneg %p515
        %p698 = pneg %p512
        %p699 = scmp.lt.s32.totalorder %s39, 2
        %s700 = scalar_select %p699, %s39, 2
        %s701 = scalar_lea.vmem %s11, %s700
        %p702 = scmp.lt.s32.totalorder %s39, 2
        %s703 = scalar_select %p702, %s39, 2
        %s704 = scalar_lea.vmem %s12, %s703
        %p705 = scmp.lt.s32.totalorder %s39, 2
        %s706 = scalar_select %p705, %s39, 2
        %s707 = smul.addr %s706, 8
        %s708 = smul.addr %s707, 4
        %s709 = scalar_lea.vmem %s13, %s708
        %p710 = scmp.lt.s32.totalorder %s39, 2
        %s711 = scalar_select %p710, %s39, 2
        %s712 = scalar_lea.vmem %s14, %s711
        %p713 = scmp.lt.s32.totalorder %s39, 2
        %s714 = scalar_select %p713, %s39, 2
        %s715 = scalar_lea.vmem %s15, %s714
        %p716 = scmp.lt.s32.totalorder %s39, 2
        %s717 = scalar_select %p716, %s39, 2
        %s718 = scalar_lea.vmem %s16, %s717
        %p719 = scmp.lt.s32.totalorder %s39, 2
        %s720 = scalar_select %p719, %s39, 2
        %s721 = smul.addr %s720, 16
        %s722 = smul.addr %s721, 4
        %s723 = scalar_lea.vmem %s17, %s722
        %p724 = scmp.lt.s32.totalorder %s39, 2
        %s725 = scalar_select %p724, %s39, 2
        %s726 = scalar_lea.vmem %s18, %s725
        %p728 = scmp.eq.s32.totalorder %s39, 0
        // Predicated region
        $region101: #{tpu_custom_call.1} parent=99 // pred_check
          %p729 = pneg %p728
        $region102: #{tpu_custom_call.1} parent=99 // pred_check_branch
          %731 = sbr.rel (%p729) target = $region104
        $region103: #{tpu_custom_call.1} parent=99 // pred_region
          %v732 = vld [vmem:[%s1] sm:$0xff]
          %v733 = vld [vmem:[%s1 + $0x8] sm:$0xff]
          %v734 = vld [vmem:[%s1 + $0x10] sm:$0xff]
          %v735 = vld [vmem:[%s1 + $0x18] sm:$0xff]
          %v736 = vld [vmem:[%s1 + $0x20] sm:$0xff]
          %v737 = vld [vmem:[%s1 + $0x28] sm:$0xff]
          %v738 = vld [vmem:[%s1 + $0x30] sm:$0xff]
          %v739 = vld [vmem:[%s1 + $0x38] sm:$0xff]
          %v740 = vpack.c.bf16 %v733, %v732
          %v741 = vpack.c.bf16 %v735, %v734
          %v742 = vpack.c.bf16 %v737, %v736
          %v743 = vpack.c.bf16 %v739, %v738
          %v744 = vld [vmem:[%s5] sm:$0xf]
          %v745 = vld [vmem:[%s6] sm:$0x1]
          %v747 = vlaneseq
          %v748 = vshrl.u32 %v747, 7
          %v749 = vsub.s32 0, %v748
          %v750 = vrot.slane %v745, %v749
          %vm752 = vcmask 64512
          %v754 = vsel %vm752, %v740, 0
          %v757 = vsel %vm752, %v741, 0
          %v760 = vsel %vm752, %v742, 0
          %v763 = vsel %vm752, %v743, 0
          %vm765 = vcmask 1043456
          %v767 = vsel %vm765, %v744, 0
          %769 = vmatprep.subr.bf16.mxu0 0
          %770 = vmatpush1.bf16.msra.mxu0 0
          %771 = vmatprep.subr.bf16.mxu0 0
          %772 = vmatpush1.bf16.msra.mxu0 0
          %773 = vmatprep.subr.bf16.mxu0 0
          %774 = vmatpush1.bf16.msra.mxu0 0
          %775 = vmatprep.subr.bf16.mxu0 0
          %776 = vmatpush1.bf16.msra.mxu0 0
          %777 = vmatprep.subr.bf16.mxu0 0
          %778 = vmatpush1.bf16.msra.mxu0 0
          %779 = vmatprep.subr.bf16.mxu0 0
          %780 = vmatpush1.bf16.msra.mxu0 0
          %781 = vmatprep.subr.bf16.mxu0 0
          %782 = vmatpush1.bf16.msra.mxu0 0
          %783 = vmatprep.subr.bf16.mxu0 0
          %784 = vmatpush1.bf16.msra.mxu0 %v767
          %785 = vmatprep.subr.bf16.mxu0 0
          %786 = vmatpush2.bf16.msra.mxu0 0
          %787 = vmatprep.subr.bf16.mxu0 0
          %788 = vmatpush2.bf16.msra.mxu0 0
          %789 = vmatprep.subr.bf16.mxu0 0
          %790 = vmatpush2.bf16.msra.mxu0 0
          %791 = vmatprep.subr.bf16.mxu0 0
          %792 = vmatpush2.bf16.msra.mxu0 0
          %793 = vmatprep.subr.bf16.mxu0 0
          %794 = vmatpush2.bf16.msra.mxu0 0
          %795 = vmatprep.subr.bf16.mxu0 0
          %796 = vmatpush2.bf16.msra.mxu0 0
          %797 = vmatprep.subr.bf16.mxu0 0
          %798 = vmatpush2.bf16.msra.mxu0 0
          %799 = vmatprep.subr.bf16.mxu0 0
          %800 = vmatpush2.bf16.msra.mxu0 0
          %801 = vmatprep.mubr.bf16.mxu0 0
          %802 = vmatmul.mubr.bf16.gmra.mxu0 %v754
          %v803 = vpop.f32.mrf.mxu0
          %v804 = vadd.f32 %v750, %v803
          %v805 = vpop.f32.mrf.mxu0
          %v806 = vpop.f32.mrf.mxu0
          %v807 = vadd.f32 %v750, %v806
          %v808 = vpop.f32.mrf.mxu0
          %809 = vmatprep.mubr.bf16.mxu0 0
          %810 = vmatmul.mubr.bf16.gmra.mxu0 %v757
          %v811 = vpop.f32.mrf.mxu0
          %v812 = vadd.f32 %v750, %v811
          %v813 = vpop.f32.mrf.mxu0
          %v814 = vpop.f32.mrf.mxu0
          %v815 = vadd.f32 %v750, %v814
          %v816 = vpop.f32.mrf.mxu0
          %817 = vmatprep.mubr.bf16.mxu0 0
          %818 = vmatmul.mubr.bf16.gmra.mxu0 %v760
          %v819 = vpop.f32.mrf.mxu0
          %v820 = vadd.f32 %v750, %v819
          %v821 = vpop.f32.mrf.mxu0
          %v822 = vpop.f32.mrf.mxu0
          %v823 = vadd.f32 %v750, %v822
          %v824 = vpop.f32.mrf.mxu0
          %825 = vmatprep.mubr.bf16.mxu0 0
          %826 = vmatmul.mubr.bf16.gmra.mxu0 %v763
          %v827 = vpop.f32.mrf.mxu0
          %v828 = vadd.f32 %v750, %v827
          %v829 = vpop.f32.mrf.mxu0
          %v830 = vpop.f32.mrf.mxu0
          %v831 = vadd.f32 %v750, %v830
          %v832 = vpop.f32.mrf.mxu0
          %833 = vdwg.mxu0
          %vm834 = vcmask 523264
          %835 = vst.msk [vmem:[#allocation2] sm:$0xff] %vm834, %v804
          %836 = vst.msk [vmem:[#allocation2 + $0x8] sm:$0xff] %vm834, %v807
          %837 = vst.msk [vmem:[#allocation2 + $0x10] sm:$0xff] %vm834, %v812
          %838 = vst.msk [vmem:[#allocation2 + $0x18] sm:$0xff] %vm834, %v815
          %839 = vst.msk [vmem:[#allocation2 + $0x20] sm:$0xff] %vm834, %v820
          %840 = vst.msk [vmem:[#allocation2 + $0x28] sm:$0xff] %vm834, %v823
          %841 = vst.msk [vmem:[#allocation2 + $0x30] sm:$0xff] %vm834, %v828
          %842 = vst.msk [vmem:[#allocation2 + $0x38] sm:$0xff] %vm834, %v831
          %v843 = vld [vmem:[%s2] sm:$0xff]
          %v844 = vld [vmem:[%s2 + $0x8] sm:$0xff]
          %v845 = vld [vmem:[%s2 + $0x10] sm:$0xff]
          %v846 = vld [vmem:[%s2 + $0x18] sm:$0xff]
          %v847 = vld [vmem:[%s2 + $0x20] sm:$0xff]
          %v848 = vld [vmem:[%s2 + $0x28] sm:$0xff]
          %v849 = vld [vmem:[%s2 + $0x30] sm:$0xff]
          %v850 = vld [vmem:[%s2 + $0x38] sm:$0xff]
          %v851 = vld [vmem:[%s2 + $0x40] sm:$0xff]
          %v852 = vld [vmem:[%s2 + $0x48] sm:$0xff]
          %v853 = vld [vmem:[%s2 + $0x50] sm:$0xff]
          %v854 = vld [vmem:[%s2 + $0x58] sm:$0xff]
          %v855 = vld [vmem:[%s2 + $0x60] sm:$0xff]
          %v856 = vld [vmem:[%s2 + $0x68] sm:$0xff]
          %v857 = vld [vmem:[%s2 + $0x70] sm:$0xff]
          %v858 = vld [vmem:[%s2 + $0x78] sm:$0xff]
          %v859 = vld [vmem:[%s2 + $0x80] sm:$0xff]
          %v860 = vld [vmem:[%s2 + $0x88] sm:$0xff]
          %v861 = vld [vmem:[%s2 + $0x90] sm:$0xff]
          %v862 = vld [vmem:[%s2 + $0x98] sm:$0xff]
          %v863 = vld [vmem:[%s2 + $0xa0] sm:$0xff]
          %v864 = vld [vmem:[%s2 + $0xa8] sm:$0xff]
          %v865 = vld [vmem:[%s2 + $0xb0] sm:$0xff]
          %v866 = vld [vmem:[%s2 + $0xb8] sm:$0xff]
          %v867 = vld [vmem:[%s2 + $0xc0] sm:$0xff]
          %v868 = vld [vmem:[%s2 + $0xc8] sm:$0xff]
          %v869 = vld [vmem:[%s2 + $0xd0] sm:$0xff]
          %v870 = vld [vmem:[%s2 + $0xd8] sm:$0xff]
          %v871 = vld [vmem:[%s2 + $0xe0] sm:$0xff]
          %v872 = vld [vmem:[%s2 + $0xe8] sm:$0xff]
          %v873 = vld [vmem:[%s2 + $0xf0] sm:$0xff]
          %v874 = vld [vmem:[%s2 + $0xf8] sm:$0xff]
          %v875 = vpack.c.bf16 %v844, %v843
          %v876 = vpack.c.bf16 %v846, %v845
          %v877 = vpack.c.bf16 %v848, %v847
          %v878 = vpack.c.bf16 %v850, %v849
          %v879 = vpack.c.bf16 %v852, %v851
          %v880 = vpack.c.bf16 %v854, %v853
          %v881 = vpack.c.bf16 %v856, %v855
          %v882 = vpack.c.bf16 %v858, %v857
          %v883 = vpack.c.bf16 %v860, %v859
          %v884 = vpack.c.bf16 %v862, %v861
          %v885 = vpack.c.bf16 %v864, %v863
          %v886 = vpack.c.bf16 %v866, %v865
          %v887 = vpack.c.bf16 %v868, %v867
          %v888 = vpack.c.bf16 %v870, %v869
          %v889 = vpack.c.bf16 %v872, %v871
          %v890 = vpack.c.bf16 %v874, %v873
          %v891 = vld [vmem:[%s7] sm:$0xf]
          %v892 = vld [vmem:[%s8] sm:$0x1]
          %v894 = vlaneseq
          %v895 = vshrl.u32 %v894, 7
          %v896 = vsub.s32 0, %v895
          %v897 = vrot.slane %v892, %v896
          %v900 = vsel %vm752, %v875, 0
          %v903 = vsel %vm752, %v876, 0
          %v906 = vsel %vm752, %v877, 0
          %v909 = vsel %vm752, %v878, 0
          %v912 = vsel %vm752, %v879, 0
          %v915 = vsel %vm752, %v880, 0
          %v918 = vsel %vm752, %v881, 0
          %v921 = vsel %vm752, %v882, 0
          %v924 = vsel %vm752, %v883, 0
          %v927 = vsel %vm752, %v884, 0
          %v930 = vsel %vm752, %v885, 0
          %v933 = vsel %vm752, %v886, 0
          %v936 = vsel %vm752, %v887, 0
          %v939 = vsel %vm752, %v888, 0
          %v942 = vsel %vm752, %v889, 0
          %v945 = vsel %vm752, %v890, 0
          %v948 = vsel %vm765, %v891, 0
          %950 = vmatprep.subr.bf16.mxu0 0
          %951 = vmatpush1.bf16.msra.mxu0 0
          %952 = vmatprep.subr.bf16.mxu0 0
          %953 = vmatpush1.bf16.msra.mxu0 0
          %954 = vmatprep.subr.bf16.mxu0 0
          %955 = vmatpush1.bf16.msra.mxu0 0
          %956 = vmatprep.subr.bf16.mxu0 0
          %957 = vmatpush1.bf16.msra.mxu0 0
          %958 = vmatprep.subr.bf16.mxu0 0
          %959 = vmatpush1.bf16.msra.mxu0 0
          %960 = vmatprep.subr.bf16.mxu0 0
          %961 = vmatpush1.bf16.msra.mxu0 0
          %962 = vmatprep.subr.bf16.mxu0 0
          %963 = vmatpush1.bf16.msra.mxu0 0
          %964 = vmatprep.subr.bf16.mxu0 0
          %965 = vmatpush1.bf16.msra.mxu0 %v948
          %966 = vmatprep.subr.bf16.mxu0 0
          %967 = vmatpush2.bf16.msra.mxu0 0
          %968 = vmatprep.subr.bf16.mxu0 0
          %969 = vmatpush2.bf16.msra.mxu0 0
          %970 = vmatprep.subr.bf16.mxu0 0
          %971 = vmatpush2.bf16.msra.mxu0 0
          %972 = vmatprep.subr.bf16.mxu0 0
          %973 = vmatpush2.bf16.msra.mxu0 0
          %974 = vmatprep.subr.bf16.mxu0 0
          %975 = vmatpush2.bf16.msra.mxu0 0
          %976 = vmatprep.subr.bf16.mxu0 0
          %977 = vmatpush2.bf16.msra.mxu0 0
          %978 = vmatprep.subr.bf16.mxu0 0
          %979 = vmatpush2.bf16.msra.mxu0 0
          %980 = vmatprep.subr.bf16.mxu0 0
          %981 = vmatpush2.bf16.msra.mxu0 0
          %982 = vmatprep.mubr.bf16.mxu0 0
          %983 = vmatmul.mubr.bf16.gmra.mxu0 %v900
          %v984 = vpop.f32.mrf.mxu0
          %v985 = vadd.f32 %v897, %v984
          %v986 = vpop.f32.mrf.mxu0
          %v987 = vpop.f32.mrf.mxu0
          %v988 = vadd.f32 %v897, %v987
          %v989 = vpop.f32.mrf.mxu0
          %990 = vmatprep.mubr.bf16.mxu0 0
          %991 = vmatmul.mubr.bf16.gmra.mxu0 %v903
          %v992 = vpop.f32.mrf.mxu0
          %v993 = vadd.f32 %v897, %v992
          %v994 = vpop.f32.mrf.mxu0
          %v995 = vpop.f32.mrf.mxu0
          %v996 = vadd.f32 %v897, %v995
          %v997 = vpop.f32.mrf.mxu0
          %998 = vmatprep.mubr.bf16.mxu0 0
          %999 = vmatmul.mubr.bf16.gmra.mxu0 %v906
          %v1000 = vpop.f32.mrf.mxu0
          %v1001 = vadd.f32 %v897, %v1000
          %v1002 = vpop.f32.mrf.mxu0
          %v1003 = vpop.f32.mrf.mxu0
          %v1004 = vadd.f32 %v897, %v1003
          %v1005 = vpop.f32.mrf.mxu0
          %1006 = vmatprep.mubr.bf16.mxu0 0
          %1007 = vmatmul.mubr.bf16.gmra.mxu0 %v909
          %v1008 = vpop.f32.mrf.mxu0
          %v1009 = vadd.f32 %v897, %v1008
          %v1010 = vpop.f32.mrf.mxu0
          %v1011 = vpop.f32.mrf.mxu0
          %v1012 = vadd.f32 %v897, %v1011
          %v1013 = vpop.f32.mrf.mxu0
          %1014 = vmatprep.mubr.bf16.mxu0 0
          %1015 = vmatmul.mubr.bf16.gmra.mxu0 %v912
          %v1016 = vpop.f32.mrf.mxu0
          %v1017 = vadd.f32 %v897, %v1016
          %v1018 = vpop.f32.mrf.mxu0
          %v1019 = vpop.f32.mrf.mxu0
          %v1020 = vadd.f32 %v897, %v1019
          %v1021 = vpop.f32.mrf.mxu0
          %1022 = vmatprep.mubr.bf16.mxu0 0
          %1023 = vmatmul.mubr.bf16.gmra.mxu0 %v915
          %v1024 = vpop.f32.mrf.mxu0
          %v1025 = vadd.f32 %v897, %v1024
          %v1026 = vpop.f32.mrf.mxu0
          %v1027 = vpop.f32.mrf.mxu0
          %v1028 = vadd.f32 %v897, %v1027
          %v1029 = vpop.f32.mrf.mxu0
          %1030 = vmatprep.mubr.bf16.mxu0 0
          %1031 = vmatmul.mubr.bf16.gmra.mxu0 %v918
          %v1032 = vpop.f32.mrf.mxu0
          %v1033 = vadd.f32 %v897, %v1032
          %v1034 = vpop.f32.mrf.mxu0
          %v1035 = vpop.f32.mrf.mxu0
          %v1036 = vadd.f32 %v897, %v1035
          %v1037 = vpop.f32.mrf.mxu0
          %1038 = vmatprep.mubr.bf16.mxu0 0
          %1039 = vmatmul.mubr.bf16.gmra.mxu0 %v921
          %v1040 = vpop.f32.mrf.mxu0
          %v1041 = vadd.f32 %v897, %v1040
          %v1042 = vpop.f32.mrf.mxu0
          %v1043 = vpop.f32.mrf.mxu0
          %v1044 = vadd.f32 %v897, %v1043
          %v1045 = vpop.f32.mrf.mxu0
          %1046 = vmatprep.mubr.bf16.mxu0 0
          %1047 = vmatmul.mubr.bf16.gmra.mxu0 %v924
          %v1048 = vpop.f32.mrf.mxu0
          %v1049 = vadd.f32 %v897, %v1048
          %v1050 = vpop.f32.mrf.mxu0
          %v1051 = vpop.f32.mrf.mxu0
          %v1052 = vadd.f32 %v897, %v1051
          %v1053 = vpop.f32.mrf.mxu0
          %1054 = vmatprep.mubr.bf16.mxu0 0
          %1055 = vmatmul.mubr.bf16.gmra.mxu0 %v927
          %v1056 = vpop.f32.mrf.mxu0
          %v1057 = vadd.f32 %v897, %v1056
          %v1058 = vpop.f32.mrf.mxu0
          %v1059 = vpop.f32.mrf.mxu0
          %v1060 = vadd.f32 %v897, %v1059
          %v1061 = vpop.f32.mrf.mxu0
          %1062 = vmatprep.mubr.bf16.mxu0 0
          %1063 = vmatmul.mubr.bf16.gmra.mxu0 %v930
          %v1064 = vpop.f32.mrf.mxu0
          %v1065 = vadd.f32 %v897, %v1064
          %v1066 = vpop.f32.mrf.mxu0
          %v1067 = vpop.f32.mrf.mxu0
          %v1068 = vadd.f32 %v897, %v1067
          %v1069 = vpop.f32.mrf.mxu0
          %1070 = vmatprep.mubr.bf16.mxu0 0
          %1071 = vmatmul.mubr.bf16.gmra.mxu0 %v933
          %v1072 = vpop.f32.mrf.mxu0
          %v1073 = vadd.f32 %v897, %v1072
          %v1074 = vpop.f32.mrf.mxu0
          %v1075 = vpop.f32.mrf.mxu0
          %v1076 = vadd.f32 %v897, %v1075
          %v1077 = vpop.f32.mrf.mxu0
          %1078 = vmatprep.mubr.bf16.mxu0 0
          %1079 = vmatmul.mubr.bf16.gmra.mxu0 %v936
          %v1080 = vpop.f32.mrf.mxu0
          %v1081 = vadd.f32 %v897, %v1080
          %v1082 = vpop.f32.mrf.mxu0
          %v1083 = vpop.f32.mrf.mxu0
          %v1084 = vadd.f32 %v897, %v1083
          %v1085 = vpop.f32.mrf.mxu0
          %1086 = vmatprep.mubr.bf16.mxu0 0
          %1087 = vmatmul.mubr.bf16.gmra.mxu0 %v939
          %v1088 = vpop.f32.mrf.mxu0
          %v1089 = vadd.f32 %v897, %v1088
          %v1090 = vpop.f32.mrf.mxu0
          %v1091 = vpop.f32.mrf.mxu0
          %v1092 = vadd.f32 %v897, %v1091
          %v1093 = vpop.f32.mrf.mxu0
          %1094 = vmatprep.mubr.bf16.mxu0 0
          %1095 = vmatmul.mubr.bf16.gmra.mxu0 %v942
          %v1096 = vpop.f32.mrf.mxu0
          %v1097 = vadd.f32 %v897, %v1096
          %v1098 = vpop.f32.mrf.mxu0
          %v1099 = vpop.f32.mrf.mxu0
          %v1100 = vadd.f32 %v897, %v1099
          %v1101 = vpop.f32.mrf.mxu0
          %1102 = vmatprep.mubr.bf16.mxu0 0
          %1103 = vmatmul.mubr.bf16.gmra.mxu0 %v945
          %v1104 = vpop.f32.mrf.mxu0
          %v1105 = vadd.f32 %v897, %v1104
          %v1106 = vpop.f32.mrf.mxu0
          %v1107 = vpop.f32.mrf.mxu0
          %v1108 = vadd.f32 %v897, %v1107
          %v1109 = vpop.f32.mrf.mxu0
          %1110 = vdwg.mxu0
          %1111 = vst.msk [vmem:[#allocation3] sm:$0xff] %vm834, %v985
          %1112 = vst.msk [vmem:[#allocation3 + $0x8] sm:$0xff] %vm834, %v988
          %1113 = vst.msk [vmem:[#allocation3 + $0x10] sm:$0xff] %vm834, %v993
          %1114 = vst.msk [vmem:[#allocation3 + $0x18] sm:$0xff] %vm834, %v996
          %1115 = vst.msk [vmem:[#allocation3 + $0x20] sm:$0xff] %vm834, %v1001
          %1116 = vst.msk [vmem:[#allocation3 + $0x28] sm:$0xff] %vm834, %v1004
          %1117 = vst.msk [vmem:[#allocation3 + $0x30] sm:$0xff] %vm834, %v1009
          %1118 = vst.msk [vmem:[#allocation3 + $0x38] sm:$0xff] %vm834, %v1012
          %1119 = vst.msk [vmem:[#allocation3 + $0x40] sm:$0xff] %vm834, %v1017
          %1120 = vst.msk [vmem:[#allocation3 + $0x48] sm:$0xff] %vm834, %v1020
          %1121 = vst.msk [vmem:[#allocation3 + $0x50] sm:$0xff] %vm834, %v1025
          %1122 = vst.msk [vmem:[#allocation3 + $0x58] sm:$0xff] %vm834, %v1028
          %1123 = vst.msk [vmem:[#allocation3 + $0x60] sm:$0xff] %vm834, %v1033
          %1124 = vst.msk [vmem:[#allocation3 + $0x68] sm:$0xff] %vm834, %v1036
          %1125 = vst.msk [vmem:[#allocation3 + $0x70] sm:$0xff] %vm834, %v1041
          %1126 = vst.msk [vmem:[#allocation3 + $0x78] sm:$0xff] %vm834, %v1044
          %1127 = vst.msk [vmem:[#allocation3 + $0x80] sm:$0xff] %vm834, %v1049
          %1128 = vst.msk [vmem:[#allocation3 + $0x88] sm:$0xff] %vm834, %v1052
          %1129 = vst.msk [vmem:[#allocation3 + $0x90] sm:$0xff] %vm834, %v1057
          %1130 = vst.msk [vmem:[#allocation3 + $0x98] sm:$0xff] %vm834, %v1060
          %1131 = vst.msk [vmem:[#allocation3 + $0xa0] sm:$0xff] %vm834, %v1065
          %1132 = vst.msk [vmem:[#allocation3 + $0xa8] sm:$0xff] %vm834, %v1068
          %1133 = vst.msk [vmem:[#allocation3 + $0xb0] sm:$0xff] %vm834, %v1073
          %1134 = vst.msk [vmem:[#allocation3 + $0xb8] sm:$0xff] %vm834, %v1076
          %1135 = vst.msk [vmem:[#allocation3 + $0xc0] sm:$0xff] %vm834, %v1081
          %1136 = vst.msk [vmem:[#allocation3 + $0xc8] sm:$0xff] %vm834, %v1084
          %1137 = vst.msk [vmem:[#allocation3 + $0xd0] sm:$0xff] %vm834, %v1089
          %1138 = vst.msk [vmem:[#allocation3 + $0xd8] sm:$0xff] %vm834, %v1092
          %1139 = vst.msk [vmem:[#allocation3 + $0xe0] sm:$0xff] %vm834, %v1097
          %1140 = vst.msk [vmem:[#allocation3 + $0xe8] sm:$0xff] %vm834, %v1100
          %1141 = vst.msk [vmem:[#allocation3 + $0xf0] sm:$0xff] %vm834, %v1105
          %1142 = vst.msk [vmem:[#allocation3 + $0xf8] sm:$0xff] %vm834, %v1108
        $region104: #{tpu_custom_call.1} parent=99 // pred_fallthru
          _
        %v1143 = vld [vmem:[#allocation2] sm:$0xff]
        %v1144 = vld [vmem:[#allocation2 + $0x8] sm:$0xff]
        %v1145 = vld [vmem:[#allocation2 + $0x10] sm:$0xff]
        %v1146 = vld [vmem:[#allocation2 + $0x18] sm:$0xff]
        %v1147 = vld [vmem:[#allocation2 + $0x20] sm:$0xff]
        %v1148 = vld [vmem:[#allocation2 + $0x28] sm:$0xff]
        %v1149 = vld [vmem:[#allocation2 + $0x30] sm:$0xff]
        %v1150 = vld [vmem:[#allocation2 + $0x38] sm:$0xff]
        %v1151 = vld [vmem:[%s701] sm:$0x1]
        %v1152 = vld [vmem:[%s704] sm:$0x1]
        %vm1153 = vcmask 523264
        %v1154 = vsel %vm1153, %v1143, 0.0
        %1155 = vadd.xlane.f32.xlu0 %v1154
        %v1156 = vpop.xlane.xlu0 %1155
        %v1157 = vsel %vm1153, %v1144, 0.0
        %1158 = vadd.xlane.f32.xlu0 %v1157
        %v1159 = vpop.xlane.xlu0 %1158
        %v1160 = vsel %vm1153, %v1145, 0.0
        %1161 = vadd.xlane.f32.xlu0 %v1160
        %v1162 = vpop.xlane.xlu0 %1161
        %v1163 = vsel %vm1153, %v1146, 0.0
        %1164 = vadd.xlane.f32.xlu0 %v1163
        %v1165 = vpop.xlane.xlu0 %1164
        %v1166 = vsel %vm1153, %v1147, 0.0
        %1167 = vadd.xlane.f32.xlu0 %v1166
        %v1168 = vpop.xlane.xlu0 %1167
        %v1169 = vsel %vm1153, %v1148, 0.0
        %1170 = vadd.xlane.f32.xlu0 %v1169
        %v1171 = vpop.xlane.xlu0 %1170
        %v1172 = vsel %vm1153, %v1149, 0.0
        %1173 = vadd.xlane.f32.xlu0 %v1172
        %v1174 = vpop.xlane.xlu0 %1173
        %v1175 = vsel %vm1153, %v1150, 0.0
        %1176 = vadd.xlane.f32.xlu0 %v1175
        %v1177 = vpop.xlane.xlu0 %1176
        %v1178 = vrcp.pop 64.0
        %v1179 = vmul.f32 %v1156, %v1178
        %v1180 = vmul.f32 %v1159, %v1178
        %v1181 = vmul.f32 %v1162, %v1178
        %v1182 = vmul.f32 %v1165, %v1178
        %v1183 = vmul.f32 %v1168, %v1178
        %v1184 = vmul.f32 %v1171, %v1178
        %v1185 = vmul.f32 %v1174, %v1178
        %v1186 = vmul.f32 %v1177, %v1178
        %v1187 = vmul.f32 %v1143, %v1143
        %v1188 = vmul.f32 %v1144, %v1144
        %v1189 = vmul.f32 %v1145, %v1145
        %v1190 = vmul.f32 %v1146, %v1146
        %v1191 = vmul.f32 %v1147, %v1147
        %v1192 = vmul.f32 %v1148, %v1148
        %v1193 = vmul.f32 %v1149, %v1149
        %v1194 = vmul.f32 %v1150, %v1150
        %v1195 = vsel %vm1153, %v1187, 0.0
        %1196 = vadd.xlane.f32.xlu0 %v1195
        %v1197 = vpop.xlane.xlu0 %1196
        %v1198 = vsel %vm1153, %v1188, 0.0
        %1199 = vadd.xlane.f32.xlu0 %v1198
        %v1200 = vpop.xlane.xlu0 %1199
        %v1201 = vsel %vm1153, %v1189, 0.0
        %1202 = vadd.xlane.f32.xlu0 %v1201
        %v1203 = vpop.xlane.xlu0 %1202
        %v1204 = vsel %vm1153, %v1190, 0.0
        %1205 = vadd.xlane.f32.xlu0 %v1204
        %v1206 = vpop.xlane.xlu0 %1205
        %v1207 = vsel %vm1153, %v1191, 0.0
        %1208 = vadd.xlane.f32.xlu0 %v1207
        %v1209 = vpop.xlane.xlu0 %1208
        %v1210 = vsel %vm1153, %v1192, 0.0
        %1211 = vadd.xlane.f32.xlu0 %v1210
        %v1212 = vpop.xlane.xlu0 %1211
        %v1213 = vsel %vm1153, %v1193, 0.0
        %1214 = vadd.xlane.f32.xlu0 %v1213
        %v1215 = vpop.xlane.xlu0 %1214
        %v1216 = vsel %vm1153, %v1194, 0.0
        %1217 = vadd.xlane.f32.xlu0 %v1216
        %v1218 = vpop.xlane.xlu0 %1217
        %v1219 = vmul.f32 %v1197, %v1178
        %v1220 = vmul.f32 %v1200, %v1178
        %v1221 = vmul.f32 %v1203, %v1178
        %v1222 = vmul.f32 %v1206, %v1178
        %v1223 = vmul.f32 %v1209, %v1178
        %v1224 = vmul.f32 %v1212, %v1178
        %v1225 = vmul.f32 %v1215, %v1178
        %v1226 = vmul.f32 %v1218, %v1178
        %v1227 = vmul.f32 %v1179, %v1179
        %v1228 = vmul.f32 %v1180, %v1180
        %v1229 = vmul.f32 %v1181, %v1181
        %v1230 = vmul.f32 %v1182, %v1182
        %v1231 = vmul.f32 %v1183, %v1183
        %v1232 = vmul.f32 %v1184, %v1184
        %v1233 = vmul.f32 %v1185, %v1185
        %v1234 = vmul.f32 %v1186, %v1186
        %v1235 = vsub.f32 %v1219, %v1227
        %v1236 = vsub.f32 %v1220, %v1228
        %v1237 = vsub.f32 %v1221, %v1229
        %v1238 = vsub.f32 %v1222, %v1230
        %v1239 = vsub.f32 %v1223, %v1231
        %v1240 = vsub.f32 %v1224, %v1232
        %v1241 = vsub.f32 %v1225, %v1233
        %v1242 = vsub.f32 %v1226, %v1234
        %v1243 = vmax.f32 %v1235, 0.0
        %v1244 = vmax.f32 %v1236, 0.0
        %v1245 = vmax.f32 %v1237, 0.0
        %v1246 = vmax.f32 %v1238, 0.0
        %v1247 = vmax.f32 %v1239, 0.0
        %v1248 = vmax.f32 %v1240, 0.0
        %v1249 = vmax.f32 %v1241, 0.0
        %v1250 = vmax.f32 %v1242, 0.0
        %v1251 = vadd.f32 %v1243, 1e-05
        %v1252 = vadd.f32 %v1244, 1e-05
        %v1253 = vadd.f32 %v1245, 1e-05
        %v1254 = vadd.f32 %v1246, 1e-05
        %v1255 = vadd.f32 %v1247, 1e-05
        %v1256 = vadd.f32 %v1248, 1e-05
        %v1257 = vadd.f32 %v1249, 1e-05
        %v1258 = vadd.f32 %v1250, 1e-05
        %v1259 = vrsqrt.pop %v1251
        %v1260 = vrsqrt.pop %v1252
        %v1261 = vrsqrt.pop %v1253
        %v1262 = vrsqrt.pop %v1254
        %v1263 = vrsqrt.pop %v1255
        %v1264 = vrsqrt.pop %v1256
        %v1265 = vrsqrt.pop %v1257
        %v1266 = vrsqrt.pop %v1258
        %v1268 = vlaneseq
        %v1269 = vshrl.u32 %v1268, 7
        %v1270 = vsub.s32 0, %v1269
        %v1271 = vrot.slane %v1151, %v1270
        %v1273 = vmul.f32 %v1259, %v1271
        %v1274 = vmul.f32 %v1260, %v1271
        %v1275 = vmul.f32 %v1261, %v1271
        %v1276 = vmul.f32 %v1262, %v1271
        %v1277 = vmul.f32 %v1263, %v1271
        %v1278 = vmul.f32 %v1264, %v1271
        %v1279 = vmul.f32 %v1265, %v1271
        %v1280 = vmul.f32 %v1266, %v1271
        %v1281 = vmul.f32 %v1143, %v1273
        %v1282 = vmul.f32 %v1144, %v1274
        %v1283 = vmul.f32 %v1145, %v1275
        %v1284 = vmul.f32 %v1146, %v1276
        %v1285 = vmul.f32 %v1147, %v1277
        %v1286 = vmul.f32 %v1148, %v1278
        %v1287 = vmul.f32 %v1149, %v1279
        %v1288 = vmul.f32 %v1150, %v1280
        %v1289 = vmul.f32 %v1179, %v1273
        %v1290 = vmul.f32 %v1180, %v1274
        %v1291 = vmul.f32 %v1181, %v1275
        %v1292 = vmul.f32 %v1182, %v1276
        %v1293 = vmul.f32 %v1183, %v1277
        %v1294 = vmul.f32 %v1184, %v1278
        %v1295 = vmul.f32 %v1185, %v1279
        %v1296 = vmul.f32 %v1186, %v1280
        %v1298 = vlaneseq
        %v1299 = vshrl.u32 %v1298, 7
        %v1300 = vsub.s32 0, %v1299
        %v1301 = vrot.slane %v1152, %v1300
        %v1303 = vsub.f32 %v1301, %v1289
        %v1304 = vsub.f32 %v1301, %v1290
        %v1305 = vsub.f32 %v1301, %v1291
        %v1306 = vsub.f32 %v1301, %v1292
        %v1307 = vsub.f32 %v1301, %v1293
        %v1308 = vsub.f32 %v1301, %v1294
        %v1309 = vsub.f32 %v1301, %v1295
        %v1310 = vsub.f32 %v1301, %v1296
        %v1311 = vadd.f32 %v1281, %v1303
        %v1312 = vadd.f32 %v1282, %v1304
        %v1313 = vadd.f32 %v1283, %v1305
        %v1314 = vadd.f32 %v1284, %v1306
        %v1315 = vadd.f32 %v1285, %v1307
        %v1316 = vadd.f32 %v1286, %v1308
        %v1317 = vadd.f32 %v1287, %v1309
        %v1318 = vadd.f32 %v1288, %v1310
        %v1319 = vmax.f32 %v1311, 0.0
        %v1320 = vmax.f32 %v1312, 0.0
        %v1321 = vmax.f32 %v1313, 0.0
        %v1322 = vmax.f32 %v1314, 0.0
        %v1323 = vmax.f32 %v1315, 0.0
        %v1324 = vmax.f32 %v1316, 0.0
        %v1325 = vmax.f32 %v1317, 0.0
        %v1326 = vmax.f32 %v1318, 0.0
        %s1327 = scalar_select %p728, 1, 0
        %v1328 = vstv %s1327
        %vm1329 = vcmp.eq.s32.totalorder %v1328, 1
        %v1330 = vsel %vm1329, %v1143, %v1319
        %v1331 = vsel %vm1329, %v1144, %v1320
        %v1332 = vsel %vm1329, %v1145, %v1321
        %v1333 = vsel %vm1329, %v1146, %v1322
        %v1334 = vsel %vm1329, %v1147, %v1323
        %v1335 = vsel %vm1329, %v1148, %v1324
        %v1336 = vsel %vm1329, %v1149, %v1325
        %v1337 = vsel %vm1329, %v1150, %v1326
        %s1338 = sld [smem:[#allocation5 + %s39]]
        %v1339 = vld [vmem:[%s3] sm:$0xf]
        %v1340 = vld [vmem:[%s3 + $0x4] sm:$0xf]
        %v1341 = vld [vmem:[%s3 + $0x8] sm:$0xf]
        %v1342 = vld [vmem:[%s3 + $0xc] sm:$0xf]
        %v1343 = vld [vmem:[%s3 + $0x10] sm:$0xf]
        %v1344 = vld [vmem:[%s3 + $0x14] sm:$0xf]
        %v1345 = vld [vmem:[%s3 + $0x18] sm:$0xf]
        %v1346 = vld [vmem:[%s3 + $0x1c] sm:$0xf]
        %v1347 = vld [vmem:[%s3 + $0x20] sm:$0xf]
        %v1348 = vld [vmem:[%s3 + $0x24] sm:$0xf]
        %v1349 = vld [vmem:[%s3 + $0x28] sm:$0xf]
        %v1350 = vld [vmem:[%s3 + $0x2c] sm:$0xf]
        %v1351 = vld [vmem:[%s3 + $0x30] sm:$0xf]
        %v1352 = vld [vmem:[%s3 + $0x34] sm:$0xf]
        %v1353 = vld [vmem:[%s3 + $0x38] sm:$0xf]
        %v1354 = vld [vmem:[%s3 + $0x3c] sm:$0xf]
        %v1355 = vld [vmem:[%s3 + $0x40] sm:$0xf]
        %v1356 = vld [vmem:[%s3 + $0x44] sm:$0xf]
        %v1357 = vld [vmem:[%s3 + $0x48] sm:$0xf]
        %v1358 = vld [vmem:[%s3 + $0x4c] sm:$0xf]
        %v1359 = vld [vmem:[%s3 + $0x50] sm:$0xf]
        %v1360 = vld [vmem:[%s3 + $0x54] sm:$0xf]
        %v1361 = vld [vmem:[%s3 + $0x58] sm:$0xf]
        %v1362 = vld [vmem:[%s3 + $0x5c] sm:$0xf]
        %v1363 = vld [vmem:[%s3 + $0x60] sm:$0xf]
        %v1364 = vld [vmem:[%s3 + $0x64] sm:$0xf]
        %v1365 = vld [vmem:[%s3 + $0x68] sm:$0xf]
        %v1366 = vld [vmem:[%s3 + $0x6c] sm:$0xf]
        %v1367 = vld [vmem:[%s3 + $0x70] sm:$0xf]
        %v1368 = vld [vmem:[%s3 + $0x74] sm:$0xf]
        %v1369 = vld [vmem:[%s3 + $0x78] sm:$0xf]
        %v1370 = vld [vmem:[%s3 + $0x7c] sm:$0xf]
        %v1371 = vpack.c.bf16 %v1331, %v1330
        %v1372 = vpack.c.bf16 %v1333, %v1332
        %v1373 = vpack.c.bf16 %v1335, %v1334
        %v1374 = vpack.c.bf16 %v1337, %v1336
        %v1375 = vld [vmem:[#allocation3] sm:$0xff]
        %v1376 = vld [vmem:[#allocation3 + $0x8] sm:$0xff]
        %v1377 = vld [vmem:[#allocation3 + $0x10] sm:$0xff]
        %v1378 = vld [vmem:[#allocation3 + $0x18] sm:$0xff]
        %v1379 = vld [vmem:[#allocation3 + $0x20] sm:$0xff]
        %v1380 = vld [vmem:[#allocation3 + $0x28] sm:$0xff]
        %v1381 = vld [vmem:[#allocation3 + $0x30] sm:$0xff]
        %v1382 = vld [vmem:[#allocation3 + $0x38] sm:$0xff]
        %v1383 = vld [vmem:[#allocation3 + $0x40] sm:$0xff]
        %v1384 = vld [vmem:[#allocation3 + $0x48] sm:$0xff]
        %v1385 = vld [vmem:[#allocation3 + $0x50] sm:$0xff]
        %v1386 = vld [vmem:[#allocation3 + $0x58] sm:$0xff]
        %v1387 = vld [vmem:[#allocation3 + $0x60] sm:$0xff]
        %v1388 = vld [vmem:[#allocation3 + $0x68] sm:$0xff]
        %v1389 = vld [vmem:[#allocation3 + $0x70] sm:$0xff]
        %v1390 = vld [vmem:[#allocation3 + $0x78] sm:$0xff]
        %v1391 = vld [vmem:[#allocation3 + $0x80] sm:$0xff]
        %v1392 = vld [vmem:[#allocation3 + $0x88] sm:$0xff]
        %v1393 = vld [vmem:[#allocation3 + $0x90] sm:$0xff]
        %v1394 = vld [vmem:[#allocation3 + $0x98] sm:$0xff]
        %v1395 = vld [vmem:[#allocation3 + $0xa0] sm:$0xff]
        %v1396 = vld [vmem:[#allocation3 + $0xa8] sm:$0xff]
        %v1397 = vld [vmem:[#allocation3 + $0xb0] sm:$0xff]
        %v1398 = vld [vmem:[#allocation3 + $0xb8] sm:$0xff]
        %v1399 = vld [vmem:[#allocation3 + $0xc0] sm:$0xff]
        %v1400 = vld [vmem:[#allocation3 + $0xc8] sm:$0xff]
        %v1401 = vld [vmem:[#allocation3 + $0xd0] sm:$0xff]
        %v1402 = vld [vmem:[#allocation3 + $0xd8] sm:$0xff]
        %v1403 = vld [vmem:[#allocation3 + $0xe0] sm:$0xff]
        %v1404 = vld [vmem:[#allocation3 + $0xe8] sm:$0xff]
        %v1405 = vld [vmem:[#allocation3 + $0xf0] sm:$0xff]
        %v1406 = vld [vmem:[#allocation3 + $0xf8] sm:$0xff]
        %v1439 = vunpack.c.l.b16 %v1339
        %v1440 = vunpack.c.l.b16 %v1340
        %v1441 = vunpack.c.l.b16 %v1341
        %v1442 = vunpack.c.l.b16 %v1342
        %v1443 = vunpack.c.l.b16 %v1343
        %v1444 = vunpack.c.l.b16 %v1344
        %v1445 = vunpack.c.l.b16 %v1345
        %v1446 = vunpack.c.l.b16 %v1346
        %v1447 = vunpack.c.l.b16 %v1347
        %v1448 = vunpack.c.l.b16 %v1348
        %v1449 = vunpack.c.l.b16 %v1349
        %v1450 = vunpack.c.l.b16 %v1350
        %v1451 = vunpack.c.l.b16 %v1351
        %v1452 = vunpack.c.l.b16 %v1352
        %v1453 = vunpack.c.l.b16 %v1353
        %v1454 = vunpack.c.l.b16 %v1354
        %v1455 = vunpack.c.l.b16 %v1355
        %v1456 = vunpack.c.l.b16 %v1356
        %v1457 = vunpack.c.l.b16 %v1357
        %v1458 = vunpack.c.l.b16 %v1358
        %v1459 = vunpack.c.l.b16 %v1359
        %v1460 = vunpack.c.l.b16 %v1360
        %v1461 = vunpack.c.l.b16 %v1361
        %v1462 = vunpack.c.l.b16 %v1362
        %v1463 = vunpack.c.l.b16 %v1363
        %v1464 = vunpack.c.l.b16 %v1364
        %v1465 = vunpack.c.l.b16 %v1365
        %v1466 = vunpack.c.l.b16 %v1366
        %v1467 = vunpack.c.l.b16 %v1367
        %v1468 = vunpack.c.l.b16 %v1368
        %v1469 = vunpack.c.l.b16 %v1369
        %v1470 = vunpack.c.l.b16 %v1370
        %v1471 = vpack.c.b16 %v1440, %v1439
        %v1472 = vpack.c.b16 %v1442, %v1441
        %v1473 = vpack.c.b16 %v1444, %v1443
        %v1474 = vpack.c.b16 %v1446, %v1445
        %v1475 = vpack.c.b16 %v1448, %v1447
        %v1476 = vpack.c.b16 %v1450, %v1449
        %v1477 = vpack.c.b16 %v1452, %v1451
        %v1478 = vpack.c.b16 %v1454, %v1453
        %v1479 = vpack.c.b16 %v1456, %v1455
        %v1480 = vpack.c.b16 %v1458, %v1457
        %v1481 = vpack.c.b16 %v1460, %v1459
        %v1482 = vpack.c.b16 %v1462, %v1461
        %v1483 = vpack.c.b16 %v1464, %v1463
        %v1484 = vpack.c.b16 %v1466, %v1465
        %v1485 = vpack.c.b16 %v1468, %v1467
        %v1486 = vpack.c.b16 %v1470, %v1469
        %v1488 = vsel %vm1153, %v1471, 0
        %v1491 = vsel %vm1153, %v1472, 0
        %v1494 = vsel %vm1153, %v1473, 0
        %v1497 = vsel %vm1153, %v1474, 0
        %v1500 = vsel %vm1153, %v1475, 0
        %v1503 = vsel %vm1153, %v1476, 0
        %v1506 = vsel %vm1153, %v1477, 0
        %v1509 = vsel %vm1153, %v1478, 0
        %v1512 = vsel %vm1153, %v1479, 0
        %v1515 = vsel %vm1153, %v1480, 0
        %v1518 = vsel %vm1153, %v1481, 0
        %v1521 = vsel %vm1153, %v1482, 0
        %v1524 = vsel %vm1153, %v1483, 0
        %v1527 = vsel %vm1153, %v1484, 0
        %v1530 = vsel %vm1153, %v1485, 0
        %v1533 = vsel %vm1153, %v1486, 0
        %1535 = vmatprep.subr.bf16.mxu0 0
        %1536 = vmatpush1.bf16.msra.mxu0 0
        %1537 = vmatprep.subr.bf16.mxu0 0
        %1538 = vmatpush1.bf16.msra.mxu0 0
        %1539 = vmatprep.subr.bf16.mxu0 0
        %1540 = vmatpush1.bf16.msra.mxu0 0
        %1541 = vmatprep.subr.bf16.mxu0 0
        %1542 = vmatpush1.bf16.msra.mxu0 0
        %1543 = vmatprep.subr.bf16.mxu0 0
        %1544 = vmatpush1.bf16.msra.mxu0 %v1374
        %1545 = vmatprep.subr.bf16.mxu0 0
        %1546 = vmatpush1.bf16.msra.mxu0 %v1373
        %1547 = vmatprep.subr.bf16.mxu0 0
        %1548 = vmatpush1.bf16.msra.mxu0 %v1372
        %1549 = vmatprep.subr.bf16.mxu0 0
        %1550 = vmatpush1.bf16.msra.mxu0 %v1371
        %1551 = vmatprep.subr.bf16.mxu0 0
        %1552 = vmatpush2.bf16.msra.mxu0 0
        %1553 = vmatprep.subr.bf16.mxu0 0
        %1554 = vmatpush2.bf16.msra.mxu0 0
        %1555 = vmatprep.subr.bf16.mxu0 0
        %1556 = vmatpush2.bf16.msra.mxu0 0
        %1557 = vmatprep.subr.bf16.mxu0 0
        %1558 = vmatpush2.bf16.msra.mxu0 0
        %1559 = vmatprep.subr.bf16.mxu0 0
        %1560 = vmatpush2.bf16.msra.mxu0 0
        %1561 = vmatprep.subr.bf16.mxu0 0
        %1562 = vmatpush2.bf16.msra.mxu0 0
        %1563 = vmatprep.subr.bf16.mxu0 0
        %1564 = vmatpush2.bf16.msra.mxu0 0
        %1565 = vmatprep.subr.bf16.mxu0 0
        %1566 = vmatpush2.bf16.msra.mxu0 0
        %1567 = vmatprep.mubr.bf16.mxu0 0
        %1568 = vmatmul.mubr.bf16.gmra.mxu0 %v1488
        %v1569 = vpop.f32.mrf.mxu0
        %v1570 = vadd.f32 %v1375, %v1569
        %v1571 = vpop.f32.mrf.mxu0
        %v1572 = vpop.f32.mrf.mxu0
        %v1573 = vadd.f32 %v1376, %v1572
        %v1574 = vpop.f32.mrf.mxu0
        %1575 = vmatprep.mubr.bf16.mxu0 0
        %1576 = vmatmul.mubr.bf16.gmra.mxu0 %v1491
        %v1577 = vpop.f32.mrf.mxu0
        %v1578 = vadd.f32 %v1377, %v1577
        %v1579 = vpop.f32.mrf.mxu0
        %v1580 = vpop.f32.mrf.mxu0
        %v1581 = vadd.f32 %v1378, %v1580
        %v1582 = vpop.f32.mrf.mxu0
        %1583 = vmatprep.mubr.bf16.mxu0 0
        %1584 = vmatmul.mubr.bf16.gmra.mxu0 %v1494
        %v1585 = vpop.f32.mrf.mxu0
        %v1586 = vadd.f32 %v1379, %v1585
        %v1587 = vpop.f32.mrf.mxu0
        %v1588 = vpop.f32.mrf.mxu0
        %v1589 = vadd.f32 %v1380, %v1588
        %v1590 = vpop.f32.mrf.mxu0
        %1591 = vmatprep.mubr.bf16.mxu0 0
        %1592 = vmatmul.mubr.bf16.gmra.mxu0 %v1497
        %v1593 = vpop.f32.mrf.mxu0
        %v1594 = vadd.f32 %v1381, %v1593
        %v1595 = vpop.f32.mrf.mxu0
        %v1596 = vpop.f32.mrf.mxu0
        %v1597 = vadd.f32 %v1382, %v1596
        %v1598 = vpop.f32.mrf.mxu0
        %1599 = vmatprep.mubr.bf16.mxu0 0
        %1600 = vmatmul.mubr.bf16.gmra.mxu0 %v1500
        %v1601 = vpop.f32.mrf.mxu0
        %v1602 = vadd.f32 %v1383, %v1601
        %v1603 = vpop.f32.mrf.mxu0
        %v1604 = vpop.f32.mrf.mxu0
        %v1605 = vadd.f32 %v1384, %v1604
        %v1606 = vpop.f32.mrf.mxu0
        %1607 = vmatprep.mubr.bf16.mxu0 0
        %1608 = vmatmul.mubr.bf16.gmra.mxu0 %v1503
        %v1609 = vpop.f32.mrf.mxu0
        %v1610 = vadd.f32 %v1385, %v1609
        %v1611 = vpop.f32.mrf.mxu0
        %v1612 = vpop.f32.mrf.mxu0
        %v1613 = vadd.f32 %v1386, %v1612
        %v1614 = vpop.f32.mrf.mxu0
        %1615 = vmatprep.mubr.bf16.mxu0 0
        %1616 = vmatmul.mubr.bf16.gmra.mxu0 %v1506
        %v1617 = vpop.f32.mrf.mxu0
        %v1618 = vadd.f32 %v1387, %v1617
        %v1619 = vpop.f32.mrf.mxu0
        %v1620 = vpop.f32.mrf.mxu0
        %v1621 = vadd.f32 %v1388, %v1620
        %v1622 = vpop.f32.mrf.mxu0
        %1623 = vmatprep.mubr.bf16.mxu0 0
        %1624 = vmatmul.mubr.bf16.gmra.mxu0 %v1509
        %v1625 = vpop.f32.mrf.mxu0
        %v1626 = vadd.f32 %v1389, %v1625
        %v1627 = vpop.f32.mrf.mxu0
        %v1628 = vpop.f32.mrf.mxu0
        %v1629 = vadd.f32 %v1390, %v1628
        %v1630 = vpop.f32.mrf.mxu0
        %1631 = vmatprep.mubr.bf16.mxu0 0
        %1632 = vmatmul.mubr.bf16.gmra.mxu0 %v1512
        %v1633 = vpop.f32.mrf.mxu0
        %v1634 = vadd.f32 %v1391, %v1633
        %v1635 = vpop.f32.mrf.mxu0
        %v1636 = vpop.f32.mrf.mxu0
        %v1637 = vadd.f32 %v1392, %v1636
        %v1638 = vpop.f32.mrf.mxu0
        %1639 = vmatprep.mubr.bf16.mxu0 0
        %1640 = vmatmul.mubr.bf16.gmra.mxu0 %v1515
        %v1641 = vpop.f32.mrf.mxu0
        %v1642 = vadd.f32 %v1393, %v1641
        %v1643 = vpop.f32.mrf.mxu0
        %v1644 = vpop.f32.mrf.mxu0
        %v1645 = vadd.f32 %v1394, %v1644
        %v1646 = vpop.f32.mrf.mxu0
        %1647 = vmatprep.mubr.bf16.mxu0 0
        %1648 = vmatmul.mubr.bf16.gmra.mxu0 %v1518
        %v1649 = vpop.f32.mrf.mxu0
        %v1650 = vadd.f32 %v1395, %v1649
        %v1651 = vpop.f32.mrf.mxu0
        %v1652 = vpop.f32.mrf.mxu0
        %v1653 = vadd.f32 %v1396, %v1652
        %v1654 = vpop.f32.mrf.mxu0
        %1655 = vmatprep.mubr.bf16.mxu0 0
        %1656 = vmatmul.mubr.bf16.gmra.mxu0 %v1521
        %v1657 = vpop.f32.mrf.mxu0
        %v1658 = vadd.f32 %v1397, %v1657
        %v1659 = vpop.f32.mrf.mxu0
        %v1660 = vpop.f32.mrf.mxu0
        %v1661 = vadd.f32 %v1398, %v1660
        %v1662 = vpop.f32.mrf.mxu0
        %1663 = vmatprep.mubr.bf16.mxu0 0
        %1664 = vmatmul.mubr.bf16.gmra.mxu0 %v1524
        %v1665 = vpop.f32.mrf.mxu0
        %v1666 = vadd.f32 %v1399, %v1665
        %v1667 = vpop.f32.mrf.mxu0
        %v1668 = vpop.f32.mrf.mxu0
        %v1669 = vadd.f32 %v1400, %v1668
        %v1670 = vpop.f32.mrf.mxu0
        %1671 = vmatprep.mubr.bf16.mxu0 0
        %1672 = vmatmul.mubr.bf16.gmra.mxu0 %v1527
        %v1673 = vpop.f32.mrf.mxu0
        %v1674 = vadd.f32 %v1401, %v1673
        %v1675 = vpop.f32.mrf.mxu0
        %v1676 = vpop.f32.mrf.mxu0
        %v1677 = vadd.f32 %v1402, %v1676
        %v1678 = vpop.f32.mrf.mxu0
        %1679 = vmatprep.mubr.bf16.mxu0 0
        %1680 = vmatmul.mubr.bf16.gmra.mxu0 %v1530
        %v1681 = vpop.f32.mrf.mxu0
        %v1682 = vadd.f32 %v1403, %v1681
        %v1683 = vpop.f32.mrf.mxu0
        %v1684 = vpop.f32.mrf.mxu0
        %v1685 = vadd.f32 %v1404, %v1684
        %v1686 = vpop.f32.mrf.mxu0
        %1687 = vmatprep.mubr.bf16.mxu0 0
        %1688 = vmatmul.mubr.bf16.gmra.mxu0 %v1533
        %v1689 = vpop.f32.mrf.mxu0
        %v1690 = vadd.f32 %v1405, %v1689
        %v1691 = vpop.f32.mrf.mxu0
        %v1692 = vpop.f32.mrf.mxu0
        %v1693 = vadd.f32 %v1406, %v1692
        %v1694 = vpop.f32.mrf.mxu0
        %1695 = vdwg.mxu0
        %v1696 = vmax.f32 %v1570, 0.0
        %v1697 = vmax.f32 %v1573, 0.0
        %v1698 = vmax.f32 %v1578, 0.0
        %v1699 = vmax.f32 %v1581, 0.0
        %v1700 = vmax.f32 %v1586, 0.0
        %v1701 = vmax.f32 %v1589, 0.0
        %v1702 = vmax.f32 %v1594, 0.0
        %v1703 = vmax.f32 %v1597, 0.0
        %v1704 = vmax.f32 %v1602, 0.0
        %v1705 = vmax.f32 %v1605, 0.0
        %v1706 = vmax.f32 %v1610, 0.0
        %v1707 = vmax.f32 %v1613, 0.0
        %v1708 = vmax.f32 %v1618, 0.0
        %v1709 = vmax.f32 %v1621, 0.0
        %v1710 = vmax.f32 %v1626, 0.0
        %v1711 = vmax.f32 %v1629, 0.0
        %v1712 = vmax.f32 %v1634, 0.0
        %v1713 = vmax.f32 %v1637, 0.0
        %v1714 = vmax.f32 %v1642, 0.0
        %v1715 = vmax.f32 %v1645, 0.0
        %v1716 = vmax.f32 %v1650, 0.0
        %v1717 = vmax.f32 %v1653, 0.0
        %v1718 = vmax.f32 %v1658, 0.0
        %v1719 = vmax.f32 %v1661, 0.0
        %v1720 = vmax.f32 %v1666, 0.0
        %v1721 = vmax.f32 %v1669, 0.0
        %v1722 = vmax.f32 %v1674, 0.0
        %v1723 = vmax.f32 %v1677, 0.0
        %v1724 = vmax.f32 %v1682, 0.0
        %v1725 = vmax.f32 %v1685, 0.0
        %v1726 = vmax.f32 %v1690, 0.0
        %v1727 = vmax.f32 %v1693, 0.0
        %v1728 = vadd.f32 %v1696, 1e-07
        %v1729 = vadd.f32 %v1697, 1e-07
        %v1730 = vadd.f32 %v1698, 1e-07
        %v1731 = vadd.f32 %v1699, 1e-07
        %v1732 = vadd.f32 %v1700, 1e-07
        %v1733 = vadd.f32 %v1701, 1e-07
        %v1734 = vadd.f32 %v1702, 1e-07
        %v1735 = vadd.f32 %v1703, 1e-07
        %v1736 = vadd.f32 %v1704, 1e-07
        %v1737 = vadd.f32 %v1705, 1e-07
        %v1738 = vadd.f32 %v1706, 1e-07
        %v1739 = vadd.f32 %v1707, 1e-07
        %v1740 = vadd.f32 %v1708, 1e-07
        %v1741 = vadd.f32 %v1709, 1e-07
        %v1742 = vadd.f32 %v1710, 1e-07
        %v1743 = vadd.f32 %v1711, 1e-07
        %v1744 = vadd.f32 %v1712, 1e-07
        %v1745 = vadd.f32 %v1713, 1e-07
        %v1746 = vadd.f32 %v1714, 1e-07
        %v1747 = vadd.f32 %v1715, 1e-07
        %v1748 = vadd.f32 %v1716, 1e-07
        %v1749 = vadd.f32 %v1717, 1e-07
        %v1750 = vadd.f32 %v1718, 1e-07
        %v1751 = vadd.f32 %v1719, 1e-07
        %v1752 = vadd.f32 %v1720, 1e-07
        %v1753 = vadd.f32 %v1721, 1e-07
        %v1754 = vadd.f32 %v1722, 1e-07
        %v1755 = vadd.f32 %v1723, 1e-07
        %v1756 = vadd.f32 %v1724, 1e-07
        %v1757 = vadd.f32 %v1725, 1e-07
        %v1758 = vadd.f32 %v1726, 1e-07
        %v1759 = vadd.f32 %v1727, 1e-07
        %v1760 = vstv %s1338
        %v1761 = vmul.f32 %v1760, %v1728
        %v1762 = vmul.f32 %v1760, %v1729
        %v1763 = vmul.f32 %v1760, %v1730
        %v1764 = vmul.f32 %v1760, %v1731
        %v1765 = vmul.f32 %v1760, %v1732
        %v1766 = vmul.f32 %v1760, %v1733
        %v1767 = vmul.f32 %v1760, %v1734
        %v1768 = vmul.f32 %v1760, %v1735
        %v1769 = vmul.f32 %v1760, %v1736
        %v1770 = vmul.f32 %v1760, %v1737
        %v1771 = vmul.f32 %v1760, %v1738
        %v1772 = vmul.f32 %v1760, %v1739
        %v1773 = vmul.f32 %v1760, %v1740
        %v1774 = vmul.f32 %v1760, %v1741
        %v1775 = vmul.f32 %v1760, %v1742
        %v1776 = vmul.f32 %v1760, %v1743
        %v1777 = vmul.f32 %v1760, %v1744
        %v1778 = vmul.f32 %v1760, %v1745
        %v1779 = vmul.f32 %v1760, %v1746
        %v1780 = vmul.f32 %v1760, %v1747
        %v1781 = vmul.f32 %v1760, %v1748
        %v1782 = vmul.f32 %v1760, %v1749
        %v1783 = vmul.f32 %v1760, %v1750
        %v1784 = vmul.f32 %v1760, %v1751
        %v1785 = vmul.f32 %v1760, %v1752
        %v1786 = vmul.f32 %v1760, %v1753
        %v1787 = vmul.f32 %v1760, %v1754
        %v1788 = vmul.f32 %v1760, %v1755
        %v1789 = vmul.f32 %v1760, %v1756
        %v1790 = vmul.f32 %v1760, %v1757
        %v1791 = vmul.f32 %v1760, %v1758
        %v1792 = vmul.f32 %v1760, %v1759
        %v1793 = vmin.f32 %v1761, 60.0
        %v1794 = vmin.f32 %v1762, 60.0
        %v1795 = vmin.f32 %v1763, 60.0
        %v1796 = vmin.f32 %v1764, 60.0
        %v1797 = vmin.f32 %v1765, 60.0
        %v1798 = vmin.f32 %v1766, 60.0
        %v1799 = vmin.f32 %v1767, 60.0
        %v1800 = vmin.f32 %v1768, 60.0
        %v1801 = vmin.f32 %v1769, 60.0
        %v1802 = vmin.f32 %v1770, 60.0
        %v1803 = vmin.f32 %v1771, 60.0
        %v1804 = vmin.f32 %v1772, 60.0
        %v1805 = vmin.f32 %v1773, 60.0
        %v1806 = vmin.f32 %v1774, 60.0
        %v1807 = vmin.f32 %v1775, 60.0
        %v1808 = vmin.f32 %v1776, 60.0
        %v1809 = vmin.f32 %v1777, 60.0
        %v1810 = vmin.f32 %v1778, 60.0
        %v1811 = vmin.f32 %v1779, 60.0
        %v1812 = vmin.f32 %v1780, 60.0
        %v1813 = vmin.f32 %v1781, 60.0
        %v1814 = vmin.f32 %v1782, 60.0
        %v1815 = vmin.f32 %v1783, 60.0
        %v1816 = vmin.f32 %v1784, 60.0
        %v1817 = vmin.f32 %v1785, 60.0
        %v1818 = vmin.f32 %v1786, 60.0
        %v1819 = vmin.f32 %v1787, 60.0
        %v1820 = vmin.f32 %v1788, 60.0
        %v1821 = vmin.f32 %v1789, 60.0
        %v1822 = vmin.f32 %v1790, 60.0
        %v1823 = vmin.f32 %v1791, 60.0
        %v1824 = vmin.f32 %v1792, 60.0
        %v1825 = vmul.f32 %v1793, 1.442695
        %v1826 = vpow.pop %v1825
        %v1827 = vmul.f32 %v1794, 1.442695
        %v1828 = vpow.pop %v1827
        %v1829 = vmul.f32 %v1795, 1.442695
        %v1830 = vpow.pop %v1829
        %v1831 = vmul.f32 %v1796, 1.442695
        %v1832 = vpow.pop %v1831
        %v1833 = vmul.f32 %v1797, 1.442695
        %v1834 = vpow.pop %v1833
        %v1835 = vmul.f32 %v1798, 1.442695
        %v1836 = vpow.pop %v1835
        %v1837 = vmul.f32 %v1799, 1.442695
        %v1838 = vpow.pop %v1837
        %v1839 = vmul.f32 %v1800, 1.442695
        %v1840 = vpow.pop %v1839
        %v1841 = vmul.f32 %v1801, 1.442695
        %v1842 = vpow.pop %v1841
        %v1843 = vmul.f32 %v1802, 1.442695
        %v1844 = vpow.pop %v1843
        %v1845 = vmul.f32 %v1803, 1.442695
        %v1846 = vpow.pop %v1845
        %v1847 = vmul.f32 %v1804, 1.442695
        %v1848 = vpow.pop %v1847
        %v1849 = vmul.f32 %v1805, 1.442695
        %v1850 = vpow.pop %v1849
        %v1851 = vmul.f32 %v1806, 1.442695
        %v1852 = vpow.pop %v1851
        %v1853 = vmul.f32 %v1807, 1.442695
        %v1854 = vpow.pop %v1853
        %v1855 = vmul.f32 %v1808, 1.442695
        %v1856 = vpow.pop %v1855
        %v1857 = vmul.f32 %v1809, 1.442695
        %v1858 = vpow.pop %v1857
        %v1859 = vmul.f32 %v1810, 1.442695
        %v1860 = vpow.pop %v1859
        %v1861 = vmul.f32 %v1811, 1.442695
        %v1862 = vpow.pop %v1861
        %v1863 = vmul.f32 %v1812, 1.442695
        %v1864 = vpow.pop %v1863
        %v1865 = vmul.f32 %v1813, 1.442695
        %v1866 = vpow.pop %v1865
        %v1867 = vmul.f32 %v1814, 1.442695
        %v1868 = vpow.pop %v1867
        %v1869 = vmul.f32 %v1815, 1.442695
        %v1870 = vpow.pop %v1869
        %v1871 = vmul.f32 %v1816, 1.442695
        %v1872 = vpow.pop %v1871
        %v1873 = vmul.f32 %v1817, 1.442695
        %v1874 = vpow.pop %v1873
        %v1875 = vmul.f32 %v1818, 1.442695
        %v1876 = vpow.pop %v1875
        %v1877 = vmul.f32 %v1819, 1.442695
        %v1878 = vpow.pop %v1877
        %v1879 = vmul.f32 %v1820, 1.442695
        %v1880 = vpow.pop %v1879
        %v1881 = vmul.f32 %v1821, 1.442695
        %v1882 = vpow.pop %v1881
        %v1883 = vmul.f32 %v1822, 1.442695
        %v1884 = vpow.pop %v1883
        %v1885 = vmul.f32 %v1823, 1.442695
        %v1886 = vpow.pop %v1885
        %v1887 = vmul.f32 %v1824, 1.442695
        %v1888 = vpow.pop %v1887
        %v1889 = vmul.f32 %v1826, %v1728
        %v1890 = vmul.f32 %v1828, %v1729
        %v1891 = vmul.f32 %v1830, %v1730
        %v1892 = vmul.f32 %v1832, %v1731
        %v1893 = vmul.f32 %v1834, %v1732
        %v1894 = vmul.f32 %v1836, %v1733
        %v1895 = vmul.f32 %v1838, %v1734
        %v1896 = vmul.f32 %v1840, %v1735
        %v1897 = vmul.f32 %v1842, %v1736
        %v1898 = vmul.f32 %v1844, %v1737
        %v1899 = vmul.f32 %v1846, %v1738
        %v1900 = vmul.f32 %v1848, %v1739
        %v1901 = vmul.f32 %v1850, %v1740
        %v1902 = vmul.f32 %v1852, %v1741
        %v1903 = vmul.f32 %v1854, %v1742
        %v1904 = vmul.f32 %v1856, %v1743
        %v1905 = vmul.f32 %v1858, %v1744
        %v1906 = vmul.f32 %v1860, %v1745
        %v1907 = vmul.f32 %v1862, %v1746
        %v1908 = vmul.f32 %v1864, %v1747
        %v1909 = vmul.f32 %v1866, %v1748
        %v1910 = vmul.f32 %v1868, %v1749
        %v1911 = vmul.f32 %v1870, %v1750
        %v1912 = vmul.f32 %v1872, %v1751
        %v1913 = vmul.f32 %v1874, %v1752
        %v1914 = vmul.f32 %v1876, %v1753
        %v1915 = vmul.f32 %v1878, %v1754
        %v1916 = vmul.f32 %v1880, %v1755
        %v1917 = vmul.f32 %v1882, %v1756
        %v1918 = vmul.f32 %v1884, %v1757
        %v1919 = vmul.f32 %v1886, %v1758
        %v1920 = vmul.f32 %v1888, %v1759
        %1953 = vrot.lane.b32.xlu0 %v1889, 64
        %v1954 = vpop.permute.xlu0 %1953
        %1955 = vrot.lane.b32.xlu0 %v1890, 64
        %v1956 = vpop.permute.xlu0 %1955
        %1957 = vrot.lane.b32.xlu0 %v1891, 64
        %v1958 = vpop.permute.xlu0 %1957
        %1959 = vrot.lane.b32.xlu0 %v1892, 64
        %v1960 = vpop.permute.xlu0 %1959
        %1961 = vrot.lane.b32.xlu0 %v1893, 64
        %v1962 = vpop.permute.xlu0 %1961
        %1963 = vrot.lane.b32.xlu0 %v1894, 64
        %v1964 = vpop.permute.xlu0 %1963
        %1965 = vrot.lane.b32.xlu0 %v1895, 64
        %v1966 = vpop.permute.xlu0 %1965
        %1967 = vrot.lane.b32.xlu0 %v1896, 64
        %v1968 = vpop.permute.xlu0 %1967
        %1969 = vrot.lane.b32.xlu0 %v1897, 64
        %v1970 = vpop.permute.xlu0 %1969
        %1971 = vrot.lane.b32.xlu0 %v1898, 64
        %v1972 = vpop.permute.xlu0 %1971
        %1973 = vrot.lane.b32.xlu0 %v1899, 64
        %v1974 = vpop.permute.xlu0 %1973
        %1975 = vrot.lane.b32.xlu0 %v1900, 64
        %v1976 = vpop.permute.xlu0 %1975
        %1977 = vrot.lane.b32.xlu0 %v1901, 64
        %v1978 = vpop.permute.xlu0 %1977
        %1979 = vrot.lane.b32.xlu0 %v1902, 64
        %v1980 = vpop.permute.xlu0 %1979
        %1981 = vrot.lane.b32.xlu0 %v1903, 64
        %v1982 = vpop.permute.xlu0 %1981
        %1983 = vrot.lane.b32.xlu0 %v1904, 64
        %v1984 = vpop.permute.xlu0 %1983
        %1985 = vrot.lane.b32.xlu0 %v1905, 64
        %v1986 = vpop.permute.xlu0 %1985
        %1987 = vrot.lane.b32.xlu0 %v1906, 64
        %v1988 = vpop.permute.xlu0 %1987
        %1989 = vrot.lane.b32.xlu0 %v1907, 64
        %v1990 = vpop.permute.xlu0 %1989
        %1991 = vrot.lane.b32.xlu0 %v1908, 64
        %v1992 = vpop.permute.xlu0 %1991
        %1993 = vrot.lane.b32.xlu0 %v1909, 64
        %v1994 = vpop.permute.xlu0 %1993
        %1995 = vrot.lane.b32.xlu0 %v1910, 64
        %v1996 = vpop.permute.xlu0 %1995
        %1997 = vrot.lane.b32.xlu0 %v1911, 64
        %v1998 = vpop.permute.xlu0 %1997
        %1999 = vrot.lane.b32.xlu0 %v1912, 64
        %v2000 = vpop.permute.xlu0 %1999
        %2001 = vrot.lane.b32.xlu0 %v1913, 64
        %v2002 = vpop.permute.xlu0 %2001
        %2003 = vrot.lane.b32.xlu0 %v1914, 64
        %v2004 = vpop.permute.xlu0 %2003
        %2005 = vrot.lane.b32.xlu0 %v1915, 64
        %v2006 = vpop.permute.xlu0 %2005
        %2007 = vrot.lane.b32.xlu0 %v1916, 64
        %v2008 = vpop.permute.xlu0 %2007
        %2009 = vrot.lane.b32.xlu0 %v1917, 64
        %v2010 = vpop.permute.xlu0 %2009
        %2011 = vrot.lane.b32.xlu0 %v1918, 64
        %v2012 = vpop.permute.xlu0 %2011
        %2013 = vrot.lane.b32.xlu0 %v1919, 64
        %v2014 = vpop.permute.xlu0 %2013
        %2015 = vrot.lane.b32.xlu0 %v1920, 64
        %v2016 = vpop.permute.xlu0 %2015
        %v2049 = vsel %vm1153, %v1826, %v1954
        %v2050 = vsel %vm1153, %v1828, %v1956
        %v2051 = vsel %vm1153, %v1830, %v1958
        %v2052 = vsel %vm1153, %v1832, %v1960
        %v2053 = vsel %vm1153, %v1834, %v1962
        %v2054 = vsel %vm1153, %v1836, %v1964
        %v2055 = vsel %vm1153, %v1838, %v1966
        %v2056 = vsel %vm1153, %v1840, %v1968
        %v2057 = vsel %vm1153, %v1842, %v1970
        %v2058 = vsel %vm1153, %v1844, %v1972
        %v2059 = vsel %vm1153, %v1846, %v1974
        %v2060 = vsel %vm1153, %v1848, %v1976
        %v2061 = vsel %vm1153, %v1850, %v1978
        %v2062 = vsel %vm1153, %v1852, %v1980
        %v2063 = vsel %vm1153, %v1854, %v1982
        %v2064 = vsel %vm1153, %v1856, %v1984
        %v2065 = vsel %vm1153, %v1858, %v1986
        %v2066 = vsel %vm1153, %v1860, %v1988
        %v2067 = vsel %vm1153, %v1862, %v1990
        %v2068 = vsel %vm1153, %v1864, %v1992
        %v2069 = vsel %vm1153, %v1866, %v1994
        %v2070 = vsel %vm1153, %v1868, %v1996
        %v2071 = vsel %vm1153, %v1870, %v1998
        %v2072 = vsel %vm1153, %v1872, %v2000
        %v2073 = vsel %vm1153, %v1874, %v2002
        %v2074 = vsel %vm1153, %v1876, %v2004
        %v2075 = vsel %vm1153, %v1878, %v2006
        %v2076 = vsel %vm1153, %v1880, %v2008
        %v2077 = vsel %vm1153, %v1882, %v2010
        %v2078 = vsel %vm1153, %v1884, %v2012
        %v2079 = vsel %vm1153, %v1886, %v2014
        %v2080 = vsel %vm1153, %v1888, %v2016
        %v2081 = vpack.c.bf16 %v2050, %v2049
        %v2082 = vpack.c.bf16 %v2052, %v2051
        %v2083 = vpack.c.bf16 %v2054, %v2053
        %v2084 = vpack.c.bf16 %v2056, %v2055
        %v2085 = vpack.c.bf16 %v2058, %v2057
        %v2086 = vpack.c.bf16 %v2060, %v2059
        %v2087 = vpack.c.bf16 %v2062, %v2061
        %v2088 = vpack.c.bf16 %v2064, %v2063
        %v2089 = vpack.c.bf16 %v2066, %v2065
        %v2090 = vpack.c.bf16 %v2068, %v2067
        %v2091 = vpack.c.bf16 %v2070, %v2069
        %v2092 = vpack.c.bf16 %v2072, %v2071
        %v2093 = vpack.c.bf16 %v2074, %v2073
        %v2094 = vpack.c.bf16 %v2076, %v2075
        %v2095 = vpack.c.bf16 %v2078, %v2077
        %v2096 = vpack.c.bf16 %v2080, %v2079
        %v2097 = vld [vmem:[%s4] sm:$0xff]
        %v2098 = vld [vmem:[%s4 + $0x8] sm:$0xff]
        %v2099 = vld [vmem:[%s4 + $0x10] sm:$0xff]
        %v2100 = vld [vmem:[%s4 + $0x18] sm:$0xff]
        %v2101 = vld [vmem:[%s4 + $0x20] sm:$0xff]
        %v2102 = vld [vmem:[%s4 + $0x28] sm:$0xff]
        %v2103 = vld [vmem:[%s4 + $0x30] sm:$0xff]
        %v2104 = vld [vmem:[%s4 + $0x38] sm:$0xff]
        %v2113 = vunpack.c.l.b16 %v2097
        %v2114 = vunpack.c.h.b16 %v2097
        %v2115 = vunpack.c.l.b16 %v2098
        %v2116 = vunpack.c.h.b16 %v2098
        %v2117 = vunpack.c.l.b16 %v2099
        %v2118 = vunpack.c.h.b16 %v2099
        %v2119 = vunpack.c.l.b16 %v2100
        %v2120 = vunpack.c.h.b16 %v2100
        %v2121 = vunpack.c.l.b16 %v2101
        %v2122 = vunpack.c.h.b16 %v2101
        %v2123 = vunpack.c.l.b16 %v2102
        %v2124 = vunpack.c.h.b16 %v2102
        %v2125 = vunpack.c.l.b16 %v2103
        %v2126 = vunpack.c.h.b16 %v2103
        %v2127 = vunpack.c.l.b16 %v2104
        %v2128 = vunpack.c.h.b16 %v2104
        %v2129 = vpack.c.b16 %v2115, %v2113
        %v2130 = vpack.c.b16 %v2116, %v2114
        %v2131 = vpack.c.b16 %v2119, %v2117
        %v2132 = vpack.c.b16 %v2120, %v2118
        %v2133 = vpack.c.b16 %v2123, %v2121
        %v2134 = vpack.c.b16 %v2124, %v2122
        %v2135 = vpack.c.b16 %v2127, %v2125
        %v2136 = vpack.c.b16 %v2128, %v2126
        %2145 = vmatprep.subr.bf16.mxu0 0
        %2146 = vmatpush1.bf16.msra.mxu0 %v2088
        %2147 = vmatprep.subr.bf16.mxu0 0
        %2148 = vmatpush1.bf16.msra.mxu0 %v2087
        %2149 = vmatprep.subr.bf16.mxu0 0
        %2150 = vmatpush1.bf16.msra.mxu0 %v2086
        %2151 = vmatprep.subr.bf16.mxu0 0
        %2152 = vmatpush1.bf16.msra.mxu0 %v2085
        %2153 = vmatprep.subr.bf16.mxu0 0
        %2154 = vmatpush1.bf16.msra.mxu0 %v2084
        %2155 = vmatprep.subr.bf16.mxu0 0
        %2156 = vmatpush1.bf16.msra.mxu0 %v2083
        %2157 = vmatprep.subr.bf16.mxu0 0
        %2158 = vmatpush1.bf16.msra.mxu0 %v2082
        %2159 = vmatprep.subr.bf16.mxu0 0
        %2160 = vmatpush1.bf16.msra.mxu0 %v2081
        %2161 = vmatprep.subr.bf16.mxu0 0
        %2162 = vmatpush2.bf16.msra.mxu0 %v2096
        %2163 = vmatprep.subr.bf16.mxu0 0
        %2164 = vmatpush2.bf16.msra.mxu0 %v2095
        %2165 = vmatprep.subr.bf16.mxu0 0
        %2166 = vmatpush2.bf16.msra.mxu0 %v2094
        %2167 = vmatprep.subr.bf16.mxu0 0
        %2168 = vmatpush2.bf16.msra.mxu0 %v2093
        %2169 = vmatprep.subr.bf16.mxu0 0
        %2170 = vmatpush2.bf16.msra.mxu0 %v2092
        %2171 = vmatprep.subr.bf16.mxu0 0
        %2172 = vmatpush2.bf16.msra.mxu0 %v2091
        %2173 = vmatprep.subr.bf16.mxu0 0
        %2174 = vmatpush2.bf16.msra.mxu0 %v2090
        %2175 = vmatprep.subr.bf16.mxu0 0
        %2176 = vmatpush2.bf16.msra.mxu0 %v2089
        %2177 = vmatprep.mubr.bf16.mxu0 %v2130
        %2178 = vmatmul.mubr.bf16.gmra.mxu0 %v2129
        %v2179 = vpop.f32.mrf.mxu0
        %v2180 = vadd.f32 0.0, %v2179
        %v2181 = vpop.f32.mrf.mxu0
        %v2182 = vpop.f32.mrf.mxu0
        %v2183 = vadd.f32 0.0, %v2182
        %v2184 = vpop.f32.mrf.mxu0
        %2185 = vmatprep.mubr.bf16.mxu0 %v2132
        %2186 = vmatmul.mubr.bf16.gmra.mxu0 %v2131
        %v2187 = vpop.f32.mrf.mxu0
        %v2188 = vadd.f32 0.0, %v2187
        %v2189 = vpop.f32.mrf.mxu0
        %v2190 = vpop.f32.mrf.mxu0
        %v2191 = vadd.f32 0.0, %v2190
        %v2192 = vpop.f32.mrf.mxu0
        %2193 = vmatprep.mubr.bf16.mxu0 %v2134
        %2194 = vmatmul.mubr.bf16.gmra.mxu0 %v2133
        %v2195 = vpop.f32.mrf.mxu0
        %v2196 = vadd.f32 0.0, %v2195
        %v2197 = vpop.f32.mrf.mxu0
        %v2198 = vpop.f32.mrf.mxu0
        %v2199 = vadd.f32 0.0, %v2198
        %v2200 = vpop.f32.mrf.mxu0
        %2201 = vmatprep.mubr.bf16.mxu0 %v2136
        %2202 = vmatmul.mubr.bf16.gmra.mxu0 %v2135
        %v2203 = vpop.f32.mrf.mxu0
        %v2204 = vadd.f32 0.0, %v2203
        %v2205 = vpop.f32.mrf.mxu0
        %v2206 = vpop.f32.mrf.mxu0
        %v2207 = vadd.f32 0.0, %v2206
        %v2208 = vpop.f32.mrf.mxu0
        %2209 = vdwg.mxu0
        %v2210 = vmax.f32 %v2180, 1e-12
        %v2211 = vmax.f32 %v2183, 1e-12
        %v2212 = vmax.f32 %v2188, 1e-12
        %v2213 = vmax.f32 %v2191, 1e-12
        %v2214 = vmax.f32 %v2196, 1e-12
        %v2215 = vmax.f32 %v2199, 1e-12
        %v2216 = vmax.f32 %v2204, 1e-12
        %v2217 = vmax.f32 %v2207, 1e-12
        %v2218 = vrcp.pop %v2210
        %v2219 = vrcp.pop %v2211
        %v2220 = vrcp.pop %v2212
        %v2221 = vrcp.pop %v2213
        %v2222 = vrcp.pop %v2214
        %v2223 = vrcp.pop %v2215
        %v2224 = vrcp.pop %v2216
        %v2225 = vrcp.pop %v2217
        %2234 = vrot.lane.b32.xlu0 %v2218, 64
        %v2235 = vpop.permute.xlu0 %2234
        %2236 = vrot.lane.b32.xlu0 %v2219, 64
        %v2237 = vpop.permute.xlu0 %2236
        %2238 = vrot.lane.b32.xlu0 %v2220, 64
        %v2239 = vpop.permute.xlu0 %2238
        %2240 = vrot.lane.b32.xlu0 %v2221, 64
        %v2241 = vpop.permute.xlu0 %2240
        %2242 = vrot.lane.b32.xlu0 %v2222, 64
        %v2243 = vpop.permute.xlu0 %2242
        %2244 = vrot.lane.b32.xlu0 %v2223, 64
        %v2245 = vpop.permute.xlu0 %2244
        %2246 = vrot.lane.b32.xlu0 %v2224, 64
        %v2247 = vpop.permute.xlu0 %2246
        %2248 = vrot.lane.b32.xlu0 %v2225, 64
        %v2249 = vpop.permute.xlu0 %2248
        %v2258 = vmul.f32 %v2180, %v2235
        %v2259 = vmul.f32 %v2183, %v2237
        %v2260 = vmul.f32 %v2188, %v2239
        %v2261 = vmul.f32 %v2191, %v2241
        %v2262 = vmul.f32 %v2196, %v2243
        %v2263 = vmul.f32 %v2199, %v2245
        %v2264 = vmul.f32 %v2204, %v2247
        %v2265 = vmul.f32 %v2207, %v2249
        %2274 = vrot.lane.b32.xlu0 %v1330, 64
        %v2275 = vpop.permute.xlu0 %2274
        %2276 = vrot.lane.b32.xlu0 %v1331, 64
        %v2277 = vpop.permute.xlu0 %2276
        %2278 = vrot.lane.b32.xlu0 %v1332, 64
        %v2279 = vpop.permute.xlu0 %2278
        %2280 = vrot.lane.b32.xlu0 %v1333, 64
        %v2281 = vpop.permute.xlu0 %2280
        %2282 = vrot.lane.b32.xlu0 %v1334, 64
        %v2283 = vpop.permute.xlu0 %2282
        %2284 = vrot.lane.b32.xlu0 %v1335, 64
        %v2285 = vpop.permute.xlu0 %2284
        %2286 = vrot.lane.b32.xlu0 %v1336, 64
        %v2287 = vpop.permute.xlu0 %2286
        %2288 = vrot.lane.b32.xlu0 %v1337, 64
        %v2289 = vpop.permute.xlu0 %2288
        %v2298 = vadd.f32 %v2258, %v2275
        %v2299 = vadd.f32 %v2259, %v2277
        %v2300 = vadd.f32 %v2260, %v2279
        %v2301 = vadd.f32 %v2261, %v2281
        %v2302 = vadd.f32 %v2262, %v2283
        %v2303 = vadd.f32 %v2263, %v2285
        %v2304 = vadd.f32 %v2264, %v2287
        %v2305 = vadd.f32 %v2265, %v2289
        %v2306 = vpack.c.bf16 %v2299, %v2298
        %v2307 = vpack.c.bf16 %v2301, %v2300
        %v2308 = vpack.c.bf16 %v2303, %v2302
        %v2309 = vpack.c.bf16 %v2305, %v2304
        %v2310 = vld [vmem:[%s709] sm:$0xf]
        %v2311 = vld [vmem:[%s709 + $0x4] sm:$0xf]
        %v2312 = vld [vmem:[%s709 + $0x8] sm:$0xf]
        %v2313 = vld [vmem:[%s709 + $0xc] sm:$0xf]
        %v2314 = vld [vmem:[%s709 + $0x10] sm:$0xf]
        %v2315 = vld [vmem:[%s709 + $0x14] sm:$0xf]
        %v2316 = vld [vmem:[%s709 + $0x18] sm:$0xf]
        %v2317 = vld [vmem:[%s709 + $0x1c] sm:$0xf]
        %v2318 = vld [vmem:[%s712] sm:$0x1]
        %v2320 = vlaneseq
        %v2321 = vshrl.u32 %v2320, 7
        %v2322 = vsub.s32 0, %v2321
        %v2323 = vrot.slane %v2318, %v2322
        %2329 = vrot.lane.b32.xlu0 %v2306, 64
        %v2330 = vpop.permute.xlu0 %2329
        %2331 = vrot.lane.b32.xlu0 %v2307, 64
        %v2332 = vpop.permute.xlu0 %2331
        %2333 = vrot.lane.b32.xlu0 %v2308, 64
        %v2334 = vpop.permute.xlu0 %2333
        %2335 = vrot.lane.b32.xlu0 %v2309, 64
        %v2336 = vpop.permute.xlu0 %2335
        %v2345 = vunpack.c.l.b16 %v2310
        %v2346 = vunpack.c.l.b16 %v2311
        %v2347 = vunpack.c.l.b16 %v2312
        %v2348 = vunpack.c.l.b16 %v2313
        %v2349 = vunpack.c.l.b16 %v2314
        %v2350 = vunpack.c.l.b16 %v2315
        %v2351 = vunpack.c.l.b16 %v2316
        %v2352 = vunpack.c.l.b16 %v2317
        %v2353 = vpack.c.b16 %v2346, %v2345
        %v2354 = vpack.c.b16 %v2348, %v2347
        %v2355 = vpack.c.b16 %v2350, %v2349
        %v2356 = vpack.c.b16 %v2352, %v2351
        %v2362 = vsel %vm1153, %v2330, 0
        %v2365 = vsel %vm1153, %v2332, 0
        %v2368 = vsel %vm1153, %v2334, 0
        %v2371 = vsel %vm1153, %v2336, 0
        %2373 = vmatprep.subr.bf16.mxu0 0
        %2374 = vmatpush1.bf16.msra.mxu0 0
        %2375 = vmatprep.subr.bf16.mxu0 0
        %2376 = vmatpush1.bf16.msra.mxu0 0
        %2377 = vmatprep.subr.bf16.mxu0 0
        %2378 = vmatpush1.bf16.msra.mxu0 0
        %2379 = vmatprep.subr.bf16.mxu0 0
        %2380 = vmatpush1.bf16.msra.mxu0 0
        %2381 = vmatprep.subr.bf16.mxu0 0
        %2382 = vmatpush1.bf16.msra.mxu0 %v2356
        %2383 = vmatprep.subr.bf16.mxu0 0
        %2384 = vmatpush1.bf16.msra.mxu0 %v2355
        %2385 = vmatprep.subr.bf16.mxu0 0
        %2386 = vmatpush1.bf16.msra.mxu0 %v2354
        %2387 = vmatprep.subr.bf16.mxu0 0
        %2388 = vmatpush1.bf16.msra.mxu0 %v2353
        %2389 = vmatprep.subr.bf16.mxu0 0
        %2390 = vmatpush2.bf16.msra.mxu0 0
        %2391 = vmatprep.subr.bf16.mxu0 0
        %2392 = vmatpush2.bf16.msra.mxu0 0
        %2393 = vmatprep.subr.bf16.mxu0 0
        %2394 = vmatpush2.bf16.msra.mxu0 0
        %2395 = vmatprep.subr.bf16.mxu0 0
        %2396 = vmatpush2.bf16.msra.mxu0 0
        %2397 = vmatprep.subr.bf16.mxu0 0
        %2398 = vmatpush2.bf16.msra.mxu0 0
        %2399 = vmatprep.subr.bf16.mxu0 0
        %2400 = vmatpush2.bf16.msra.mxu0 0
        %2401 = vmatprep.subr.bf16.mxu0 0
        %2402 = vmatpush2.bf16.msra.mxu0 0
        %2403 = vmatprep.subr.bf16.mxu0 0
        %2404 = vmatpush2.bf16.msra.mxu0 0
        %2405 = vmatprep.mubr.bf16.mxu0 0
        %2406 = vmatmul.mubr.bf16.gmra.mxu0 %v2362
        %v2407 = vpop.f32.mrf.mxu0
        %v2408 = vadd.f32 %v2323, %v2407
        %v2409 = vpop.f32.mrf.mxu0
        %v2410 = vpop.f32.mrf.mxu0
        %v2411 = vadd.f32 %v2323, %v2410
        %v2412 = vpop.f32.mrf.mxu0
        %2413 = vmatprep.mubr.bf16.mxu0 0
        %2414 = vmatmul.mubr.bf16.gmra.mxu0 %v2365
        %v2415 = vpop.f32.mrf.mxu0
        %v2416 = vadd.f32 %v2323, %v2415
        %v2417 = vpop.f32.mrf.mxu0
        %v2418 = vpop.f32.mrf.mxu0
        %v2419 = vadd.f32 %v2323, %v2418
        %v2420 = vpop.f32.mrf.mxu0
        %2421 = vmatprep.mubr.bf16.mxu0 0
        %2422 = vmatmul.mubr.bf16.gmra.mxu0 %v2368
        %v2423 = vpop.f32.mrf.mxu0
        %v2424 = vadd.f32 %v2323, %v2423
        %v2425 = vpop.f32.mrf.mxu0
        %v2426 = vpop.f32.mrf.mxu0
        %v2427 = vadd.f32 %v2323, %v2426
        %v2428 = vpop.f32.mrf.mxu0
        %2429 = vmatprep.mubr.bf16.mxu0 0
        %2430 = vmatmul.mubr.bf16.gmra.mxu0 %v2371
        %v2431 = vpop.f32.mrf.mxu0
        %v2432 = vadd.f32 %v2323, %v2431
        %v2433 = vpop.f32.mrf.mxu0
        %v2434 = vpop.f32.mrf.mxu0
        %v2435 = vadd.f32 %v2323, %v2434
        %v2436 = vpop.f32.mrf.mxu0
        %2437 = vdwg.mxu0
        %v2438 = vld [vmem:[%s715] sm:$0x1]
        %v2439 = vld [vmem:[%s718] sm:$0x1]
        %2440 = vadd.xlane.f32.xlu0 %v2408
        %v2441 = vpop.xlane.xlu0 %2440
        %2442 = vadd.xlane.f32.xlu0 %v2411
        %v2443 = vpop.xlane.xlu0 %2442
        %2444 = vadd.xlane.f32.xlu0 %v2416
        %v2445 = vpop.xlane.xlu0 %2444
        %2446 = vadd.xlane.f32.xlu0 %v2419
        %v2447 = vpop.xlane.xlu0 %2446
        %2448 = vadd.xlane.f32.xlu0 %v2424
        %v2449 = vpop.xlane.xlu0 %2448
        %2450 = vadd.xlane.f32.xlu0 %v2427
        %v2451 = vpop.xlane.xlu0 %2450
        %2452 = vadd.xlane.f32.xlu0 %v2432
        %v2453 = vpop.xlane.xlu0 %2452
        %2454 = vadd.xlane.f32.xlu0 %v2435
        %v2455 = vpop.xlane.xlu0 %2454
        %v2456 = vrcp.pop 128.0
        %v2457 = vmul.f32 %v2441, %v2456
        %v2458 = vmul.f32 %v2443, %v2456
        %v2459 = vmul.f32 %v2445, %v2456
        %v2460 = vmul.f32 %v2447, %v2456
        %v2461 = vmul.f32 %v2449, %v2456
        %v2462 = vmul.f32 %v2451, %v2456
        %v2463 = vmul.f32 %v2453, %v2456
        %v2464 = vmul.f32 %v2455, %v2456
        %v2465 = vmul.f32 %v2408, %v2408
        %v2466 = vmul.f32 %v2411, %v2411
        %v2467 = vmul.f32 %v2416, %v2416
        %v2468 = vmul.f32 %v2419, %v2419
        %v2469 = vmul.f32 %v2424, %v2424
        %v2470 = vmul.f32 %v2427, %v2427
        %v2471 = vmul.f32 %v2432, %v2432
        %v2472 = vmul.f32 %v2435, %v2435
        %2473 = vadd.xlane.f32.xlu0 %v2465
        %v2474 = vpop.xlane.xlu0 %2473
        %2475 = vadd.xlane.f32.xlu0 %v2466
        %v2476 = vpop.xlane.xlu0 %2475
        %2477 = vadd.xlane.f32.xlu0 %v2467
        %v2478 = vpop.xlane.xlu0 %2477
        %2479 = vadd.xlane.f32.xlu0 %v2468
        %v2480 = vpop.xlane.xlu0 %2479
        %2481 = vadd.xlane.f32.xlu0 %v2469
        %v2482 = vpop.xlane.xlu0 %2481
        %2483 = vadd.xlane.f32.xlu0 %v2470
        %v2484 = vpop.xlane.xlu0 %2483
        %2485 = vadd.xlane.f32.xlu0 %v2471
        %v2486 = vpop.xlane.xlu0 %2485
        %2487 = vadd.xlane.f32.xlu0 %v2472
        %v2488 = vpop.xlane.xlu0 %2487
        %v2489 = vmul.f32 %v2474, %v2456
        %v2490 = vmul.f32 %v2476, %v2456
        %v2491 = vmul.f32 %v2478, %v2456
        %v2492 = vmul.f32 %v2480, %v2456
        %v2493 = vmul.f32 %v2482, %v2456
        %v2494 = vmul.f32 %v2484, %v2456
        %v2495 = vmul.f32 %v2486, %v2456
        %v2496 = vmul.f32 %v2488, %v2456
        %v2497 = vmul.f32 %v2457, %v2457
        %v2498 = vmul.f32 %v2458, %v2458
        %v2499 = vmul.f32 %v2459, %v2459
        %v2500 = vmul.f32 %v2460, %v2460
        %v2501 = vmul.f32 %v2461, %v2461
        %v2502 = vmul.f32 %v2462, %v2462
        %v2503 = vmul.f32 %v2463, %v2463
        %v2504 = vmul.f32 %v2464, %v2464
        %v2505 = vsub.f32 %v2489, %v2497
        %v2506 = vsub.f32 %v2490, %v2498
        %v2507 = vsub.f32 %v2491, %v2499
        %v2508 = vsub.f32 %v2492, %v2500
        %v2509 = vsub.f32 %v2493, %v2501
        %v2510 = vsub.f32 %v2494, %v2502
        %v2511 = vsub.f32 %v2495, %v2503
        %v2512 = vsub.f32 %v2496, %v2504
        %v2513 = vmax.f32 %v2505, 0.0
        %v2514 = vmax.f32 %v2506, 0.0
        %v2515 = vmax.f32 %v2507, 0.0
        %v2516 = vmax.f32 %v2508, 0.0
        %v2517 = vmax.f32 %v2509, 0.0
        %v2518 = vmax.f32 %v2510, 0.0
        %v2519 = vmax.f32 %v2511, 0.0
        %v2520 = vmax.f32 %v2512, 0.0
        %v2521 = vadd.f32 %v2513, 1e-05
        %v2522 = vadd.f32 %v2514, 1e-05
        %v2523 = vadd.f32 %v2515, 1e-05
        %v2524 = vadd.f32 %v2516, 1e-05
        %v2525 = vadd.f32 %v2517, 1e-05
        %v2526 = vadd.f32 %v2518, 1e-05
        %v2527 = vadd.f32 %v2519, 1e-05
        %v2528 = vadd.f32 %v2520, 1e-05
        %v2529 = vrsqrt.pop %v2521
        %v2530 = vrsqrt.pop %v2522
        %v2531 = vrsqrt.pop %v2523
        %v2532 = vrsqrt.pop %v2524
        %v2533 = vrsqrt.pop %v2525
        %v2534 = vrsqrt.pop %v2526
        %v2535 = vrsqrt.pop %v2527
        %v2536 = vrsqrt.pop %v2528
        %v2538 = vlaneseq
        %v2539 = vshrl.u32 %v2538, 7
        %v2540 = vsub.s32 0, %v2539
        %v2541 = vrot.slane %v2438, %v2540
        %v2543 = vmul.f32 %v2529, %v2541
        %v2544 = vmul.f32 %v2530, %v2541
        %v2545 = vmul.f32 %v2531, %v2541
        %v2546 = vmul.f32 %v2532, %v2541
        %v2547 = vmul.f32 %v2533, %v2541
        %v2548 = vmul.f32 %v2534, %v2541
        %v2549 = vmul.f32 %v2535, %v2541
        %v2550 = vmul.f32 %v2536, %v2541
        %v2551 = vmul.f32 %v2408, %v2543
        %v2552 = vmul.f32 %v2411, %v2544
        %v2553 = vmul.f32 %v2416, %v2545
        %v2554 = vmul.f32 %v2419, %v2546
        %v2555 = vmul.f32 %v2424, %v2547
        %v2556 = vmul.f32 %v2427, %v2548
        %v2557 = vmul.f32 %v2432, %v2549
        %v2558 = vmul.f32 %v2435, %v2550
        %v2559 = vmul.f32 %v2457, %v2543
        %v2560 = vmul.f32 %v2458, %v2544
        %v2561 = vmul.f32 %v2459, %v2545
        %v2562 = vmul.f32 %v2460, %v2546
        %v2563 = vmul.f32 %v2461, %v2547
        %v2564 = vmul.f32 %v2462, %v2548
        %v2565 = vmul.f32 %v2463, %v2549
        %v2566 = vmul.f32 %v2464, %v2550
        %v2568 = vlaneseq
        %v2569 = vshrl.u32 %v2568, 7
        %v2570 = vsub.s32 0, %v2569
        %v2571 = vrot.slane %v2439, %v2570
        %v2573 = vsub.f32 %v2571, %v2559
        %v2574 = vsub.f32 %v2571, %v2560
        %v2575 = vsub.f32 %v2571, %v2561
        %v2576 = vsub.f32 %v2571, %v2562
        %v2577 = vsub.f32 %v2571, %v2563
        %v2578 = vsub.f32 %v2571, %v2564
        %v2579 = vsub.f32 %v2571, %v2565
        %v2580 = vsub.f32 %v2571, %v2566
        %v2581 = vadd.f32 %v2551, %v2573
        %v2582 = vadd.f32 %v2552, %v2574
        %v2583 = vadd.f32 %v2553, %v2575
        %v2584 = vadd.f32 %v2554, %v2576
        %v2585 = vadd.f32 %v2555, %v2577
        %v2586 = vadd.f32 %v2556, %v2578
        %v2587 = vadd.f32 %v2557, %v2579
        %v2588 = vadd.f32 %v2558, %v2580
        %v2589 = vmax.f32 %v2581, 0.0
        %v2590 = vmax.f32 %v2582, 0.0
        %v2591 = vmax.f32 %v2583, 0.0
        %v2592 = vmax.f32 %v2584, 0.0
        %v2593 = vmax.f32 %v2585, 0.0
        %v2594 = vmax.f32 %v2586, 0.0
        %v2595 = vmax.f32 %v2587, 0.0
        %v2596 = vmax.f32 %v2588, 0.0
        %v2597 = vpack.c.bf16 %v2590, %v2589
        %v2598 = vpack.c.bf16 %v2592, %v2591
        %v2599 = vpack.c.bf16 %v2594, %v2593
        %v2600 = vpack.c.bf16 %v2596, %v2595
        %v2601 = vld [vmem:[%s723] sm:$0xf]
        %v2602 = vld [vmem:[%s723 + $0x4] sm:$0xf]
        %v2603 = vld [vmem:[%s723 + $0x8] sm:$0xf]
        %v2604 = vld [vmem:[%s723 + $0xc] sm:$0xf]
        %v2605 = vld [vmem:[%s723 + $0x10] sm:$0xf]
        %v2606 = vld [vmem:[%s723 + $0x14] sm:$0xf]
        %v2607 = vld [vmem:[%s723 + $0x18] sm:$0xf]
        %v2608 = vld [vmem:[%s723 + $0x1c] sm:$0xf]
        %v2609 = vld [vmem:[%s723 + $0x20] sm:$0xf]
        %v2610 = vld [vmem:[%s723 + $0x24] sm:$0xf]
        %v2611 = vld [vmem:[%s723 + $0x28] sm:$0xf]
        %v2612 = vld [vmem:[%s723 + $0x2c] sm:$0xf]
        %v2613 = vld [vmem:[%s723 + $0x30] sm:$0xf]
        %v2614 = vld [vmem:[%s723 + $0x34] sm:$0xf]
        %v2615 = vld [vmem:[%s723 + $0x38] sm:$0xf]
        %v2616 = vld [vmem:[%s723 + $0x3c] sm:$0xf]
        %v2617 = vld [vmem:[%s726] sm:$0x1]
        %v2619 = vlaneseq
        %v2620 = vshrl.u32 %v2619, 7
        %v2621 = vsub.s32 0, %v2620
        %v2622 = vrot.slane %v2617, %v2621
        %v2640 = vunpack.c.l.b16 %v2601
        %v2641 = vunpack.c.l.b16 %v2602
        %v2642 = vunpack.c.l.b16 %v2603
        %v2643 = vunpack.c.l.b16 %v2604
        %v2644 = vunpack.c.l.b16 %v2605
        %v2645 = vunpack.c.l.b16 %v2606
        %v2646 = vunpack.c.l.b16 %v2607
        %v2647 = vunpack.c.l.b16 %v2608
        %v2648 = vunpack.c.l.b16 %v2609
        %v2649 = vunpack.c.l.b16 %v2610
        %v2650 = vunpack.c.l.b16 %v2611
        %v2651 = vunpack.c.l.b16 %v2612
        %v2652 = vunpack.c.l.b16 %v2613
        %v2653 = vunpack.c.l.b16 %v2614
        %v2654 = vunpack.c.l.b16 %v2615
        %v2655 = vunpack.c.l.b16 %v2616
        %v2656 = vpack.c.b16 %v2641, %v2640
        %v2657 = vpack.c.b16 %v2643, %v2642
        %v2658 = vpack.c.b16 %v2645, %v2644
        %v2659 = vpack.c.b16 %v2647, %v2646
        %v2660 = vpack.c.b16 %v2649, %v2648
        %v2661 = vpack.c.b16 %v2651, %v2650
        %v2662 = vpack.c.b16 %v2653, %v2652
        %v2663 = vpack.c.b16 %v2655, %v2654
        %2672 = vmatprep.subr.bf16.mxu0 0
        %2673 = vmatpush1.bf16.msra.mxu0 %v2663
        %2674 = vmatprep.subr.bf16.mxu0 0
        %2675 = vmatpush1.bf16.msra.mxu0 %v2662
        %2676 = vmatprep.subr.bf16.mxu0 0
        %2677 = vmatpush1.bf16.msra.mxu0 %v2661
        %2678 = vmatprep.subr.bf16.mxu0 0
        %2679 = vmatpush1.bf16.msra.mxu0 %v2660
        %2680 = vmatprep.subr.bf16.mxu0 0
        %2681 = vmatpush1.bf16.msra.mxu0 %v2659
        %2682 = vmatprep.subr.bf16.mxu0 0
        %2683 = vmatpush1.bf16.msra.mxu0 %v2658
        %2684 = vmatprep.subr.bf16.mxu0 0
        %2685 = vmatpush1.bf16.msra.mxu0 %v2657
        %2686 = vmatprep.subr.bf16.mxu0 0
        %2687 = vmatpush1.bf16.msra.mxu0 %v2656
        %2688 = vmatprep.subr.bf16.mxu0 0
        %2689 = vmatpush2.bf16.msra.mxu0 0
        %2690 = vmatprep.subr.bf16.mxu0 0
        %2691 = vmatpush2.bf16.msra.mxu0 0
        %2692 = vmatprep.subr.bf16.mxu0 0
        %2693 = vmatpush2.bf16.msra.mxu0 0
        %2694 = vmatprep.subr.bf16.mxu0 0
        %2695 = vmatpush2.bf16.msra.mxu0 0
        %2696 = vmatprep.subr.bf16.mxu0 0
        %2697 = vmatpush2.bf16.msra.mxu0 0
        %2698 = vmatprep.subr.bf16.mxu0 0
        %2699 = vmatpush2.bf16.msra.mxu0 0
        %2700 = vmatprep.subr.bf16.mxu0 0
        %2701 = vmatpush2.bf16.msra.mxu0 0
        %2702 = vmatprep.subr.bf16.mxu0 0
        %2703 = vmatpush2.bf16.msra.mxu0 0
        %2704 = vmatprep.mubr.bf16.mxu0 0
        %2705 = vmatmul.mubr.bf16.gmra.mxu0 %v2597
        %v2706 = vpop.f32.mrf.mxu0
        %v2707 = vadd.f32 %v2622, %v2706
        %v2708 = vpop.f32.mrf.mxu0
        %v2709 = vpop.f32.mrf.mxu0
        %v2710 = vadd.f32 %v2622, %v2709
        %v2711 = vpop.f32.mrf.mxu0
        %2712 = vmatprep.mubr.bf16.mxu0 0
        %2713 = vmatmul.mubr.bf16.gmra.mxu0 %v2598
        %v2714 = vpop.f32.mrf.mxu0
        %v2715 = vadd.f32 %v2622, %v2714
        %v2716 = vpop.f32.mrf.mxu0
        %v2717 = vpop.f32.mrf.mxu0
        %v2718 = vadd.f32 %v2622, %v2717
        %v2719 = vpop.f32.mrf.mxu0
        %2720 = vmatprep.mubr.bf16.mxu0 0
        %2721 = vmatmul.mubr.bf16.gmra.mxu0 %v2599
        %v2722 = vpop.f32.mrf.mxu0
        %v2723 = vadd.f32 %v2622, %v2722
        %v2724 = vpop.f32.mrf.mxu0
        %v2725 = vpop.f32.mrf.mxu0
        %v2726 = vadd.f32 %v2622, %v2725
        %v2727 = vpop.f32.mrf.mxu0
        %2728 = vmatprep.mubr.bf16.mxu0 0
        %2729 = vmatmul.mubr.bf16.gmra.mxu0 %v2600
        %v2730 = vpop.f32.mrf.mxu0
        %v2731 = vadd.f32 %v2622, %v2730
        %v2732 = vpop.f32.mrf.mxu0
        %v2733 = vpop.f32.mrf.mxu0
        %v2734 = vadd.f32 %v2622, %v2733
        %v2735 = vpop.f32.mrf.mxu0
        %2736 = vdwg.mxu0
        %v2737 = vadd.f32 %v1143, %v2707
        %v2738 = vadd.f32 %v1144, %v2710
        %v2739 = vadd.f32 %v1145, %v2715
        %v2740 = vadd.f32 %v1146, %v2718
        %v2741 = vadd.f32 %v1147, %v2723
        %v2742 = vadd.f32 %v1148, %v2726
        %v2743 = vadd.f32 %v1149, %v2731
        %v2744 = vadd.f32 %v1150, %v2734
        %v2745 = vsel %vm1329, %v2707, %v2737
        %v2746 = vsel %vm1329, %v2710, %v2738
        %v2747 = vsel %vm1329, %v2715, %v2739
        %v2748 = vsel %vm1329, %v2718, %v2740
        %v2749 = vsel %vm1329, %v2723, %v2741
        %v2750 = vsel %vm1329, %v2726, %v2742
        %v2751 = vsel %vm1329, %v2731, %v2743
        %v2752 = vsel %vm1329, %v2734, %v2744
        %2753 = vst.msk [vmem:[#allocation2] sm:$0xff] %vm1153, %v2745
        %2754 = vst.msk [vmem:[#allocation2 + $0x8] sm:$0xff] %vm1153, %v2746
        %2755 = vst.msk [vmem:[#allocation2 + $0x10] sm:$0xff] %vm1153, %v2747
        %2756 = vst.msk [vmem:[#allocation2 + $0x18] sm:$0xff] %vm1153, %v2748
        %2757 = vst.msk [vmem:[#allocation2 + $0x20] sm:$0xff] %vm1153, %v2749
        %2758 = vst.msk [vmem:[#allocation2 + $0x28] sm:$0xff] %vm1153, %v2750
        %2759 = vst.msk [vmem:[#allocation2 + $0x30] sm:$0xff] %vm1153, %v2751
        %2760 = vst.msk [vmem:[#allocation2 + $0x38] sm:$0xff] %vm1153, %v2752
        %p2761 = scmp.eq.s32.totalorder %s39, 2
        // Predicated region
        $region105: #{tpu_custom_call.1} parent=99 // pred_check
          %p2762 = pneg %p2761
        $region106: #{tpu_custom_call.1} parent=99 // pred_check_branch
          %2764 = sbr.rel (%p2762) target = $region108
        $region107: #{tpu_custom_call.1} parent=99 // pred_region
          %v2765 = vld [vmem:[%s9] sm:$0x1]
          %v2766 = vld [vmem:[%s10] sm:$0x1]
          %v2767 = vsel %vm1153, %v2745, 0.0
          %2768 = vadd.xlane.f32.xlu0 %v2767
          %v2769 = vpop.xlane.xlu0 %2768
          %v2770 = vsel %vm1153, %v2746, 0.0
          %2771 = vadd.xlane.f32.xlu0 %v2770
          %v2772 = vpop.xlane.xlu0 %2771
          %v2773 = vsel %vm1153, %v2747, 0.0
          %2774 = vadd.xlane.f32.xlu0 %v2773
          %v2775 = vpop.xlane.xlu0 %2774
          %v2776 = vsel %vm1153, %v2748, 0.0
          %2777 = vadd.xlane.f32.xlu0 %v2776
          %v2778 = vpop.xlane.xlu0 %2777
          %v2779 = vsel %vm1153, %v2749, 0.0
          %2780 = vadd.xlane.f32.xlu0 %v2779
          %v2781 = vpop.xlane.xlu0 %2780
          %v2782 = vsel %vm1153, %v2750, 0.0
          %2783 = vadd.xlane.f32.xlu0 %v2782
          %v2784 = vpop.xlane.xlu0 %2783
          %v2785 = vsel %vm1153, %v2751, 0.0
          %2786 = vadd.xlane.f32.xlu0 %v2785
          %v2787 = vpop.xlane.xlu0 %2786
          %v2788 = vsel %vm1153, %v2752, 0.0
          %2789 = vadd.xlane.f32.xlu0 %v2788
          %v2790 = vpop.xlane.xlu0 %2789
          %v2791 = vmul.f32 %v2769, %v1178
          %v2792 = vmul.f32 %v2772, %v1178
          %v2793 = vmul.f32 %v2775, %v1178
          %v2794 = vmul.f32 %v2778, %v1178
          %v2795 = vmul.f32 %v2781, %v1178
          %v2796 = vmul.f32 %v2784, %v1178
          %v2797 = vmul.f32 %v2787, %v1178
          %v2798 = vmul.f32 %v2790, %v1178
          %v2799 = vmul.f32 %v2745, %v2745
          %v2800 = vmul.f32 %v2746, %v2746
          %v2801 = vmul.f32 %v2747, %v2747
          %v2802 = vmul.f32 %v2748, %v2748
          %v2803 = vmul.f32 %v2749, %v2749
          %v2804 = vmul.f32 %v2750, %v2750
          %v2805 = vmul.f32 %v2751, %v2751
          %v2806 = vmul.f32 %v2752, %v2752
          %v2807 = vsel %vm1153, %v2799, 0.0
          %2808 = vadd.xlane.f32.xlu0 %v2807
          %v2809 = vpop.xlane.xlu0 %2808
          %v2810 = vsel %vm1153, %v2800, 0.0
          %2811 = vadd.xlane.f32.xlu0 %v2810
          %v2812 = vpop.xlane.xlu0 %2811
          %v2813 = vsel %vm1153, %v2801, 0.0
          %2814 = vadd.xlane.f32.xlu0 %v2813
          %v2815 = vpop.xlane.xlu0 %2814
          %v2816 = vsel %vm1153, %v2802, 0.0
          %2817 = vadd.xlane.f32.xlu0 %v2816
          %v2818 = vpop.xlane.xlu0 %2817
          %v2819 = vsel %vm1153, %v2803, 0.0
          %2820 = vadd.xlane.f32.xlu0 %v2819
          %v2821 = vpop.xlane.xlu0 %2820
          %v2822 = vsel %vm1153, %v2804, 0.0
          %2823 = vadd.xlane.f32.xlu0 %v2822
          %v2824 = vpop.xlane.xlu0 %2823
          %v2825 = vsel %vm1153, %v2805, 0.0
          %2826 = vadd.xlane.f32.xlu0 %v2825
          %v2827 = vpop.xlane.xlu0 %2826
          %v2828 = vsel %vm1153, %v2806, 0.0
          %2829 = vadd.xlane.f32.xlu0 %v2828
          %v2830 = vpop.xlane.xlu0 %2829
          %v2831 = vmul.f32 %v2809, %v1178
          %v2832 = vmul.f32 %v2812, %v1178
          %v2833 = vmul.f32 %v2815, %v1178
          %v2834 = vmul.f32 %v2818, %v1178
          %v2835 = vmul.f32 %v2821, %v1178
          %v2836 = vmul.f32 %v2824, %v1178
          %v2837 = vmul.f32 %v2827, %v1178
          %v2838 = vmul.f32 %v2830, %v1178
          %v2839 = vmul.f32 %v2791, %v2791
          %v2840 = vmul.f32 %v2792, %v2792
          %v2841 = vmul.f32 %v2793, %v2793
          %v2842 = vmul.f32 %v2794, %v2794
          %v2843 = vmul.f32 %v2795, %v2795
          %v2844 = vmul.f32 %v2796, %v2796
          %v2845 = vmul.f32 %v2797, %v2797
          %v2846 = vmul.f32 %v2798, %v2798
          %v2847 = vsub.f32 %v2831, %v2839
          %v2848 = vsub.f32 %v2832, %v2840
          %v2849 = vsub.f32 %v2833, %v2841
          %v2850 = vsub.f32 %v2834, %v2842
          %v2851 = vsub.f32 %v2835, %v2843
          %v2852 = vsub.f32 %v2836, %v2844
          %v2853 = vsub.f32 %v2837, %v2845
          %v2854 = vsub.f32 %v2838, %v2846
          %v2855 = vmax.f32 %v2847, 0.0
          %v2856 = vmax.f32 %v2848, 0.0
          %v2857 = vmax.f32 %v2849, 0.0
          %v2858 = vmax.f32 %v2850, 0.0
          %v2859 = vmax.f32 %v2851, 0.0
          %v2860 = vmax.f32 %v2852, 0.0
          %v2861 = vmax.f32 %v2853, 0.0
          %v2862 = vmax.f32 %v2854, 0.0
          %v2863 = vadd.f32 %v2855, 1e-05
          %v2864 = vadd.f32 %v2856, 1e-05
          %v2865 = vadd.f32 %v2857, 1e-05
          %v2866 = vadd.f32 %v2858, 1e-05
          %v2867 = vadd.f32 %v2859, 1e-05
          %v2868 = vadd.f32 %v2860, 1e-05
          %v2869 = vadd.f32 %v2861, 1e-05
          %v2870 = vadd.f32 %v2862, 1e-05
          %v2871 = vrsqrt.pop %v2863
          %v2872 = vrsqrt.pop %v2864
          %v2873 = vrsqrt.pop %v2865
          %v2874 = vrsqrt.pop %v2866
          %v2875 = vrsqrt.pop %v2867
          %v2876 = vrsqrt.pop %v2868
          %v2877 = vrsqrt.pop %v2869
          %v2878 = vrsqrt.pop %v2870
          %v2880 = vlaneseq
          %v2881 = vshrl.u32 %v2880, 7
          %v2882 = vsub.s32 0, %v2881
          %v2883 = vrot.slane %v2765, %v2882
          %v2885 = vmul.f32 %v2871, %v2883
          %v2886 = vmul.f32 %v2872, %v2883
          %v2887 = vmul.f32 %v2873, %v2883
          %v2888 = vmul.f32 %v2874, %v2883
          %v2889 = vmul.f32 %v2875, %v2883
          %v2890 = vmul.f32 %v2876, %v2883
          %v2891 = vmul.f32 %v2877, %v2883
          %v2892 = vmul.f32 %v2878, %v2883
          %v2893 = vmul.f32 %v2745, %v2885
          %v2894 = vmul.f32 %v2746, %v2886
          %v2895 = vmul.f32 %v2747, %v2887
          %v2896 = vmul.f32 %v2748, %v2888
          %v2897 = vmul.f32 %v2749, %v2889
          %v2898 = vmul.f32 %v2750, %v2890
          %v2899 = vmul.f32 %v2751, %v2891
          %v2900 = vmul.f32 %v2752, %v2892
          %v2901 = vmul.f32 %v2791, %v2885
          %v2902 = vmul.f32 %v2792, %v2886
          %v2903 = vmul.f32 %v2793, %v2887
          %v2904 = vmul.f32 %v2794, %v2888
          %v2905 = vmul.f32 %v2795, %v2889
          %v2906 = vmul.f32 %v2796, %v2890
          %v2907 = vmul.f32 %v2797, %v2891
          %v2908 = vmul.f32 %v2798, %v2892
          %v2910 = vlaneseq
          %v2911 = vshrl.u32 %v2910, 7
          %v2912 = vsub.s32 0, %v2911
          %v2913 = vrot.slane %v2766, %v2912
          %v2915 = vsub.f32 %v2913, %v2901
          %v2916 = vsub.f32 %v2913, %v2902
          %v2917 = vsub.f32 %v2913, %v2903
          %v2918 = vsub.f32 %v2913, %v2904
          %v2919 = vsub.f32 %v2913, %v2905
          %v2920 = vsub.f32 %v2913, %v2906
          %v2921 = vsub.f32 %v2913, %v2907
          %v2922 = vsub.f32 %v2913, %v2908
          %v2923 = vadd.f32 %v2893, %v2915
          %v2924 = vadd.f32 %v2894, %v2916
          %v2925 = vadd.f32 %v2895, %v2917
          %v2926 = vadd.f32 %v2896, %v2918
          %v2927 = vadd.f32 %v2897, %v2919
          %v2928 = vadd.f32 %v2898, %v2920
          %v2929 = vadd.f32 %v2899, %v2921
          %v2930 = vadd.f32 %v2900, %v2922
          %v2931 = vmax.f32 %v2923, 0.0
          %v2932 = vmax.f32 %v2924, 0.0
          %v2933 = vmax.f32 %v2925, 0.0
          %v2934 = vmax.f32 %v2926, 0.0
          %v2935 = vmax.f32 %v2927, 0.0
          %v2936 = vmax.f32 %v2928, 0.0
          %v2937 = vmax.f32 %v2929, 0.0
          %v2938 = vmax.f32 %v2930, 0.0
          %v2939 = vpack.c.bf16 %v2932, %v2931
          %v2940 = vpack.c.bf16 %v2934, %v2933
          %v2941 = vpack.c.bf16 %v2936, %v2935
          %v2942 = vpack.c.bf16 %v2938, %v2937
          %v2943 = vld [vmem:[%s19] sm:$0xf]
          %v2944 = vld [vmem:[%s19 + $0x4] sm:$0xf]
          %v2945 = vld [vmem:[%s19 + $0x8] sm:$0xf]
          %v2946 = vld [vmem:[%s19 + $0xc] sm:$0xf]
          %v2947 = vld [vmem:[%s19 + $0x10] sm:$0xf]
          %v2948 = vld [vmem:[%s19 + $0x14] sm:$0xf]
          %v2949 = vld [vmem:[%s19 + $0x18] sm:$0xf]
          %v2950 = vld [vmem:[%s19 + $0x1c] sm:$0xf]
          %v2951 = vld [vmem:[%s20] sm:$0x1]
          %v2953 = vlaneseq
          %v2954 = vshrl.u32 %v2953, 7
          %v2955 = vsub.s32 0, %v2954
          %v2956 = vrot.slane %v2951, %v2955
          %v2966 = vunpack.c.l.b16 %v2943
          %v2967 = vunpack.c.l.b16 %v2944
          %v2968 = vunpack.c.l.b16 %v2945
          %v2969 = vunpack.c.l.b16 %v2946
          %v2970 = vunpack.c.l.b16 %v2947
          %v2971 = vunpack.c.l.b16 %v2948
          %v2972 = vunpack.c.l.b16 %v2949
          %v2973 = vunpack.c.l.b16 %v2950
          %v2974 = vpack.c.b16 %v2967, %v2966
          %v2975 = vpack.c.b16 %v2969, %v2968
          %v2976 = vpack.c.b16 %v2971, %v2970
          %v2977 = vpack.c.b16 %v2973, %v2972
          %v2983 = vsel %vm1153, %v2939, 0
          %v2986 = vsel %vm1153, %v2940, 0
          %v2989 = vsel %vm1153, %v2941, 0
          %v2992 = vsel %vm1153, %v2942, 0
          %2994 = vmatprep.subr.bf16.mxu0 0
          %2995 = vmatpush1.bf16.msra.mxu0 0
          %2996 = vmatprep.subr.bf16.mxu0 0
          %2997 = vmatpush1.bf16.msra.mxu0 0
          %2998 = vmatprep.subr.bf16.mxu0 0
          %2999 = vmatpush1.bf16.msra.mxu0 0
          %3000 = vmatprep.subr.bf16.mxu0 0
          %3001 = vmatpush1.bf16.msra.mxu0 0
          %3002 = vmatprep.subr.bf16.mxu0 0
          %3003 = vmatpush1.bf16.msra.mxu0 %v2977
          %3004 = vmatprep.subr.bf16.mxu0 0
          %3005 = vmatpush1.bf16.msra.mxu0 %v2976
          %3006 = vmatprep.subr.bf16.mxu0 0
          %3007 = vmatpush1.bf16.msra.mxu0 %v2975
          %3008 = vmatprep.subr.bf16.mxu0 0
          %3009 = vmatpush1.bf16.msra.mxu0 %v2974
          %3010 = vmatprep.subr.bf16.mxu0 0
          %3011 = vmatpush2.bf16.msra.mxu0 0
          %3012 = vmatprep.subr.bf16.mxu0 0
          %3013 = vmatpush2.bf16.msra.mxu0 0
          %3014 = vmatprep.subr.bf16.mxu0 0
          %3015 = vmatpush2.bf16.msra.mxu0 0
          %3016 = vmatprep.subr.bf16.mxu0 0
          %3017 = vmatpush2.bf16.msra.mxu0 0
          %3018 = vmatprep.subr.bf16.mxu0 0
          %3019 = vmatpush2.bf16.msra.mxu0 0
          %3020 = vmatprep.subr.bf16.mxu0 0
          %3021 = vmatpush2.bf16.msra.mxu0 0
          %3022 = vmatprep.subr.bf16.mxu0 0
          %3023 = vmatpush2.bf16.msra.mxu0 0
          %3024 = vmatprep.subr.bf16.mxu0 0
          %3025 = vmatpush2.bf16.msra.mxu0 0
          %3026 = vmatprep.mubr.bf16.mxu0 0
          %3027 = vmatmul.mubr.bf16.gmra.mxu0 %v2983
          %v3028 = vpop.f32.mrf.mxu0
          %v3029 = vadd.f32 %v2956, %v3028
          %v3030 = vpop.f32.mrf.mxu0
          %v3031 = vpop.f32.mrf.mxu0
          %v3032 = vadd.f32 %v2956, %v3031
          %v3033 = vpop.f32.mrf.mxu0
          %3034 = vmatprep.mubr.bf16.mxu0 0
          %3035 = vmatmul.mubr.bf16.gmra.mxu0 %v2986
          %v3036 = vpop.f32.mrf.mxu0
          %v3037 = vadd.f32 %v2956, %v3036
          %v3038 = vpop.f32.mrf.mxu0
          %v3039 = vpop.f32.mrf.mxu0
          %v3040 = vadd.f32 %v2956, %v3039
          %v3041 = vpop.f32.mrf.mxu0
          %3042 = vmatprep.mubr.bf16.mxu0 0
          %3043 = vmatmul.mubr.bf16.gmra.mxu0 %v2989
          %v3044 = vpop.f32.mrf.mxu0
          %v3045 = vadd.f32 %v2956, %v3044
          %v3046 = vpop.f32.mrf.mxu0
          %v3047 = vpop.f32.mrf.mxu0
          %v3048 = vadd.f32 %v2956, %v3047
          %v3049 = vpop.f32.mrf.mxu0
          %3050 = vmatprep.mubr.bf16.mxu0 0
          %3051 = vmatmul.mubr.bf16.gmra.mxu0 %v2992
          %v3052 = vpop.f32.mrf.mxu0
          %v3053 = vadd.f32 %v2956, %v3052
          %v3054 = vpop.f32.mrf.mxu0
          %v3055 = vpop.f32.mrf.mxu0
          %v3056 = vadd.f32 %v2956, %v3055
          %v3057 = vpop.f32.mrf.mxu0
          %3058 = vdwg.mxu0
          %3059 = vst [vmem:[#allocation6] sm:$0xff] %v3029
          %3060 = vst [vmem:[#allocation6 + $0x8] sm:$0xff] %v3032
          %3061 = vst [vmem:[#allocation6 + $0x10] sm:$0xff] %v3037
          %3062 = vst [vmem:[#allocation6 + $0x18] sm:$0xff] %v3040
          %3063 = vst [vmem:[#allocation6 + $0x20] sm:$0xff] %v3045
          %3064 = vst [vmem:[#allocation6 + $0x28] sm:$0xff] %v3048
          %3065 = vst [vmem:[#allocation6 + $0x30] sm:$0xff] %v3053
          %3066 = vst [vmem:[#allocation6 + $0x38] sm:$0xff] %v3056
        $region108: #{tpu_custom_call.1} parent=99 // pred_fallthru
          _
        // Predicated region
        $region109: #{tpu_custom_call.1} parent=99 // pred_check
          %p3067 = pneg %p512
        $region110: #{tpu_custom_call.1} parent=99 // pred_check_branch
          %3069 = sbr.rel (%p3067) target = $region112
        $region111: #{tpu_custom_call.1} parent=99 // pred_region
          %s3071 = ssub.s32 1024, 1024
          %3072 = vsyncadd [#allocation7], %s3071
          %s3073 = sshll.u32 [#allocation6], 4
          %s3074 = int_to_ptr.vmem [resolvable:$true] %s3073
          %3079 = dma.vmem_to_hbm [thread:$0]  %s3074, 1024, %s21, [#allocation7], 128, 128, 8
        $region112: #{tpu_custom_call.1} parent=99 // pred_fallthru
          _
        // Predicated region
        $region113: #{tpu_custom_call.1} parent=99 // pred_check
          %p3080 = pneg %p512
        $region114: #{tpu_custom_call.1} parent=99 // pred_check_branch
          %3082 = sbr.rel (%p3080) target = $region116
        $region115: #{tpu_custom_call.1} parent=99 // pred_region
          %3083 = dma.done [#allocation7], 1024
        $region116: #{tpu_custom_call.1} parent=99 // pred_fallthru
          _
      $region100: #{tpu_custom_call.1} parent=5 // pred_fallthru
        _
      %p3084 = scmp.le.s32.totalorder 2, %s34
      // Predicated region
      $region117: #{tpu_custom_call.1} parent=5 // pred_check
        %p3085 = pneg %p3084
      $region118: #{tpu_custom_call.1} parent=5 // pred_check_branch
        %3087 = sbr.rel (%p3085) target = $region120
      $region119: #{tpu_custom_call.1} parent=5 // pred_region
        %s3088 = ssub.s32 %s34, 2
      $region120: #{tpu_custom_call.1} parent=5 // pred_fallthru
        _
    $region6: #{tpu_custom_call.1} parent=1 // loop_footer
      %s38 = sadd.s32 1, %s34
    $region7: #{tpu_custom_call.1} parent=1 // loop_footer_branch
      %33 = sbr.rel target = $region3
    $region8: #{tpu_custom_call.1} parent=1 // loop_exit
      _
    %3089 = vsyncpa [#allocation7], 1
    %s3090 = scalar_lea.sflag [#allocation7], 1
    %3091 = vsyncpa %s3090, 1

</llo_original>
